<compile_context>
chip_gen: v6e
topology: v6e:2x2x1
jax: 0.10.0
libtpu: 0.0.40
codegen_flags: <defaults>
</compile_context>

<pallas_src>
import functools

import jax
import jax.numpy as jnp
from jax.experimental import pallas as pl
from jax.experimental.pallas import tpu as pltpu  # noqa: F401  (TPU backend)


HIDDEN = [32, 64, 128, 64] * 3 + [32, 16, 8, 4, 2]
NUM_HIDDEN = len(HIDDEN)          # 17 hidden blocks
PAD = 128                         # lane-dense padded feature width
BN_EPS = 1e-5


def _round16(n):
    return max(16, -(-n // 16) * 16)


# True contraction depth (sublane-rounded for bf16) for hidden layers 1..16.
_K_HIDDEN = tuple(_round16(HIDDEN[i - 1]) for i in range(1, NUM_HIDDEN))


# ----------------------------------------------------------------------------
# Fused Pallas kernel: entire network in one call
# ----------------------------------------------------------------------------
def _fused_mlp_kernel(x_ref, w0_ref, w_ref, b_ref, g_ref, beta_ref,
                      wout_ref, bout_ref, o_ref):
    """17 x [Linear -> Tanh -> BatchNorm1d(train)] + final Linear."""

    def tanh_bn(y, li):
        # Tanh then BatchNorm1d (training mode, biased variance), all in f32.
        y = jnp.tanh(y)
        mean = jnp.mean(y, axis=0, keepdims=True)
        var = jnp.maximum(
            jnp.mean(y * y, axis=0, keepdims=True) - mean * mean, 0.0)
        inv = jax.lax.rsqrt(var + BN_EPS)
        scale = g_ref[li] * inv                      # (1, PAD)
        shift = beta_ref[li] - mean * scale          # (1, PAD)
        return y * scale + shift                     # fused affine (one FMA)

    # ---- Layer 0: K = in_features (tiny) -> f32 VPU outer products ---------
    x = x_ref[...]                                   # (B, in_features) f32
    in_features = x.shape[1]
    y = x[:, 0:1] * w0_ref[0:1, :]
    for j in range(1, in_features):
        y = y + x[:, j:j + 1] * w0_ref[j:j + 1, :]
    h = tanh_bn(y + b_ref[0], 0)                     # (B, PAD) f32

    # ---- Hidden layers 1..16: bf16 MXU matmuls over the live K lanes only --
    for li in range(1, NUM_HIDDEN):
        k = _K_HIDDEN[li - 1]
        y = jnp.dot(h[:, :k].astype(jnp.bfloat16),
                    w_ref[li - 1, :k, :],
                    preferred_element_type=jnp.float32) + b_ref[li]
        h = tanh_bn(y, li)

    # ---- Final Linear (output_size == 1): VPU multiply + lane reduce -------
    # bout_ref is replicated across all lanes -> lane-dense (unmasked) store.
    o_ref[...] = (jnp.sum(h * wout_ref[...], axis=-1, keepdims=True)
                  + bout_ref[...])


def _full_spec(shape):
    # Whole-array block (block dims equal full array dims -> no (8,128) issue).
    return pl.BlockSpec(shape, lambda: tuple(0 for _ in shape))


@functools.partial(jax.jit, static_argnames=("output_size",))
def train_all_model_forward(x, packed, output_size=1):
    """Forward pass of train_all_model as a single fused Pallas kernel."""
    assert output_size == 1, "final layer is specialized to a single output"
    w0, w_s, b_s, g_s, beta_s, w_out, b_out = packed
    batch = x.shape[0]

    args = (x, w0, w_s, b_s, g_s, beta_s, w_out, b_out)
    out_pad = pl.pallas_call(
        _fused_mlp_kernel,
        out_shape=jax.ShapeDtypeStruct((batch, PAD), jnp.float32),
        in_specs=[_full_spec(a.shape) for a in args],
        out_specs=_full_spec((batch, PAD)),
    )(*args)

    return out_pad[:, :output_size]


# ----------------------------------------------------------------------------
# Parameter construction (deterministic, PyTorch-default-style init) + packing
# ----------------------------------------------------------------------------
def init_params(key, input_size=2, output_size=1):
    """Unpadded params; W stored as [in, out] so y = x @ W + b."""
    params = []
    c_in = input_size
    for c_out in HIDDEN:
        key, kw, kb = jax.random.split(key, 3)
        bound = 1.0 / jnp.sqrt(c_in)
        w = jax.random.uniform(kw, (c_in, c_out), jnp.float32, -bound, bound)
        b = jax.random.uniform(kb, (1, c_out), jnp.float32, -bound, bound)
        gamma = jnp.ones((1, c_out), jnp.float32)   # BatchNorm1d default init
        beta = jnp.zeros((1, c_out), jnp.float32)
        params.append((w, b, gamma, beta))
        c_in = c_out
    key, kw, kb = jax.random.split(key, 3)
    bound = 1.0 / jnp.sqrt(c_in)
    w_out = jax.random.uniform(kw, (c_in, output_size), jnp.float32, -bound, bound)
    b_out = jax.random.uniform(kb, (1, output_size), jnp.float32, -bound, bound)
    return params, (w_out, b_out)


def pack_params(params, final_params, input_size=2):
    """Zero-pad every hidden layer to 128 output lanes and stack.

    Dead lanes get W=0, b=0, gamma=0 (NOT 1), beta=0 so they stay exactly zero
    through every Linear/Tanh/BN stage and never contaminate live lanes.
    Layer-0 weights stay f32 (fed to the VPU); layers 1..16 are cast to bf16
    (fed to the MXU with f32 accumulation).
    """
    # Layer 0 weight, kept separate and unpadded along K.
    w0, _, _, _ = params[0]
    w0_p = jnp.zeros((input_size, PAD), jnp.float32).at[:, :w0.shape[1]].set(w0)

    w_s = jnp.zeros((NUM_HIDDEN - 1, PAD, PAD), jnp.float32)
    b_s = jnp.zeros((NUM_HIDDEN, 1, PAD), jnp.float32)
    g_s = jnp.zeros((NUM_HIDDEN, 1, PAD), jnp.float32)
    beta_s = jnp.zeros((NUM_HIDDEN, 1, PAD), jnp.float32)
    for i, (w, b, g, beta) in enumerate(params):
        c_in, c_out = w.shape
        if i > 0:
            w_s = w_s.at[i - 1, :c_in, :c_out].set(w)
        b_s = b_s.at[i, 0, :c_out].set(b[0])
        g_s = g_s.at[i, 0, :c_out].set(g[0])
        beta_s = beta_s.at[i, 0, :c_out].set(beta[0])
    w_s = w_s.astype(jnp.bfloat16)

    w_out, b_out = final_params                     # (c_in, 1), (1, 1)
    c_in, c_out = w_out.shape
    assert c_out == 1
    w_out_row = jnp.zeros((1, PAD), jnp.float32).at[0, :c_in].set(w_out[:, 0])
    b_out_row = jnp.full((1, PAD), b_out[0, 0], jnp.float32)  # lane-replicated
    return (w0_p, w_s, b_s, g_s, beta_s, w_out_row, b_out_row)


# ----------------------------------------------------------------------------
# Demo
# ----------------------------------------------------------------------------
if __name__ == "__main__":
    key = jax.random.PRNGKey(0)
    key, kx, kp = jax.random.split(key, 3)

    batch, input_size, output_size = 8, 2, 1
    x = jax.random.normal(kx, (batch, input_size), jnp.float32)

    params, final_params = init_params(kp, input_size, output_size)
    packed = pack_params(params, final_params, input_size=input_size)

    out = train_all_model_forward(x, packed, output_size=output_size)
    out = jax.block_until_ready(out)
    assert out.shape == (batch, output_size)
    assert bool(jnp.all(jnp.isfinite(out)))
    print("KERNEL_OK")
</pallas_src>

<mosaic_0001>
module attributes {stable_mosaic.version = 11 : i64} {
  func.func @_fused_mlp_kernel(%arg0: memref<8x2xf32, #tpu.memory_space<vmem>>, %arg1: memref<2x128xf32, #tpu.memory_space<vmem>>, %arg2: memref<16x128x128xbf16, #tpu.memory_space<vmem>>, %arg3: memref<17x1x128xf32, #tpu.memory_space<vmem>>, %arg4: memref<17x1x128xf32, #tpu.memory_space<vmem>>, %arg5: memref<17x1x128xf32, #tpu.memory_space<vmem>>, %arg6: memref<1x128xf32, #tpu.memory_space<vmem>>, %arg7: memref<1x128xf32, #tpu.memory_space<vmem>>, %arg8: memref<8x128xf32, #tpu.memory_space<vmem>>) attributes {dimension_semantics = [], scalar_prefetch = 0 : i64, scratch_operands = 0 : i64, tpu.core_type = #tpu.core_type<tc>} {
    %c0 = arith.constant 0 : index
    %c0_0 = arith.constant 0 : index
    %0 = vector.load %arg0[%c0, %c0_0] : memref<8x2xf32, #tpu.memory_space<vmem>>, vector<8x2xf32>
    %1 = vector.extract_strided_slice %0 {offsets = [0, 0], sizes = [8, 1], strides = [1, 1]} : vector<8x2xf32> to vector<8x1xf32>
    %c0_1 = arith.constant 0 : index
    %c0_2 = arith.constant 0 : index
    %2 = vector.load %arg1[%c0_1, %c0_2] : memref<2x128xf32, #tpu.memory_space<vmem>>, vector<1x128xf32>
    %3 = vector.broadcast %1 : vector<8x1xf32> to vector<8x128xf32>
    %4 = vector.broadcast %2 : vector<1x128xf32> to vector<8x128xf32>
    %5 = arith.mulf %3, %4 : vector<8x128xf32>
    %6 = vector.extract_strided_slice %0 {offsets = [0, 1], sizes = [8, 1], strides = [1, 1]} : vector<8x2xf32> to vector<8x1xf32>
    %c1 = arith.constant 1 : index
    %c0_3 = arith.constant 0 : index
    %7 = vector.load %arg1[%c1, %c0_3] : memref<2x128xf32, #tpu.memory_space<vmem>>, vector<1x128xf32>
    %8 = vector.broadcast %6 : vector<8x1xf32> to vector<8x128xf32>
    %9 = vector.broadcast %7 : vector<1x128xf32> to vector<8x128xf32>
    %10 = arith.mulf %8, %9 : vector<8x128xf32>
    %11 = arith.addf %5, %10 : vector<8x128xf32>
    %c0_4 = arith.constant 0 : index
    %c0_5 = arith.constant 0 : index
    %c0_6 = arith.constant 0 : index
    %12 = vector.load %arg3[%c0_4, %c0_5, %c0_6] : memref<17x1x128xf32, #tpu.memory_space<vmem>>, vector<1x1x128xf32>
    %13 = vector.shape_cast %12 : vector<1x1x128xf32> to vector<1x128xf32>
    %14 = vector.broadcast %13 : vector<1x128xf32> to vector<8x128xf32>
    %15 = arith.addf %11, %14 : vector<8x128xf32>
    %16 = math.tanh %15 : vector<8x128xf32>
    %cst = arith.constant dense<0.000000e+00> : vector<128xf32>
    %17 = vector.multi_reduction <add>, %16, %cst [0] : vector<8x128xf32> to vector<128xf32>
    %18 = vector.shape_cast %17 : vector<128xf32> to vector<1x128xf32>
    %cst_7 = arith.constant 8.000000e+00 : f32
    %19 = vector.broadcast %cst_7 : f32 to vector<1x128xf32>
    %20 = arith.divf %18, %19 : vector<1x128xf32>
    %21 = arith.mulf %16, %16 : vector<8x128xf32>
    %cst_8 = arith.constant dense<0.000000e+00> : vector<128xf32>
    %22 = vector.multi_reduction <add>, %21, %cst_8 [0] : vector<8x128xf32> to vector<128xf32>
    %23 = vector.shape_cast %22 : vector<128xf32> to vector<1x128xf32>
    %cst_9 = arith.constant 8.000000e+00 : f32
    %24 = vector.broadcast %cst_9 : f32 to vector<1x128xf32>
    %25 = arith.divf %23, %24 : vector<1x128xf32>
    %26 = arith.mulf %20, %20 : vector<1x128xf32>
    %27 = arith.subf %25, %26 : vector<1x128xf32>
    %cst_10 = arith.constant 0.000000e+00 : f32
    %28 = vector.broadcast %cst_10 : f32 to vector<1x128xf32>
    %29 = arith.maximumf %27, %28 : vector<1x128xf32>
    %cst_11 = arith.constant 9.99999974E-6 : f32
    %30 = vector.broadcast %cst_11 : f32 to vector<1x128xf32>
    %31 = arith.addf %29, %30 : vector<1x128xf32>
    %32 = math.rsqrt %31 : vector<1x128xf32>
    %c0_12 = arith.constant 0 : index
    %c0_13 = arith.constant 0 : index
    %c0_14 = arith.constant 0 : index
    %33 = vector.load %arg4[%c0_12, %c0_13, %c0_14] : memref<17x1x128xf32, #tpu.memory_space<vmem>>, vector<1x1x128xf32>
    %34 = vector.shape_cast %33 : vector<1x1x128xf32> to vector<1x128xf32>
    %35 = arith.mulf %34, %32 : vector<1x128xf32>
    %c0_15 = arith.constant 0 : index
    %c0_16 = arith.constant 0 : index
    %c0_17 = arith.constant 0 : index
    %36 = vector.load %arg5[%c0_15, %c0_16, %c0_17] : memref<17x1x128xf32, #tpu.memory_space<vmem>>, vector<1x1x128xf32>
    %37 = vector.shape_cast %36 : vector<1x1x128xf32> to vector<1x128xf32>
    %38 = arith.mulf %20, %35 : vector<1x128xf32>
    %39 = arith.subf %37, %38 : vector<1x128xf32>
    %40 = vector.broadcast %35 : vector<1x128xf32> to vector<8x128xf32>
    %41 = arith.mulf %16, %40 : vector<8x128xf32>
    %42 = vector.broadcast %39 : vector<1x128xf32> to vector<8x128xf32>
    %43 = arith.addf %41, %42 : vector<8x128xf32>
    %44 = vector.extract_strided_slice %43 {offsets = [0, 0], sizes = [8, 32], strides = [1, 1]} : vector<8x128xf32> to vector<8x32xf32>
    %45 = arith.truncf %44 : vector<8x32xf32> to vector<8x32xbf16>
    %c0_18 = arith.constant 0 : index
    %c0_19 = arith.constant 0 : index
    %c0_20 = arith.constant 0 : index
    %46 = vector.load %arg2[%c0_18, %c0_19, %c0_20] : memref<16x128x128xbf16, #tpu.memory_space<vmem>>, vector<1x32x128xbf16>
    %47 = vector.shape_cast %46 : vector<1x32x128xbf16> to vector<32x128xbf16>
    %cst_21 = arith.constant dense<0.000000e+00> : vector<8x128xf32>
    %48 = tpu.matmul %45, %47, %cst_21 {dimension_numbers = #tpu.dot_dimension_numbers<[1], [0], [0], [1], [0, 0, 1, 1], [], []>} : vector<8x32xbf16>, vector<32x128xbf16>, vector<8x128xf32> -> vector<8x128xf32>
    %c1_22 = arith.constant 1 : index
    %c0_23 = arith.constant 0 : index
    %c0_24 = arith.constant 0 : index
    %49 = vector.load %arg3[%c1_22, %c0_23, %c0_24] : memref<17x1x128xf32, #tpu.memory_space<vmem>>, vector<1x1x128xf32>
    %50 = vector.shape_cast %49 : vector<1x1x128xf32> to vector<1x128xf32>
    %51 = vector.broadcast %50 : vector<1x128xf32> to vector<8x128xf32>
    %52 = arith.addf %48, %51 : vector<8x128xf32>
    %53 = math.tanh %52 : vector<8x128xf32>
    %cst_25 = arith.constant dense<0.000000e+00> : vector<128xf32>
    %54 = vector.multi_reduction <add>, %53, %cst_25 [0] : vector<8x128xf32> to vector<128xf32>
    %55 = vector.shape_cast %54 : vector<128xf32> to vector<1x128xf32>
    %cst_26 = arith.constant 8.000000e+00 : f32
    %56 = vector.broadcast %cst_26 : f32 to vector<1x128xf32>
    %57 = arith.divf %55, %56 : vector<1x128xf32>
    %58 = arith.mulf %53, %53 : vector<8x128xf32>
    %cst_27 = arith.constant dense<0.000000e+00> : vector<128xf32>
    %59 = vector.multi_reduction <add>, %58, %cst_27 [0] : vector<8x128xf32> to vector<128xf32>
    %60 = vector.shape_cast %59 : vector<128xf32> to vector<1x128xf32>
    %cst_28 = arith.constant 8.000000e+00 : f32
    %61 = vector.broadcast %cst_28 : f32 to vector<1x128xf32>
    %62 = arith.divf %60, %61 : vector<1x128xf32>
    %63 = arith.mulf %57, %57 : vector<1x128xf32>
    %64 = arith.subf %62, %63 : vector<1x128xf32>
    %cst_29 = arith.constant 0.000000e+00 : f32
    %65 = vector.broadcast %cst_29 : f32 to vector<1x128xf32>
    %66 = arith.maximumf %64, %65 : vector<1x128xf32>
    %cst_30 = arith.constant 9.99999974E-6 : f32
    %67 = vector.broadcast %cst_30 : f32 to vector<1x128xf32>
    %68 = arith.addf %66, %67 : vector<1x128xf32>
    %69 = math.rsqrt %68 : vector<1x128xf32>
    %c1_31 = arith.constant 1 : index
    %c0_32 = arith.constant 0 : index
    %c0_33 = arith.constant 0 : index
    %70 = vector.load %arg4[%c1_31, %c0_32, %c0_33] : memref<17x1x128xf32, #tpu.memory_space<vmem>>, vector<1x1x128xf32>
    %71 = vector.shape_cast %70 : vector<1x1x128xf32> to vector<1x128xf32>
    %72 = arith.mulf %71, %69 : vector<1x128xf32>
    %c1_34 = arith.constant 1 : index
    %c0_35 = arith.constant 0 : index
    %c0_36 = arith.constant 0 : index
    %73 = vector.load %arg5[%c1_34, %c0_35, %c0_36] : memref<17x1x128xf32, #tpu.memory_space<vmem>>, vector<1x1x128xf32>
    %74 = vector.shape_cast %73 : vector<1x1x128xf32> to vector<1x128xf32>
    %75 = arith.mulf %57, %72 : vector<1x128xf32>
    %76 = arith.subf %74, %75 : vector<1x128xf32>
    %77 = vector.broadcast %72 : vector<1x128xf32> to vector<8x128xf32>
    %78 = arith.mulf %53, %77 : vector<8x128xf32>
    %79 = vector.broadcast %76 : vector<1x128xf32> to vector<8x128xf32>
    %80 = arith.addf %78, %79 : vector<8x128xf32>
    %81 = vector.extract_strided_slice %80 {offsets = [0, 0], sizes = [8, 64], strides = [1, 1]} : vector<8x128xf32> to vector<8x64xf32>
    %82 = arith.truncf %81 : vector<8x64xf32> to vector<8x64xbf16>
    %c1_37 = arith.constant 1 : index
    %c0_38 = arith.constant 0 : index
    %c0_39 = arith.constant 0 : index
    %83 = vector.load %arg2[%c1_37, %c0_38, %c0_39] : memref<16x128x128xbf16, #tpu.memory_space<vmem>>, vector<1x64x128xbf16>
    %84 = vector.shape_cast %83 : vector<1x64x128xbf16> to vector<64x128xbf16>
    %cst_40 = arith.constant dense<0.000000e+00> : vector<8x128xf32>
    %85 = tpu.matmul %82, %84, %cst_40 {dimension_numbers = #tpu.dot_dimension_numbers<[1], [0], [0], [1], [0, 0, 1, 1], [], []>} : vector<8x64xbf16>, vector<64x128xbf16>, vector<8x128xf32> -> vector<8x128xf32>
    %c2 = arith.constant 2 : index
    %c0_41 = arith.constant 0 : index
    %c0_42 = arith.constant 0 : index
    %86 = vector.load %arg3[%c2, %c0_41, %c0_42] : memref<17x1x128xf32, #tpu.memory_space<vmem>>, vector<1x1x128xf32>
    %87 = vector.shape_cast %86 : vector<1x1x128xf32> to vector<1x128xf32>
    %88 = vector.broadcast %87 : vector<1x128xf32> to vector<8x128xf32>
    %89 = arith.addf %85, %88 : vector<8x128xf32>
    %90 = math.tanh %89 : vector<8x128xf32>
    %cst_43 = arith.constant dense<0.000000e+00> : vector<128xf32>
    %91 = vector.multi_reduction <add>, %90, %cst_43 [0] : vector<8x128xf32> to vector<128xf32>
    %92 = vector.shape_cast %91 : vector<128xf32> to vector<1x128xf32>
    %cst_44 = arith.constant 8.000000e+00 : f32
    %93 = vector.broadcast %cst_44 : f32 to vector<1x128xf32>
    %94 = arith.divf %92, %93 : vector<1x128xf32>
    %95 = arith.mulf %90, %90 : vector<8x128xf32>
    %cst_45 = arith.constant dense<0.000000e+00> : vector<128xf32>
    %96 = vector.multi_reduction <add>, %95, %cst_45 [0] : vector<8x128xf32> to vector<128xf32>
    %97 = vector.shape_cast %96 : vector<128xf32> to vector<1x128xf32>
    %cst_46 = arith.constant 8.000000e+00 : f32
    %98 = vector.broadcast %cst_46 : f32 to vector<1x128xf32>
    %99 = arith.divf %97, %98 : vector<1x128xf32>
    %100 = arith.mulf %94, %94 : vector<1x128xf32>
    %101 = arith.subf %99, %100 : vector<1x128xf32>
    %cst_47 = arith.constant 0.000000e+00 : f32
    %102 = vector.broadcast %cst_47 : f32 to vector<1x128xf32>
    %103 = arith.maximumf %101, %102 : vector<1x128xf32>
    %cst_48 = arith.constant 9.99999974E-6 : f32
    %104 = vector.broadcast %cst_48 : f32 to vector<1x128xf32>
    %105 = arith.addf %103, %104 : vector<1x128xf32>
    %106 = math.rsqrt %105 : vector<1x128xf32>
    %c2_49 = arith.constant 2 : index
    %c0_50 = arith.constant 0 : index
    %c0_51 = arith.constant 0 : index
    %107 = vector.load %arg4[%c2_49, %c0_50, %c0_51] : memref<17x1x128xf32, #tpu.memory_space<vmem>>, vector<1x1x128xf32>
    %108 = vector.shape_cast %107 : vector<1x1x128xf32> to vector<1x128xf32>
    %109 = arith.mulf %108, %106 : vector<1x128xf32>
    %c2_52 = arith.constant 2 : index
    %c0_53 = arith.constant 0 : index
    %c0_54 = arith.constant 0 : index
    %110 = vector.load %arg5[%c2_52, %c0_53, %c0_54] : memref<17x1x128xf32, #tpu.memory_space<vmem>>, vector<1x1x128xf32>
    %111 = vector.shape_cast %110 : vector<1x1x128xf32> to vector<1x128xf32>
    %112 = arith.mulf %94, %109 : vector<1x128xf32>
    %113 = arith.subf %111, %112 : vector<1x128xf32>
    %114 = vector.broadcast %109 : vector<1x128xf32> to vector<8x128xf32>
    %115 = arith.mulf %90, %114 : vector<8x128xf32>
    %116 = vector.broadcast %113 : vector<1x128xf32> to vector<8x128xf32>
    %117 = arith.addf %115, %116 : vector<8x128xf32>
    %118 = arith.truncf %117 : vector<8x128xf32> to vector<8x128xbf16>
    %c2_55 = arith.constant 2 : index
    %c0_56 = arith.constant 0 : index
    %c0_57 = arith.constant 0 : index
    %119 = vector.load %arg2[%c2_55, %c0_56, %c0_57] : memref<16x128x128xbf16, #tpu.memory_space<vmem>>, vector<1x128x128xbf16>
    %120 = vector.shape_cast %119 : vector<1x128x128xbf16> to vector<128x128xbf16>
    %cst_58 = arith.constant dense<0.000000e+00> : vector<8x128xf32>
    %121 = tpu.matmul %118, %120, %cst_58 {dimension_numbers = #tpu.dot_dimension_numbers<[1], [0], [0], [1], [0, 0, 1, 1], [], []>} : vector<8x128xbf16>, vector<128x128xbf16>, vector<8x128xf32> -> vector<8x128xf32>
    %c3 = arith.constant 3 : index
    %c0_59 = arith.constant 0 : index
    %c0_60 = arith.constant 0 : index
    %122 = vector.load %arg3[%c3, %c0_59, %c0_60] : memref<17x1x128xf32, #tpu.memory_space<vmem>>, vector<1x1x128xf32>
    %123 = vector.shape_cast %122 : vector<1x1x128xf32> to vector<1x128xf32>
    %124 = vector.broadcast %123 : vector<1x128xf32> to vector<8x128xf32>
    %125 = arith.addf %121, %124 : vector<8x128xf32>
    %126 = math.tanh %125 : vector<8x128xf32>
    %cst_61 = arith.constant dense<0.000000e+00> : vector<128xf32>
    %127 = vector.multi_reduction <add>, %126, %cst_61 [0] : vector<8x128xf32> to vector<128xf32>
    %128 = vector.shape_cast %127 : vector<128xf32> to vector<1x128xf32>
    %cst_62 = arith.constant 8.000000e+00 : f32
    %129 = vector.broadcast %cst_62 : f32 to vector<1x128xf32>
    %130 = arith.divf %128, %129 : vector<1x128xf32>
    %131 = arith.mulf %126, %126 : vector<8x128xf32>
    %cst_63 = arith.constant dense<0.000000e+00> : vector<128xf32>
    %132 = vector.multi_reduction <add>, %131, %cst_63 [0] : vector<8x128xf32> to vector<128xf32>
    %133 = vector.shape_cast %132 : vector<128xf32> to vector<1x128xf32>
    %cst_64 = arith.constant 8.000000e+00 : f32
    %134 = vector.broadcast %cst_64 : f32 to vector<1x128xf32>
    %135 = arith.divf %133, %134 : vector<1x128xf32>
    %136 = arith.mulf %130, %130 : vector<1x128xf32>
    %137 = arith.subf %135, %136 : vector<1x128xf32>
    %cst_65 = arith.constant 0.000000e+00 : f32
    %138 = vector.broadcast %cst_65 : f32 to vector<1x128xf32>
    %139 = arith.maximumf %137, %138 : vector<1x128xf32>
    %cst_66 = arith.constant 9.99999974E-6 : f32
    %140 = vector.broadcast %cst_66 : f32 to vector<1x128xf32>
    %141 = arith.addf %139, %140 : vector<1x128xf32>
    %142 = math.rsqrt %141 : vector<1x128xf32>
    %c3_67 = arith.constant 3 : index
    %c0_68 = arith.constant 0 : index
    %c0_69 = arith.constant 0 : index
    %143 = vector.load %arg4[%c3_67, %c0_68, %c0_69] : memref<17x1x128xf32, #tpu.memory_space<vmem>>, vector<1x1x128xf32>
    %144 = vector.shape_cast %143 : vector<1x1x128xf32> to vector<1x128xf32>
    %145 = arith.mulf %144, %142 : vector<1x128xf32>
    %c3_70 = arith.constant 3 : index
    %c0_71 = arith.constant 0 : index
    %c0_72 = arith.constant 0 : index
    %146 = vector.load %arg5[%c3_70, %c0_71, %c0_72] : memref<17x1x128xf32, #tpu.memory_space<vmem>>, vector<1x1x128xf32>
    %147 = vector.shape_cast %146 : vector<1x1x128xf32> to vector<1x128xf32>
    %148 = arith.mulf %130, %145 : vector<1x128xf32>
    %149 = arith.subf %147, %148 : vector<1x128xf32>
    %150 = vector.broadcast %145 : vector<1x128xf32> to vector<8x128xf32>
    %151 = arith.mulf %126, %150 : vector<8x128xf32>
    %152 = vector.broadcast %149 : vector<1x128xf32> to vector<8x128xf32>
    %153 = arith.addf %151, %152 : vector<8x128xf32>
    %154 = vector.extract_strided_slice %153 {offsets = [0, 0], sizes = [8, 64], strides = [1, 1]} : vector<8x128xf32> to vector<8x64xf32>
    %155 = arith.truncf %154 : vector<8x64xf32> to vector<8x64xbf16>
    %c3_73 = arith.constant 3 : index
    %c0_74 = arith.constant 0 : index
    %c0_75 = arith.constant 0 : index
    %156 = vector.load %arg2[%c3_73, %c0_74, %c0_75] : memref<16x128x128xbf16, #tpu.memory_space<vmem>>, vector<1x64x128xbf16>
    %157 = vector.shape_cast %156 : vector<1x64x128xbf16> to vector<64x128xbf16>
    %cst_76 = arith.constant dense<0.000000e+00> : vector<8x128xf32>
    %158 = tpu.matmul %155, %157, %cst_76 {dimension_numbers = #tpu.dot_dimension_numbers<[1], [0], [0], [1], [0, 0, 1, 1], [], []>} : vector<8x64xbf16>, vector<64x128xbf16>, vector<8x128xf32> -> vector<8x128xf32>
    %c4 = arith.constant 4 : index
    %c0_77 = arith.constant 0 : index
    %c0_78 = arith.constant 0 : index
    %159 = vector.load %arg3[%c4, %c0_77, %c0_78] : memref<17x1x128xf32, #tpu.memory_space<vmem>>, vector<1x1x128xf32>
    %160 = vector.shape_cast %159 : vector<1x1x128xf32> to vector<1x128xf32>
    %161 = vector.broadcast %160 : vector<1x128xf32> to vector<8x128xf32>
    %162 = arith.addf %158, %161 : vector<8x128xf32>
    %163 = math.tanh %162 : vector<8x128xf32>
    %cst_79 = arith.constant dense<0.000000e+00> : vector<128xf32>
    %164 = vector.multi_reduction <add>, %163, %cst_79 [0] : vector<8x128xf32> to vector<128xf32>
    %165 = vector.shape_cast %164 : vector<128xf32> to vector<1x128xf32>
    %cst_80 = arith.constant 8.000000e+00 : f32
    %166 = vector.broadcast %cst_80 : f32 to vector<1x128xf32>
    %167 = arith.divf %165, %166 : vector<1x128xf32>
    %168 = arith.mulf %163, %163 : vector<8x128xf32>
    %cst_81 = arith.constant dense<0.000000e+00> : vector<128xf32>
    %169 = vector.multi_reduction <add>, %168, %cst_81 [0] : vector<8x128xf32> to vector<128xf32>
    %170 = vector.shape_cast %169 : vector<128xf32> to vector<1x128xf32>
    %cst_82 = arith.constant 8.000000e+00 : f32
    %171 = vector.broadcast %cst_82 : f32 to vector<1x128xf32>
    %172 = arith.divf %170, %171 : vector<1x128xf32>
    %173 = arith.mulf %167, %167 : vector<1x128xf32>
    %174 = arith.subf %172, %173 : vector<1x128xf32>
    %cst_83 = arith.constant 0.000000e+00 : f32
    %175 = vector.broadcast %cst_83 : f32 to vector<1x128xf32>
    %176 = arith.maximumf %174, %175 : vector<1x128xf32>
    %cst_84 = arith.constant 9.99999974E-6 : f32
    %177 = vector.broadcast %cst_84 : f32 to vector<1x128xf32>
    %178 = arith.addf %176, %177 : vector<1x128xf32>
    %179 = math.rsqrt %178 : vector<1x128xf32>
    %c4_85 = arith.constant 4 : index
    %c0_86 = arith.constant 0 : index
    %c0_87 = arith.constant 0 : index
    %180 = vector.load %arg4[%c4_85, %c0_86, %c0_87] : memref<17x1x128xf32, #tpu.memory_space<vmem>>, vector<1x1x128xf32>
    %181 = vector.shape_cast %180 : vector<1x1x128xf32> to vector<1x128xf32>
    %182 = arith.mulf %181, %179 : vector<1x128xf32>
    %c4_88 = arith.constant 4 : index
    %c0_89 = arith.constant 0 : index
    %c0_90 = arith.constant 0 : index
    %183 = vector.load %arg5[%c4_88, %c0_89, %c0_90] : memref<17x1x128xf32, #tpu.memory_space<vmem>>, vector<1x1x128xf32>
    %184 = vector.shape_cast %183 : vector<1x1x128xf32> to vector<1x128xf32>
    %185 = arith.mulf %167, %182 : vector<1x128xf32>
    %186 = arith.subf %184, %185 : vector<1x128xf32>
    %187 = vector.broadcast %182 : vector<1x128xf32> to vector<8x128xf32>
    %188 = arith.mulf %163, %187 : vector<8x128xf32>
    %189 = vector.broadcast %186 : vector<1x128xf32> to vector<8x128xf32>
    %190 = arith.addf %188, %189 : vector<8x128xf32>
    %191 = vector.extract_strided_slice %190 {offsets = [0, 0], sizes = [8, 32], strides = [1, 1]} : vector<8x128xf32> to vector<8x32xf32>
    %192 = arith.truncf %191 : vector<8x32xf32> to vector<8x32xbf16>
    %c4_91 = arith.constant 4 : index
    %c0_92 = arith.constant 0 : index
    %c0_93 = arith.constant 0 : index
    %193 = vector.load %arg2[%c4_91, %c0_92, %c0_93] : memref<16x128x128xbf16, #tpu.memory_space<vmem>>, vector<1x32x128xbf16>
    %194 = vector.shape_cast %193 : vector<1x32x128xbf16> to vector<32x128xbf16>
    %cst_94 = arith.constant dense<0.000000e+00> : vector<8x128xf32>
    %195 = tpu.matmul %192, %194, %cst_94 {dimension_numbers = #tpu.dot_dimension_numbers<[1], [0], [0], [1], [0, 0, 1, 1], [], []>} : vector<8x32xbf16>, vector<32x128xbf16>, vector<8x128xf32> -> vector<8x128xf32>
    %c5 = arith.constant 5 : index
    %c0_95 = arith.constant 0 : index
    %c0_96 = arith.constant 0 : index
    %196 = vector.load %arg3[%c5, %c0_95, %c0_96] : memref<17x1x128xf32, #tpu.memory_space<vmem>>, vector<1x1x128xf32>
    %197 = vector.shape_cast %196 : vector<1x1x128xf32> to vector<1x128xf32>
    %198 = vector.broadcast %197 : vector<1x128xf32> to vector<8x128xf32>
    %199 = arith.addf %195, %198 : vector<8x128xf32>
    %200 = math.tanh %199 : vector<8x128xf32>
    %cst_97 = arith.constant dense<0.000000e+00> : vector<128xf32>
    %201 = vector.multi_reduction <add>, %200, %cst_97 [0] : vector<8x128xf32> to vector<128xf32>
    %202 = vector.shape_cast %201 : vector<128xf32> to vector<1x128xf32>
    %cst_98 = arith.constant 8.000000e+00 : f32
    %203 = vector.broadcast %cst_98 : f32 to vector<1x128xf32>
    %204 = arith.divf %202, %203 : vector<1x128xf32>
    %205 = arith.mulf %200, %200 : vector<8x128xf32>
    %cst_99 = arith.constant dense<0.000000e+00> : vector<128xf32>
    %206 = vector.multi_reduction <add>, %205, %cst_99 [0] : vector<8x128xf32> to vector<128xf32>
    %207 = vector.shape_cast %206 : vector<128xf32> to vector<1x128xf32>
    %cst_100 = arith.constant 8.000000e+00 : f32
    %208 = vector.broadcast %cst_100 : f32 to vector<1x128xf32>
    %209 = arith.divf %207, %208 : vector<1x128xf32>
    %210 = arith.mulf %204, %204 : vector<1x128xf32>
    %211 = arith.subf %209, %210 : vector<1x128xf32>
    %cst_101 = arith.constant 0.000000e+00 : f32
    %212 = vector.broadcast %cst_101 : f32 to vector<1x128xf32>
    %213 = arith.maximumf %211, %212 : vector<1x128xf32>
    %cst_102 = arith.constant 9.99999974E-6 : f32
    %214 = vector.broadcast %cst_102 : f32 to vector<1x128xf32>
    %215 = arith.addf %213, %214 : vector<1x128xf32>
    %216 = math.rsqrt %215 : vector<1x128xf32>
    %c5_103 = arith.constant 5 : index
    %c0_104 = arith.constant 0 : index
    %c0_105 = arith.constant 0 : index
    %217 = vector.load %arg4[%c5_103, %c0_104, %c0_105] : memref<17x1x128xf32, #tpu.memory_space<vmem>>, vector<1x1x128xf32>
    %218 = vector.shape_cast %217 : vector<1x1x128xf32> to vector<1x128xf32>
    %219 = arith.mulf %218, %216 : vector<1x128xf32>
    %c5_106 = arith.constant 5 : index
    %c0_107 = arith.constant 0 : index
    %c0_108 = arith.constant 0 : index
    %220 = vector.load %arg5[%c5_106, %c0_107, %c0_108] : memref<17x1x128xf32, #tpu.memory_space<vmem>>, vector<1x1x128xf32>
    %221 = vector.shape_cast %220 : vector<1x1x128xf32> to vector<1x128xf32>
    %222 = arith.mulf %204, %219 : vector<1x128xf32>
    %223 = arith.subf %221, %222 : vector<1x128xf32>
    %224 = vector.broadcast %219 : vector<1x128xf32> to vector<8x128xf32>
    %225 = arith.mulf %200, %224 : vector<8x128xf32>
    %226 = vector.broadcast %223 : vector<1x128xf32> to vector<8x128xf32>
    %227 = arith.addf %225, %226 : vector<8x128xf32>
    %228 = vector.extract_strided_slice %227 {offsets = [0, 0], sizes = [8, 64], strides = [1, 1]} : vector<8x128xf32> to vector<8x64xf32>
    %229 = arith.truncf %228 : vector<8x64xf32> to vector<8x64xbf16>
    %c5_109 = arith.constant 5 : index
    %c0_110 = arith.constant 0 : index
    %c0_111 = arith.constant 0 : index
    %230 = vector.load %arg2[%c5_109, %c0_110, %c0_111] : memref<16x128x128xbf16, #tpu.memory_space<vmem>>, vector<1x64x128xbf16>
    %231 = vector.shape_cast %230 : vector<1x64x128xbf16> to vector<64x128xbf16>
    %cst_112 = arith.constant dense<0.000000e+00> : vector<8x128xf32>
    %232 = tpu.matmul %229, %231, %cst_112 {dimension_numbers = #tpu.dot_dimension_numbers<[1], [0], [0], [1], [0, 0, 1, 1], [], []>} : vector<8x64xbf16>, vector<64x128xbf16>, vector<8x128xf32> -> vector<8x128xf32>
    %c6 = arith.constant 6 : index
    %c0_113 = arith.constant 0 : index
    %c0_114 = arith.constant 0 : index
    %233 = vector.load %arg3[%c6, %c0_113, %c0_114] : memref<17x1x128xf32, #tpu.memory_space<vmem>>, vector<1x1x128xf32>
    %234 = vector.shape_cast %233 : vector<1x1x128xf32> to vector<1x128xf32>
    %235 = vector.broadcast %234 : vector<1x128xf32> to vector<8x128xf32>
    %236 = arith.addf %232, %235 : vector<8x128xf32>
    %237 = math.tanh %236 : vector<8x128xf32>
    %cst_115 = arith.constant dense<0.000000e+00> : vector<128xf32>
    %238 = vector.multi_reduction <add>, %237, %cst_115 [0] : vector<8x128xf32> to vector<128xf32>
    %239 = vector.shape_cast %238 : vector<128xf32> to vector<1x128xf32>
    %cst_116 = arith.constant 8.000000e+00 : f32
    %240 = vector.broadcast %cst_116 : f32 to vector<1x128xf32>
    %241 = arith.divf %239, %240 : vector<1x128xf32>
    %242 = arith.mulf %237, %237 : vector<8x128xf32>
    %cst_117 = arith.constant dense<0.000000e+00> : vector<128xf32>
    %243 = vector.multi_reduction <add>, %242, %cst_117 [0] : vector<8x128xf32> to vector<128xf32>
    %244 = vector.shape_cast %243 : vector<128xf32> to vector<1x128xf32>
    %cst_118 = arith.constant 8.000000e+00 : f32
    %245 = vector.broadcast %cst_118 : f32 to vector<1x128xf32>
    %246 = arith.divf %244, %245 : vector<1x128xf32>
    %247 = arith.mulf %241, %241 : vector<1x128xf32>
    %248 = arith.subf %246, %247 : vector<1x128xf32>
    %cst_119 = arith.constant 0.000000e+00 : f32
    %249 = vector.broadcast %cst_119 : f32 to vector<1x128xf32>
    %250 = arith.maximumf %248, %249 : vector<1x128xf32>
    %cst_120 = arith.constant 9.99999974E-6 : f32
    %251 = vector.broadcast %cst_120 : f32 to vector<1x128xf32>
    %252 = arith.addf %250, %251 : vector<1x128xf32>
    %253 = math.rsqrt %252 : vector<1x128xf32>
    %c6_121 = arith.constant 6 : index
    %c0_122 = arith.constant 0 : index
    %c0_123 = arith.constant 0 : index
    %254 = vector.load %arg4[%c6_121, %c0_122, %c0_123] : memref<17x1x128xf32, #tpu.memory_space<vmem>>, vector<1x1x128xf32>
    %255 = vector.shape_cast %254 : vector<1x1x128xf32> to vector<1x128xf32>
    %256 = arith.mulf %255, %253 : vector<1x128xf32>
    %c6_124 = arith.constant 6 : index
    %c0_125 = arith.constant 0 : index
    %c0_126 = arith.constant 0 : index
    %257 = vector.load %arg5[%c6_124, %c0_125, %c0_126] : memref<17x1x128xf32, #tpu.memory_space<vmem>>, vector<1x1x128xf32>
    %258 = vector.shape_cast %257 : vector<1x1x128xf32> to vector<1x128xf32>
    %259 = arith.mulf %241, %256 : vector<1x128xf32>
    %260 = arith.subf %258, %259 : vector<1x128xf32>
    %261 = vector.broadcast %256 : vector<1x128xf32> to vector<8x128xf32>
    %262 = arith.mulf %237, %261 : vector<8x128xf32>
    %263 = vector.broadcast %260 : vector<1x128xf32> to vector<8x128xf32>
    %264 = arith.addf %262, %263 : vector<8x128xf32>
    %265 = arith.truncf %264 : vector<8x128xf32> to vector<8x128xbf16>
    %c6_127 = arith.constant 6 : index
    %c0_128 = arith.constant 0 : index
    %c0_129 = arith.constant 0 : index
    %266 = vector.load %arg2[%c6_127, %c0_128, %c0_129] : memref<16x128x128xbf16, #tpu.memory_space<vmem>>, vector<1x128x128xbf16>
    %267 = vector.shape_cast %266 : vector<1x128x128xbf16> to vector<128x128xbf16>
    %cst_130 = arith.constant dense<0.000000e+00> : vector<8x128xf32>
    %268 = tpu.matmul %265, %267, %cst_130 {dimension_numbers = #tpu.dot_dimension_numbers<[1], [0], [0], [1], [0, 0, 1, 1], [], []>} : vector<8x128xbf16>, vector<128x128xbf16>, vector<8x128xf32> -> vector<8x128xf32>
    %c7 = arith.constant 7 : index
    %c0_131 = arith.constant 0 : index
    %c0_132 = arith.constant 0 : index
    %269 = vector.load %arg3[%c7, %c0_131, %c0_132] : memref<17x1x128xf32, #tpu.memory_space<vmem>>, vector<1x1x128xf32>
    %270 = vector.shape_cast %269 : vector<1x1x128xf32> to vector<1x128xf32>
    %271 = vector.broadcast %270 : vector<1x128xf32> to vector<8x128xf32>
    %272 = arith.addf %268, %271 : vector<8x128xf32>
    %273 = math.tanh %272 : vector<8x128xf32>
    %cst_133 = arith.constant dense<0.000000e+00> : vector<128xf32>
    %274 = vector.multi_reduction <add>, %273, %cst_133 [0] : vector<8x128xf32> to vector<128xf32>
    %275 = vector.shape_cast %274 : vector<128xf32> to vector<1x128xf32>
    %cst_134 = arith.constant 8.000000e+00 : f32
    %276 = vector.broadcast %cst_134 : f32 to vector<1x128xf32>
    %277 = arith.divf %275, %276 : vector<1x128xf32>
    %278 = arith.mulf %273, %273 : vector<8x128xf32>
    %cst_135 = arith.constant dense<0.000000e+00> : vector<128xf32>
    %279 = vector.multi_reduction <add>, %278, %cst_135 [0] : vector<8x128xf32> to vector<128xf32>
    %280 = vector.shape_cast %279 : vector<128xf32> to vector<1x128xf32>
    %cst_136 = arith.constant 8.000000e+00 : f32
    %281 = vector.broadcast %cst_136 : f32 to vector<1x128xf32>
    %282 = arith.divf %280, %281 : vector<1x128xf32>
    %283 = arith.mulf %277, %277 : vector<1x128xf32>
    %284 = arith.subf %282, %283 : vector<1x128xf32>
    %cst_137 = arith.constant 0.000000e+00 : f32
    %285 = vector.broadcast %cst_137 : f32 to vector<1x128xf32>
    %286 = arith.maximumf %284, %285 : vector<1x128xf32>
    %cst_138 = arith.constant 9.99999974E-6 : f32
    %287 = vector.broadcast %cst_138 : f32 to vector<1x128xf32>
    %288 = arith.addf %286, %287 : vector<1x128xf32>
    %289 = math.rsqrt %288 : vector<1x128xf32>
    %c7_139 = arith.constant 7 : index
    %c0_140 = arith.constant 0 : index
    %c0_141 = arith.constant 0 : index
    %290 = vector.load %arg4[%c7_139, %c0_140, %c0_141] : memref<17x1x128xf32, #tpu.memory_space<vmem>>, vector<1x1x128xf32>
    %291 = vector.shape_cast %290 : vector<1x1x128xf32> to vector<1x128xf32>
    %292 = arith.mulf %291, %289 : vector<1x128xf32>
    %c7_142 = arith.constant 7 : index
    %c0_143 = arith.constant 0 : index
    %c0_144 = arith.constant 0 : index
    %293 = vector.load %arg5[%c7_142, %c0_143, %c0_144] : memref<17x1x128xf32, #tpu.memory_space<vmem>>, vector<1x1x128xf32>
    %294 = vector.shape_cast %293 : vector<1x1x128xf32> to vector<1x128xf32>
    %295 = arith.mulf %277, %292 : vector<1x128xf32>
    %296 = arith.subf %294, %295 : vector<1x128xf32>
    %297 = vector.broadcast %292 : vector<1x128xf32> to vector<8x128xf32>
    %298 = arith.mulf %273, %297 : vector<8x128xf32>
    %299 = vector.broadcast %296 : vector<1x128xf32> to vector<8x128xf32>
    %300 = arith.addf %298, %299 : vector<8x128xf32>
    %301 = vector.extract_strided_slice %300 {offsets = [0, 0], sizes = [8, 64], strides = [1, 1]} : vector<8x128xf32> to vector<8x64xf32>
    %302 = arith.truncf %301 : vector<8x64xf32> to vector<8x64xbf16>
    %c7_145 = arith.constant 7 : index
    %c0_146 = arith.constant 0 : index
    %c0_147 = arith.constant 0 : index
    %303 = vector.load %arg2[%c7_145, %c0_146, %c0_147] : memref<16x128x128xbf16, #tpu.memory_space<vmem>>, vector<1x64x128xbf16>
    %304 = vector.shape_cast %303 : vector<1x64x128xbf16> to vector<64x128xbf16>
    %cst_148 = arith.constant dense<0.000000e+00> : vector<8x128xf32>
    %305 = tpu.matmul %302, %304, %cst_148 {dimension_numbers = #tpu.dot_dimension_numbers<[1], [0], [0], [1], [0, 0, 1, 1], [], []>} : vector<8x64xbf16>, vector<64x128xbf16>, vector<8x128xf32> -> vector<8x128xf32>
    %c8 = arith.constant 8 : index
    %c0_149 = arith.constant 0 : index
    %c0_150 = arith.constant 0 : index
    %306 = vector.load %arg3[%c8, %c0_149, %c0_150] : memref<17x1x128xf32, #tpu.memory_space<vmem>>, vector<1x1x128xf32>
    %307 = vector.shape_cast %306 : vector<1x1x128xf32> to vector<1x128xf32>
    %308 = vector.broadcast %307 : vector<1x128xf32> to vector<8x128xf32>
    %309 = arith.addf %305, %308 : vector<8x128xf32>
    %310 = math.tanh %309 : vector<8x128xf32>
    %cst_151 = arith.constant dense<0.000000e+00> : vector<128xf32>
    %311 = vector.multi_reduction <add>, %310, %cst_151 [0] : vector<8x128xf32> to vector<128xf32>
    %312 = vector.shape_cast %311 : vector<128xf32> to vector<1x128xf32>
    %cst_152 = arith.constant 8.000000e+00 : f32
    %313 = vector.broadcast %cst_152 : f32 to vector<1x128xf32>
    %314 = arith.divf %312, %313 : vector<1x128xf32>
    %315 = arith.mulf %310, %310 : vector<8x128xf32>
    %cst_153 = arith.constant dense<0.000000e+00> : vector<128xf32>
    %316 = vector.multi_reduction <add>, %315, %cst_153 [0] : vector<8x128xf32> to vector<128xf32>
    %317 = vector.shape_cast %316 : vector<128xf32> to vector<1x128xf32>
    %cst_154 = arith.constant 8.000000e+00 : f32
    %318 = vector.broadcast %cst_154 : f32 to vector<1x128xf32>
    %319 = arith.divf %317, %318 : vector<1x128xf32>
    %320 = arith.mulf %314, %314 : vector<1x128xf32>
    %321 = arith.subf %319, %320 : vector<1x128xf32>
    %cst_155 = arith.constant 0.000000e+00 : f32
    %322 = vector.broadcast %cst_155 : f32 to vector<1x128xf32>
    %323 = arith.maximumf %321, %322 : vector<1x128xf32>
    %cst_156 = arith.constant 9.99999974E-6 : f32
    %324 = vector.broadcast %cst_156 : f32 to vector<1x128xf32>
    %325 = arith.addf %323, %324 : vector<1x128xf32>
    %326 = math.rsqrt %325 : vector<1x128xf32>
    %c8_157 = arith.constant 8 : index
    %c0_158 = arith.constant 0 : index
    %c0_159 = arith.constant 0 : index
    %327 = vector.load %arg4[%c8_157, %c0_158, %c0_159] : memref<17x1x128xf32, #tpu.memory_space<vmem>>, vector<1x1x128xf32>
    %328 = vector.shape_cast %327 : vector<1x1x128xf32> to vector<1x128xf32>
    %329 = arith.mulf %328, %326 : vector<1x128xf32>
    %c8_160 = arith.constant 8 : index
    %c0_161 = arith.constant 0 : index
    %c0_162 = arith.constant 0 : index
    %330 = vector.load %arg5[%c8_160, %c0_161, %c0_162] : memref<17x1x128xf32, #tpu.memory_space<vmem>>, vector<1x1x128xf32>
    %331 = vector.shape_cast %330 : vector<1x1x128xf32> to vector<1x128xf32>
    %332 = arith.mulf %314, %329 : vector<1x128xf32>
    %333 = arith.subf %331, %332 : vector<1x128xf32>
    %334 = vector.broadcast %329 : vector<1x128xf32> to vector<8x128xf32>
    %335 = arith.mulf %310, %334 : vector<8x128xf32>
    %336 = vector.broadcast %333 : vector<1x128xf32> to vector<8x128xf32>
    %337 = arith.addf %335, %336 : vector<8x128xf32>
    %338 = vector.extract_strided_slice %337 {offsets = [0, 0], sizes = [8, 32], strides = [1, 1]} : vector<8x128xf32> to vector<8x32xf32>
    %339 = arith.truncf %338 : vector<8x32xf32> to vector<8x32xbf16>
    %c8_163 = arith.constant 8 : index
    %c0_164 = arith.constant 0 : index
    %c0_165 = arith.constant 0 : index
    %340 = vector.load %arg2[%c8_163, %c0_164, %c0_165] : memref<16x128x128xbf16, #tpu.memory_space<vmem>>, vector<1x32x128xbf16>
    %341 = vector.shape_cast %340 : vector<1x32x128xbf16> to vector<32x128xbf16>
    %cst_166 = arith.constant dense<0.000000e+00> : vector<8x128xf32>
    %342 = tpu.matmul %339, %341, %cst_166 {dimension_numbers = #tpu.dot_dimension_numbers<[1], [0], [0], [1], [0, 0, 1, 1], [], []>} : vector<8x32xbf16>, vector<32x128xbf16>, vector<8x128xf32> -> vector<8x128xf32>
    %c9 = arith.constant 9 : index
    %c0_167 = arith.constant 0 : index
    %c0_168 = arith.constant 0 : index
    %343 = vector.load %arg3[%c9, %c0_167, %c0_168] : memref<17x1x128xf32, #tpu.memory_space<vmem>>, vector<1x1x128xf32>
    %344 = vector.shape_cast %343 : vector<1x1x128xf32> to vector<1x128xf32>
    %345 = vector.broadcast %344 : vector<1x128xf32> to vector<8x128xf32>
    %346 = arith.addf %342, %345 : vector<8x128xf32>
    %347 = math.tanh %346 : vector<8x128xf32>
    %cst_169 = arith.constant dense<0.000000e+00> : vector<128xf32>
    %348 = vector.multi_reduction <add>, %347, %cst_169 [0] : vector<8x128xf32> to vector<128xf32>
    %349 = vector.shape_cast %348 : vector<128xf32> to vector<1x128xf32>
    %cst_170 = arith.constant 8.000000e+00 : f32
    %350 = vector.broadcast %cst_170 : f32 to vector<1x128xf32>
    %351 = arith.divf %349, %350 : vector<1x128xf32>
    %352 = arith.mulf %347, %347 : vector<8x128xf32>
    %cst_171 = arith.constant dense<0.000000e+00> : vector<128xf32>
    %353 = vector.multi_reduction <add>, %352, %cst_171 [0] : vector<8x128xf32> to vector<128xf32>
    %354 = vector.shape_cast %353 : vector<128xf32> to vector<1x128xf32>
    %cst_172 = arith.constant 8.000000e+00 : f32
    %355 = vector.broadcast %cst_172 : f32 to vector<1x128xf32>
    %356 = arith.divf %354, %355 : vector<1x128xf32>
    %357 = arith.mulf %351, %351 : vector<1x128xf32>
    %358 = arith.subf %356, %357 : vector<1x128xf32>
    %cst_173 = arith.constant 0.000000e+00 : f32
    %359 = vector.broadcast %cst_173 : f32 to vector<1x128xf32>
    %360 = arith.maximumf %358, %359 : vector<1x128xf32>
    %cst_174 = arith.constant 9.99999974E-6 : f32
    %361 = vector.broadcast %cst_174 : f32 to vector<1x128xf32>
    %362 = arith.addf %360, %361 : vector<1x128xf32>
    %363 = math.rsqrt %362 : vector<1x128xf32>
    %c9_175 = arith.constant 9 : index
    %c0_176 = arith.constant 0 : index
    %c0_177 = arith.constant 0 : index
    %364 = vector.load %arg4[%c9_175, %c0_176, %c0_177] : memref<17x1x128xf32, #tpu.memory_space<vmem>>, vector<1x1x128xf32>
    %365 = vector.shape_cast %364 : vector<1x1x128xf32> to vector<1x128xf32>
    %366 = arith.mulf %365, %363 : vector<1x128xf32>
    %c9_178 = arith.constant 9 : index
    %c0_179 = arith.constant 0 : index
    %c0_180 = arith.constant 0 : index
    %367 = vector.load %arg5[%c9_178, %c0_179, %c0_180] : memref<17x1x128xf32, #tpu.memory_space<vmem>>, vector<1x1x128xf32>
    %368 = vector.shape_cast %367 : vector<1x1x128xf32> to vector<1x128xf32>
    %369 = arith.mulf %351, %366 : vector<1x128xf32>
    %370 = arith.subf %368, %369 : vector<1x128xf32>
    %371 = vector.broadcast %366 : vector<1x128xf32> to vector<8x128xf32>
    %372 = arith.mulf %347, %371 : vector<8x128xf32>
    %373 = vector.broadcast %370 : vector<1x128xf32> to vector<8x128xf32>
    %374 = arith.addf %372, %373 : vector<8x128xf32>
    %375 = vector.extract_strided_slice %374 {offsets = [0, 0], sizes = [8, 64], strides = [1, 1]} : vector<8x128xf32> to vector<8x64xf32>
    %376 = arith.truncf %375 : vector<8x64xf32> to vector<8x64xbf16>
    %c9_181 = arith.constant 9 : index
    %c0_182 = arith.constant 0 : index
    %c0_183 = arith.constant 0 : index
    %377 = vector.load %arg2[%c9_181, %c0_182, %c0_183] : memref<16x128x128xbf16, #tpu.memory_space<vmem>>, vector<1x64x128xbf16>
    %378 = vector.shape_cast %377 : vector<1x64x128xbf16> to vector<64x128xbf16>
    %cst_184 = arith.constant dense<0.000000e+00> : vector<8x128xf32>
    %379 = tpu.matmul %376, %378, %cst_184 {dimension_numbers = #tpu.dot_dimension_numbers<[1], [0], [0], [1], [0, 0, 1, 1], [], []>} : vector<8x64xbf16>, vector<64x128xbf16>, vector<8x128xf32> -> vector<8x128xf32>
    %c10 = arith.constant 10 : index
    %c0_185 = arith.constant 0 : index
    %c0_186 = arith.constant 0 : index
    %380 = vector.load %arg3[%c10, %c0_185, %c0_186] : memref<17x1x128xf32, #tpu.memory_space<vmem>>, vector<1x1x128xf32>
    %381 = vector.shape_cast %380 : vector<1x1x128xf32> to vector<1x128xf32>
    %382 = vector.broadcast %381 : vector<1x128xf32> to vector<8x128xf32>
    %383 = arith.addf %379, %382 : vector<8x128xf32>
    %384 = math.tanh %383 : vector<8x128xf32>
    %cst_187 = arith.constant dense<0.000000e+00> : vector<128xf32>
    %385 = vector.multi_reduction <add>, %384, %cst_187 [0] : vector<8x128xf32> to vector<128xf32>
    %386 = vector.shape_cast %385 : vector<128xf32> to vector<1x128xf32>
    %cst_188 = arith.constant 8.000000e+00 : f32
    %387 = vector.broadcast %cst_188 : f32 to vector<1x128xf32>
    %388 = arith.divf %386, %387 : vector<1x128xf32>
    %389 = arith.mulf %384, %384 : vector<8x128xf32>
    %cst_189 = arith.constant dense<0.000000e+00> : vector<128xf32>
    %390 = vector.multi_reduction <add>, %389, %cst_189 [0] : vector<8x128xf32> to vector<128xf32>
    %391 = vector.shape_cast %390 : vector<128xf32> to vector<1x128xf32>
    %cst_190 = arith.constant 8.000000e+00 : f32
    %392 = vector.broadcast %cst_190 : f32 to vector<1x128xf32>
    %393 = arith.divf %391, %392 : vector<1x128xf32>
    %394 = arith.mulf %388, %388 : vector<1x128xf32>
    %395 = arith.subf %393, %394 : vector<1x128xf32>
    %cst_191 = arith.constant 0.000000e+00 : f32
    %396 = vector.broadcast %cst_191 : f32 to vector<1x128xf32>
    %397 = arith.maximumf %395, %396 : vector<1x128xf32>
    %cst_192 = arith.constant 9.99999974E-6 : f32
    %398 = vector.broadcast %cst_192 : f32 to vector<1x128xf32>
    %399 = arith.addf %397, %398 : vector<1x128xf32>
    %400 = math.rsqrt %399 : vector<1x128xf32>
    %c10_193 = arith.constant 10 : index
    %c0_194 = arith.constant 0 : index
    %c0_195 = arith.constant 0 : index
    %401 = vector.load %arg4[%c10_193, %c0_194, %c0_195] : memref<17x1x128xf32, #tpu.memory_space<vmem>>, vector<1x1x128xf32>
    %402 = vector.shape_cast %401 : vector<1x1x128xf32> to vector<1x128xf32>
    %403 = arith.mulf %402, %400 : vector<1x128xf32>
    %c10_196 = arith.constant 10 : index
    %c0_197 = arith.constant 0 : index
    %c0_198 = arith.constant 0 : index
    %404 = vector.load %arg5[%c10_196, %c0_197, %c0_198] : memref<17x1x128xf32, #tpu.memory_space<vmem>>, vector<1x1x128xf32>
    %405 = vector.shape_cast %404 : vector<1x1x128xf32> to vector<1x128xf32>
    %406 = arith.mulf %388, %403 : vector<1x128xf32>
    %407 = arith.subf %405, %406 : vector<1x128xf32>
    %408 = vector.broadcast %403 : vector<1x128xf32> to vector<8x128xf32>
    %409 = arith.mulf %384, %408 : vector<8x128xf32>
    %410 = vector.broadcast %407 : vector<1x128xf32> to vector<8x128xf32>
    %411 = arith.addf %409, %410 : vector<8x128xf32>
    %412 = arith.truncf %411 : vector<8x128xf32> to vector<8x128xbf16>
    %c10_199 = arith.constant 10 : index
    %c0_200 = arith.constant 0 : index
    %c0_201 = arith.constant 0 : index
    %413 = vector.load %arg2[%c10_199, %c0_200, %c0_201] : memref<16x128x128xbf16, #tpu.memory_space<vmem>>, vector<1x128x128xbf16>
    %414 = vector.shape_cast %413 : vector<1x128x128xbf16> to vector<128x128xbf16>
    %cst_202 = arith.constant dense<0.000000e+00> : vector<8x128xf32>
    %415 = tpu.matmul %412, %414, %cst_202 {dimension_numbers = #tpu.dot_dimension_numbers<[1], [0], [0], [1], [0, 0, 1, 1], [], []>} : vector<8x128xbf16>, vector<128x128xbf16>, vector<8x128xf32> -> vector<8x128xf32>
    %c11 = arith.constant 11 : index
    %c0_203 = arith.constant 0 : index
    %c0_204 = arith.constant 0 : index
    %416 = vector.load %arg3[%c11, %c0_203, %c0_204] : memref<17x1x128xf32, #tpu.memory_space<vmem>>, vector<1x1x128xf32>
    %417 = vector.shape_cast %416 : vector<1x1x128xf32> to vector<1x128xf32>
    %418 = vector.broadcast %417 : vector<1x128xf32> to vector<8x128xf32>
    %419 = arith.addf %415, %418 : vector<8x128xf32>
    %420 = math.tanh %419 : vector<8x128xf32>
    %cst_205 = arith.constant dense<0.000000e+00> : vector<128xf32>
    %421 = vector.multi_reduction <add>, %420, %cst_205 [0] : vector<8x128xf32> to vector<128xf32>
    %422 = vector.shape_cast %421 : vector<128xf32> to vector<1x128xf32>
    %cst_206 = arith.constant 8.000000e+00 : f32
    %423 = vector.broadcast %cst_206 : f32 to vector<1x128xf32>
    %424 = arith.divf %422, %423 : vector<1x128xf32>
    %425 = arith.mulf %420, %420 : vector<8x128xf32>
    %cst_207 = arith.constant dense<0.000000e+00> : vector<128xf32>
    %426 = vector.multi_reduction <add>, %425, %cst_207 [0] : vector<8x128xf32> to vector<128xf32>
    %427 = vector.shape_cast %426 : vector<128xf32> to vector<1x128xf32>
    %cst_208 = arith.constant 8.000000e+00 : f32
    %428 = vector.broadcast %cst_208 : f32 to vector<1x128xf32>
    %429 = arith.divf %427, %428 : vector<1x128xf32>
    %430 = arith.mulf %424, %424 : vector<1x128xf32>
    %431 = arith.subf %429, %430 : vector<1x128xf32>
    %cst_209 = arith.constant 0.000000e+00 : f32
    %432 = vector.broadcast %cst_209 : f32 to vector<1x128xf32>
    %433 = arith.maximumf %431, %432 : vector<1x128xf32>
    %cst_210 = arith.constant 9.99999974E-6 : f32
    %434 = vector.broadcast %cst_210 : f32 to vector<1x128xf32>
    %435 = arith.addf %433, %434 : vector<1x128xf32>
    %436 = math.rsqrt %435 : vector<1x128xf32>
    %c11_211 = arith.constant 11 : index
    %c0_212 = arith.constant 0 : index
    %c0_213 = arith.constant 0 : index
    %437 = vector.load %arg4[%c11_211, %c0_212, %c0_213] : memref<17x1x128xf32, #tpu.memory_space<vmem>>, vector<1x1x128xf32>
    %438 = vector.shape_cast %437 : vector<1x1x128xf32> to vector<1x128xf32>
    %439 = arith.mulf %438, %436 : vector<1x128xf32>
    %c11_214 = arith.constant 11 : index
    %c0_215 = arith.constant 0 : index
    %c0_216 = arith.constant 0 : index
    %440 = vector.load %arg5[%c11_214, %c0_215, %c0_216] : memref<17x1x128xf32, #tpu.memory_space<vmem>>, vector<1x1x128xf32>
    %441 = vector.shape_cast %440 : vector<1x1x128xf32> to vector<1x128xf32>
    %442 = arith.mulf %424, %439 : vector<1x128xf32>
    %443 = arith.subf %441, %442 : vector<1x128xf32>
    %444 = vector.broadcast %439 : vector<1x128xf32> to vector<8x128xf32>
    %445 = arith.mulf %420, %444 : vector<8x128xf32>
    %446 = vector.broadcast %443 : vector<1x128xf32> to vector<8x128xf32>
    %447 = arith.addf %445, %446 : vector<8x128xf32>
    %448 = vector.extract_strided_slice %447 {offsets = [0, 0], sizes = [8, 64], strides = [1, 1]} : vector<8x128xf32> to vector<8x64xf32>
    %449 = arith.truncf %448 : vector<8x64xf32> to vector<8x64xbf16>
    %c11_217 = arith.constant 11 : index
    %c0_218 = arith.constant 0 : index
    %c0_219 = arith.constant 0 : index
    %450 = vector.load %arg2[%c11_217, %c0_218, %c0_219] : memref<16x128x128xbf16, #tpu.memory_space<vmem>>, vector<1x64x128xbf16>
    %451 = vector.shape_cast %450 : vector<1x64x128xbf16> to vector<64x128xbf16>
    %cst_220 = arith.constant dense<0.000000e+00> : vector<8x128xf32>
    %452 = tpu.matmul %449, %451, %cst_220 {dimension_numbers = #tpu.dot_dimension_numbers<[1], [0], [0], [1], [0, 0, 1, 1], [], []>} : vector<8x64xbf16>, vector<64x128xbf16>, vector<8x128xf32> -> vector<8x128xf32>
    %c12 = arith.constant 12 : index
    %c0_221 = arith.constant 0 : index
    %c0_222 = arith.constant 0 : index
    %453 = vector.load %arg3[%c12, %c0_221, %c0_222] : memref<17x1x128xf32, #tpu.memory_space<vmem>>, vector<1x1x128xf32>
    %454 = vector.shape_cast %453 : vector<1x1x128xf32> to vector<1x128xf32>
    %455 = vector.broadcast %454 : vector<1x128xf32> to vector<8x128xf32>
    %456 = arith.addf %452, %455 : vector<8x128xf32>
    %457 = math.tanh %456 : vector<8x128xf32>
    %cst_223 = arith.constant dense<0.000000e+00> : vector<128xf32>
    %458 = vector.multi_reduction <add>, %457, %cst_223 [0] : vector<8x128xf32> to vector<128xf32>
    %459 = vector.shape_cast %458 : vector<128xf32> to vector<1x128xf32>
    %cst_224 = arith.constant 8.000000e+00 : f32
    %460 = vector.broadcast %cst_224 : f32 to vector<1x128xf32>
    %461 = arith.divf %459, %460 : vector<1x128xf32>
    %462 = arith.mulf %457, %457 : vector<8x128xf32>
    %cst_225 = arith.constant dense<0.000000e+00> : vector<128xf32>
    %463 = vector.multi_reduction <add>, %462, %cst_225 [0] : vector<8x128xf32> to vector<128xf32>
    %464 = vector.shape_cast %463 : vector<128xf32> to vector<1x128xf32>
    %cst_226 = arith.constant 8.000000e+00 : f32
    %465 = vector.broadcast %cst_226 : f32 to vector<1x128xf32>
    %466 = arith.divf %464, %465 : vector<1x128xf32>
    %467 = arith.mulf %461, %461 : vector<1x128xf32>
    %468 = arith.subf %466, %467 : vector<1x128xf32>
    %cst_227 = arith.constant 0.000000e+00 : f32
    %469 = vector.broadcast %cst_227 : f32 to vector<1x128xf32>
    %470 = arith.maximumf %468, %469 : vector<1x128xf32>
    %cst_228 = arith.constant 9.99999974E-6 : f32
    %471 = vector.broadcast %cst_228 : f32 to vector<1x128xf32>
    %472 = arith.addf %470, %471 : vector<1x128xf32>
    %473 = math.rsqrt %472 : vector<1x128xf32>
    %c12_229 = arith.constant 12 : index
    %c0_230 = arith.constant 0 : index
    %c0_231 = arith.constant 0 : index
    %474 = vector.load %arg4[%c12_229, %c0_230, %c0_231] : memref<17x1x128xf32, #tpu.memory_space<vmem>>, vector<1x1x128xf32>
    %475 = vector.shape_cast %474 : vector<1x1x128xf32> to vector<1x128xf32>
    %476 = arith.mulf %475, %473 : vector<1x128xf32>
    %c12_232 = arith.constant 12 : index
    %c0_233 = arith.constant 0 : index
    %c0_234 = arith.constant 0 : index
    %477 = vector.load %arg5[%c12_232, %c0_233, %c0_234] : memref<17x1x128xf32, #tpu.memory_space<vmem>>, vector<1x1x128xf32>
    %478 = vector.shape_cast %477 : vector<1x1x128xf32> to vector<1x128xf32>
    %479 = arith.mulf %461, %476 : vector<1x128xf32>
    %480 = arith.subf %478, %479 : vector<1x128xf32>
    %481 = vector.broadcast %476 : vector<1x128xf32> to vector<8x128xf32>
    %482 = arith.mulf %457, %481 : vector<8x128xf32>
    %483 = vector.broadcast %480 : vector<1x128xf32> to vector<8x128xf32>
    %484 = arith.addf %482, %483 : vector<8x128xf32>
    %485 = vector.extract_strided_slice %484 {offsets = [0, 0], sizes = [8, 32], strides = [1, 1]} : vector<8x128xf32> to vector<8x32xf32>
    %486 = arith.truncf %485 : vector<8x32xf32> to vector<8x32xbf16>
    %c12_235 = arith.constant 12 : index
    %c0_236 = arith.constant 0 : index
    %c0_237 = arith.constant 0 : index
    %487 = vector.load %arg2[%c12_235, %c0_236, %c0_237] : memref<16x128x128xbf16, #tpu.memory_space<vmem>>, vector<1x32x128xbf16>
    %488 = vector.shape_cast %487 : vector<1x32x128xbf16> to vector<32x128xbf16>
    %cst_238 = arith.constant dense<0.000000e+00> : vector<8x128xf32>
    %489 = tpu.matmul %486, %488, %cst_238 {dimension_numbers = #tpu.dot_dimension_numbers<[1], [0], [0], [1], [0, 0, 1, 1], [], []>} : vector<8x32xbf16>, vector<32x128xbf16>, vector<8x128xf32> -> vector<8x128xf32>
    %c13 = arith.constant 13 : index
    %c0_239 = arith.constant 0 : index
    %c0_240 = arith.constant 0 : index
    %490 = vector.load %arg3[%c13, %c0_239, %c0_240] : memref<17x1x128xf32, #tpu.memory_space<vmem>>, vector<1x1x128xf32>
    %491 = vector.shape_cast %490 : vector<1x1x128xf32> to vector<1x128xf32>
    %492 = vector.broadcast %491 : vector<1x128xf32> to vector<8x128xf32>
    %493 = arith.addf %489, %492 : vector<8x128xf32>
    %494 = math.tanh %493 : vector<8x128xf32>
    %cst_241 = arith.constant dense<0.000000e+00> : vector<128xf32>
    %495 = vector.multi_reduction <add>, %494, %cst_241 [0] : vector<8x128xf32> to vector<128xf32>
    %496 = vector.shape_cast %495 : vector<128xf32> to vector<1x128xf32>
    %cst_242 = arith.constant 8.000000e+00 : f32
    %497 = vector.broadcast %cst_242 : f32 to vector<1x128xf32>
    %498 = arith.divf %496, %497 : vector<1x128xf32>
    %499 = arith.mulf %494, %494 : vector<8x128xf32>
    %cst_243 = arith.constant dense<0.000000e+00> : vector<128xf32>
    %500 = vector.multi_reduction <add>, %499, %cst_243 [0] : vector<8x128xf32> to vector<128xf32>
    %501 = vector.shape_cast %500 : vector<128xf32> to vector<1x128xf32>
    %cst_244 = arith.constant 8.000000e+00 : f32
    %502 = vector.broadcast %cst_244 : f32 to vector<1x128xf32>
    %503 = arith.divf %501, %502 : vector<1x128xf32>
    %504 = arith.mulf %498, %498 : vector<1x128xf32>
    %505 = arith.subf %503, %504 : vector<1x128xf32>
    %cst_245 = arith.constant 0.000000e+00 : f32
    %506 = vector.broadcast %cst_245 : f32 to vector<1x128xf32>
    %507 = arith.maximumf %505, %506 : vector<1x128xf32>
    %cst_246 = arith.constant 9.99999974E-6 : f32
    %508 = vector.broadcast %cst_246 : f32 to vector<1x128xf32>
    %509 = arith.addf %507, %508 : vector<1x128xf32>
    %510 = math.rsqrt %509 : vector<1x128xf32>
    %c13_247 = arith.constant 13 : index
    %c0_248 = arith.constant 0 : index
    %c0_249 = arith.constant 0 : index
    %511 = vector.load %arg4[%c13_247, %c0_248, %c0_249] : memref<17x1x128xf32, #tpu.memory_space<vmem>>, vector<1x1x128xf32>
    %512 = vector.shape_cast %511 : vector<1x1x128xf32> to vector<1x128xf32>
    %513 = arith.mulf %512, %510 : vector<1x128xf32>
    %c13_250 = arith.constant 13 : index
    %c0_251 = arith.constant 0 : index
    %c0_252 = arith.constant 0 : index
    %514 = vector.load %arg5[%c13_250, %c0_251, %c0_252] : memref<17x1x128xf32, #tpu.memory_space<vmem>>, vector<1x1x128xf32>
    %515 = vector.shape_cast %514 : vector<1x1x128xf32> to vector<1x128xf32>
    %516 = arith.mulf %498, %513 : vector<1x128xf32>
    %517 = arith.subf %515, %516 : vector<1x128xf32>
    %518 = vector.broadcast %513 : vector<1x128xf32> to vector<8x128xf32>
    %519 = arith.mulf %494, %518 : vector<8x128xf32>
    %520 = vector.broadcast %517 : vector<1x128xf32> to vector<8x128xf32>
    %521 = arith.addf %519, %520 : vector<8x128xf32>
    %522 = vector.extract_strided_slice %521 {offsets = [0, 0], sizes = [8, 16], strides = [1, 1]} : vector<8x128xf32> to vector<8x16xf32>
    %523 = arith.truncf %522 : vector<8x16xf32> to vector<8x16xbf16>
    %c13_253 = arith.constant 13 : index
    %c0_254 = arith.constant 0 : index
    %c0_255 = arith.constant 0 : index
    %524 = vector.load %arg2[%c13_253, %c0_254, %c0_255] : memref<16x128x128xbf16, #tpu.memory_space<vmem>>, vector<1x16x128xbf16>
    %525 = vector.shape_cast %524 : vector<1x16x128xbf16> to vector<16x128xbf16>
    %cst_256 = arith.constant dense<0.000000e+00> : vector<8x128xf32>
    %526 = tpu.matmul %523, %525, %cst_256 {dimension_numbers = #tpu.dot_dimension_numbers<[1], [0], [0], [1], [0, 0, 1, 1], [], []>} : vector<8x16xbf16>, vector<16x128xbf16>, vector<8x128xf32> -> vector<8x128xf32>
    %c14 = arith.constant 14 : index
    %c0_257 = arith.constant 0 : index
    %c0_258 = arith.constant 0 : index
    %527 = vector.load %arg3[%c14, %c0_257, %c0_258] : memref<17x1x128xf32, #tpu.memory_space<vmem>>, vector<1x1x128xf32>
    %528 = vector.shape_cast %527 : vector<1x1x128xf32> to vector<1x128xf32>
    %529 = vector.broadcast %528 : vector<1x128xf32> to vector<8x128xf32>
    %530 = arith.addf %526, %529 : vector<8x128xf32>
    %531 = math.tanh %530 : vector<8x128xf32>
    %cst_259 = arith.constant dense<0.000000e+00> : vector<128xf32>
    %532 = vector.multi_reduction <add>, %531, %cst_259 [0] : vector<8x128xf32> to vector<128xf32>
    %533 = vector.shape_cast %532 : vector<128xf32> to vector<1x128xf32>
    %cst_260 = arith.constant 8.000000e+00 : f32
    %534 = vector.broadcast %cst_260 : f32 to vector<1x128xf32>
    %535 = arith.divf %533, %534 : vector<1x128xf32>
    %536 = arith.mulf %531, %531 : vector<8x128xf32>
    %cst_261 = arith.constant dense<0.000000e+00> : vector<128xf32>
    %537 = vector.multi_reduction <add>, %536, %cst_261 [0] : vector<8x128xf32> to vector<128xf32>
    %538 = vector.shape_cast %537 : vector<128xf32> to vector<1x128xf32>
    %cst_262 = arith.constant 8.000000e+00 : f32
    %539 = vector.broadcast %cst_262 : f32 to vector<1x128xf32>
    %540 = arith.divf %538, %539 : vector<1x128xf32>
    %541 = arith.mulf %535, %535 : vector<1x128xf32>
    %542 = arith.subf %540, %541 : vector<1x128xf32>
    %cst_263 = arith.constant 0.000000e+00 : f32
    %543 = vector.broadcast %cst_263 : f32 to vector<1x128xf32>
    %544 = arith.maximumf %542, %543 : vector<1x128xf32>
    %cst_264 = arith.constant 9.99999974E-6 : f32
    %545 = vector.broadcast %cst_264 : f32 to vector<1x128xf32>
    %546 = arith.addf %544, %545 : vector<1x128xf32>
    %547 = math.rsqrt %546 : vector<1x128xf32>
    %c14_265 = arith.constant 14 : index
    %c0_266 = arith.constant 0 : index
    %c0_267 = arith.constant 0 : index
    %548 = vector.load %arg4[%c14_265, %c0_266, %c0_267] : memref<17x1x128xf32, #tpu.memory_space<vmem>>, vector<1x1x128xf32>
    %549 = vector.shape_cast %548 : vector<1x1x128xf32> to vector<1x128xf32>
    %550 = arith.mulf %549, %547 : vector<1x128xf32>
    %c14_268 = arith.constant 14 : index
    %c0_269 = arith.constant 0 : index
    %c0_270 = arith.constant 0 : index
    %551 = vector.load %arg5[%c14_268, %c0_269, %c0_270] : memref<17x1x128xf32, #tpu.memory_space<vmem>>, vector<1x1x128xf32>
    %552 = vector.shape_cast %551 : vector<1x1x128xf32> to vector<1x128xf32>
    %553 = arith.mulf %535, %550 : vector<1x128xf32>
    %554 = arith.subf %552, %553 : vector<1x128xf32>
    %555 = vector.broadcast %550 : vector<1x128xf32> to vector<8x128xf32>
    %556 = arith.mulf %531, %555 : vector<8x128xf32>
    %557 = vector.broadcast %554 : vector<1x128xf32> to vector<8x128xf32>
    %558 = arith.addf %556, %557 : vector<8x128xf32>
    %559 = vector.extract_strided_slice %558 {offsets = [0, 0], sizes = [8, 16], strides = [1, 1]} : vector<8x128xf32> to vector<8x16xf32>
    %560 = arith.truncf %559 : vector<8x16xf32> to vector<8x16xbf16>
    %c14_271 = arith.constant 14 : index
    %c0_272 = arith.constant 0 : index
    %c0_273 = arith.constant 0 : index
    %561 = vector.load %arg2[%c14_271, %c0_272, %c0_273] : memref<16x128x128xbf16, #tpu.memory_space<vmem>>, vector<1x16x128xbf16>
    %562 = vector.shape_cast %561 : vector<1x16x128xbf16> to vector<16x128xbf16>
    %cst_274 = arith.constant dense<0.000000e+00> : vector<8x128xf32>
    %563 = tpu.matmul %560, %562, %cst_274 {dimension_numbers = #tpu.dot_dimension_numbers<[1], [0], [0], [1], [0, 0, 1, 1], [], []>} : vector<8x16xbf16>, vector<16x128xbf16>, vector<8x128xf32> -> vector<8x128xf32>
    %c15 = arith.constant 15 : index
    %c0_275 = arith.constant 0 : index
    %c0_276 = arith.constant 0 : index
    %564 = vector.load %arg3[%c15, %c0_275, %c0_276] : memref<17x1x128xf32, #tpu.memory_space<vmem>>, vector<1x1x128xf32>
    %565 = vector.shape_cast %564 : vector<1x1x128xf32> to vector<1x128xf32>
    %566 = vector.broadcast %565 : vector<1x128xf32> to vector<8x128xf32>
    %567 = arith.addf %563, %566 : vector<8x128xf32>
    %568 = math.tanh %567 : vector<8x128xf32>
    %cst_277 = arith.constant dense<0.000000e+00> : vector<128xf32>
    %569 = vector.multi_reduction <add>, %568, %cst_277 [0] : vector<8x128xf32> to vector<128xf32>
    %570 = vector.shape_cast %569 : vector<128xf32> to vector<1x128xf32>
    %cst_278 = arith.constant 8.000000e+00 : f32
    %571 = vector.broadcast %cst_278 : f32 to vector<1x128xf32>
    %572 = arith.divf %570, %571 : vector<1x128xf32>
    %573 = arith.mulf %568, %568 : vector<8x128xf32>
    %cst_279 = arith.constant dense<0.000000e+00> : vector<128xf32>
    %574 = vector.multi_reduction <add>, %573, %cst_279 [0] : vector<8x128xf32> to vector<128xf32>
    %575 = vector.shape_cast %574 : vector<128xf32> to vector<1x128xf32>
    %cst_280 = arith.constant 8.000000e+00 : f32
    %576 = vector.broadcast %cst_280 : f32 to vector<1x128xf32>
    %577 = arith.divf %575, %576 : vector<1x128xf32>
    %578 = arith.mulf %572, %572 : vector<1x128xf32>
    %579 = arith.subf %577, %578 : vector<1x128xf32>
    %cst_281 = arith.constant 0.000000e+00 : f32
    %580 = vector.broadcast %cst_281 : f32 to vector<1x128xf32>
    %581 = arith.maximumf %579, %580 : vector<1x128xf32>
    %cst_282 = arith.constant 9.99999974E-6 : f32
    %582 = vector.broadcast %cst_282 : f32 to vector<1x128xf32>
    %583 = arith.addf %581, %582 : vector<1x128xf32>
    %584 = math.rsqrt %583 : vector<1x128xf32>
    %c15_283 = arith.constant 15 : index
    %c0_284 = arith.constant 0 : index
    %c0_285 = arith.constant 0 : index
    %585 = vector.load %arg4[%c15_283, %c0_284, %c0_285] : memref<17x1x128xf32, #tpu.memory_space<vmem>>, vector<1x1x128xf32>
    %586 = vector.shape_cast %585 : vector<1x1x128xf32> to vector<1x128xf32>
    %587 = arith.mulf %586, %584 : vector<1x128xf32>
    %c15_286 = arith.constant 15 : index
    %c0_287 = arith.constant 0 : index
    %c0_288 = arith.constant 0 : index
    %588 = vector.load %arg5[%c15_286, %c0_287, %c0_288] : memref<17x1x128xf32, #tpu.memory_space<vmem>>, vector<1x1x128xf32>
    %589 = vector.shape_cast %588 : vector<1x1x128xf32> to vector<1x128xf32>
    %590 = arith.mulf %572, %587 : vector<1x128xf32>
    %591 = arith.subf %589, %590 : vector<1x128xf32>
    %592 = vector.broadcast %587 : vector<1x128xf32> to vector<8x128xf32>
    %593 = arith.mulf %568, %592 : vector<8x128xf32>
    %594 = vector.broadcast %591 : vector<1x128xf32> to vector<8x128xf32>
    %595 = arith.addf %593, %594 : vector<8x128xf32>
    %596 = vector.extract_strided_slice %595 {offsets = [0, 0], sizes = [8, 16], strides = [1, 1]} : vector<8x128xf32> to vector<8x16xf32>
    %597 = arith.truncf %596 : vector<8x16xf32> to vector<8x16xbf16>
    %c15_289 = arith.constant 15 : index
    %c0_290 = arith.constant 0 : index
    %c0_291 = arith.constant 0 : index
    %598 = vector.load %arg2[%c15_289, %c0_290, %c0_291] : memref<16x128x128xbf16, #tpu.memory_space<vmem>>, vector<1x16x128xbf16>
    %599 = vector.shape_cast %598 : vector<1x16x128xbf16> to vector<16x128xbf16>
    %cst_292 = arith.constant dense<0.000000e+00> : vector<8x128xf32>
    %600 = tpu.matmul %597, %599, %cst_292 {dimension_numbers = #tpu.dot_dimension_numbers<[1], [0], [0], [1], [0, 0, 1, 1], [], []>} : vector<8x16xbf16>, vector<16x128xbf16>, vector<8x128xf32> -> vector<8x128xf32>
    %c16 = arith.constant 16 : index
    %c0_293 = arith.constant 0 : index
    %c0_294 = arith.constant 0 : index
    %601 = vector.load %arg3[%c16, %c0_293, %c0_294] : memref<17x1x128xf32, #tpu.memory_space<vmem>>, vector<1x1x128xf32>
    %602 = vector.shape_cast %601 : vector<1x1x128xf32> to vector<1x128xf32>
    %603 = vector.broadcast %602 : vector<1x128xf32> to vector<8x128xf32>
    %604 = arith.addf %600, %603 : vector<8x128xf32>
    %605 = math.tanh %604 : vector<8x128xf32>
    %cst_295 = arith.constant dense<0.000000e+00> : vector<128xf32>
    %606 = vector.multi_reduction <add>, %605, %cst_295 [0] : vector<8x128xf32> to vector<128xf32>
    %607 = vector.shape_cast %606 : vector<128xf32> to vector<1x128xf32>
    %cst_296 = arith.constant 8.000000e+00 : f32
    %608 = vector.broadcast %cst_296 : f32 to vector<1x128xf32>
    %609 = arith.divf %607, %608 : vector<1x128xf32>
    %610 = arith.mulf %605, %605 : vector<8x128xf32>
    %cst_297 = arith.constant dense<0.000000e+00> : vector<128xf32>
    %611 = vector.multi_reduction <add>, %610, %cst_297 [0] : vector<8x128xf32> to vector<128xf32>
    %612 = vector.shape_cast %611 : vector<128xf32> to vector<1x128xf32>
    %cst_298 = arith.constant 8.000000e+00 : f32
    %613 = vector.broadcast %cst_298 : f32 to vector<1x128xf32>
    %614 = arith.divf %612, %613 : vector<1x128xf32>
    %615 = arith.mulf %609, %609 : vector<1x128xf32>
    %616 = arith.subf %614, %615 : vector<1x128xf32>
    %cst_299 = arith.constant 0.000000e+00 : f32
    %617 = vector.broadcast %cst_299 : f32 to vector<1x128xf32>
    %618 = arith.maximumf %616, %617 : vector<1x128xf32>
    %cst_300 = arith.constant 9.99999974E-6 : f32
    %619 = vector.broadcast %cst_300 : f32 to vector<1x128xf32>
    %620 = arith.addf %618, %619 : vector<1x128xf32>
    %621 = math.rsqrt %620 : vector<1x128xf32>
    %c16_301 = arith.constant 16 : index
    %c0_302 = arith.constant 0 : index
    %c0_303 = arith.constant 0 : index
    %622 = vector.load %arg4[%c16_301, %c0_302, %c0_303] : memref<17x1x128xf32, #tpu.memory_space<vmem>>, vector<1x1x128xf32>
    %623 = vector.shape_cast %622 : vector<1x1x128xf32> to vector<1x128xf32>
    %624 = arith.mulf %623, %621 : vector<1x128xf32>
    %c16_304 = arith.constant 16 : index
    %c0_305 = arith.constant 0 : index
    %c0_306 = arith.constant 0 : index
    %625 = vector.load %arg5[%c16_304, %c0_305, %c0_306] : memref<17x1x128xf32, #tpu.memory_space<vmem>>, vector<1x1x128xf32>
    %626 = vector.shape_cast %625 : vector<1x1x128xf32> to vector<1x128xf32>
    %627 = arith.mulf %609, %624 : vector<1x128xf32>
    %628 = arith.subf %626, %627 : vector<1x128xf32>
    %629 = vector.broadcast %624 : vector<1x128xf32> to vector<8x128xf32>
    %630 = arith.mulf %605, %629 : vector<8x128xf32>
    %631 = vector.broadcast %628 : vector<1x128xf32> to vector<8x128xf32>
    %632 = arith.addf %630, %631 : vector<8x128xf32>
    %c0_307 = arith.constant 0 : index
    %c0_308 = arith.constant 0 : index
    %633 = vector.load %arg6[%c0_307, %c0_308] : memref<1x128xf32, #tpu.memory_space<vmem>>, vector<1x128xf32>
    %634 = vector.broadcast %633 : vector<1x128xf32> to vector<8x128xf32>
    %635 = arith.mulf %632, %634 : vector<8x128xf32>
    %cst_309 = arith.constant dense<0.000000e+00> : vector<8xf32>
    %636 = vector.multi_reduction <add>, %635, %cst_309 [1] : vector<8x128xf32> to vector<8xf32>
    %637 = vector.shape_cast %636 : vector<8xf32> to vector<8x1xf32>
    %c0_310 = arith.constant 0 : index
    %c0_311 = arith.constant 0 : index
    %638 = vector.load %arg7[%c0_310, %c0_311] : memref<1x128xf32, #tpu.memory_space<vmem>>, vector<1x128xf32>
    %639 = vector.broadcast %637 : vector<8x1xf32> to vector<8x128xf32>
    %640 = vector.broadcast %638 : vector<1x128xf32> to vector<8x128xf32>
    %641 = arith.addf %639, %640 : vector<8x128xf32>
    %c0_312 = arith.constant 0 : index
    %c0_313 = arith.constant 0 : index
    %642 = vector.load %arg8[%c0_312, %c0_313] : memref<8x128xf32, #tpu.memory_space<vmem>>, vector<8x128xf32>
    tpu.vector_store %arg8[%c0_312, %c0_313], %641 {strides = array<i32>} : memref<8x128xf32, #tpu.memory_space<vmem>>, vector<8x128xf32>,
    return
  }
}

</mosaic_0001>

<llo_original>
// kernel: train_all_model_forward.1
$region0: #{train_all_model_forward.1}
  #allocation0 [shape = 'u32[]', space=smem, size = 0x4, offset = 0x4, fixed_abs, tag = 'smem constant byte address 0x4 - core index']
  #allocation1 [shape = 'u32[144,128]{1,0:T(1,128)}', space=vmem, size = 0x12000, scoped, tag = 'internal scratch']
  %s0 = inlined_call_operand.vmem [shape: f32[8,2], index: 0, kind: input, shape index: {}]
  %s1 = inlined_call_operand.hbm [shape: f32[2,128], index: 1, kind: input, shape index: {}]
  %s2 = inlined_call_operand.hbm [shape: bf16[16,128,128], index: 2, kind: input, shape index: {}]
  %s3 = inlined_call_operand.hbm [shape: f32[17,1,128], index: 3, kind: input, shape index: {}]
  %s4 = inlined_call_operand.vmem [shape: f32[17,1,128], index: 4, kind: input, shape index: {}]
  %s5 = inlined_call_operand.hbm [shape: f32[17,1,128], index: 5, kind: input, shape index: {}]
  %s6 = inlined_call_operand.vmem [shape: f32[1,128], index: 6, kind: input, shape index: {}]
  %s7 = inlined_call_operand.vmem [shape: f32[1,128], index: 7, kind: input, shape index: {}]
  %s8 = inlined_call_operand.vmem [shape: f32[8,128], index: 8, kind: output, shape index: {}]
  %s9 = sld [smem:[#allocation0]]
  $region58: #{train_all_model_forward.1} parent=0
    _
  %s11 = ssub.s32 1, %s9
  %s12 = scalar_select 0, %s11, %s9
  $region1: #{train_all_model_forward.1} parent=0
    #allocation2 [shape = 'u8[1024]{0}', space=vmem, size = 0x400, scoped, tag = 'input window, operand 1, single buffered']
    #allocation3 [shape = 's32[1]{0}', space=sflag, size = 0x4, scoped, tag = 'scoped memory for train_all_model_forward.1']
    #allocation4 [shape = 'u8[524288]{0}', space=vmem, size = 0x80000, scoped, tag = 'input window, operand 2, single buffered']
    #allocation5 [shape = 's32[1]{0}', space=sflag, size = 0x4, scoped, tag = 'scoped memory for train_all_model_forward.1']
    #allocation6 [shape = 'u8[8704]{0}', space=vmem, size = 0x2400, scoped, tag = 'input window, operand 3, single buffered']
    #allocation7 [shape = 'u8[8704]{0}', space=vmem, size = 0x2400, scoped, tag = 'input window, operand 5, single buffered']
    #allocation8 [shape = 's32[1]{0}', space=sflag, size = 0x4, scoped, tag = 'scoped memory for train_all_model_forward.1']
    %13 = vsyncpa [#allocation3], 0
    %14 = vsyncpa [#allocation5], 0
    %15 = vsyncpa [#allocation8], 0
    // Predicated region
    $region2: #{train_all_model_forward.1} parent=1 // pred_check
      _
    $region3: #{train_all_model_forward.1} parent=1 // pred_check_branch
      %17 = sbr.rel (0) target = $region5
    $region4: #{train_all_model_forward.1} parent=1 // pred_region
      _
    $region5: #{train_all_model_forward.1} parent=1 // pred_fallthru
      _
    // Predicated region
    $region6: #{train_all_model_forward.1} parent=1 // pred_check
      _
    $region7: #{train_all_model_forward.1} parent=1 // pred_check_branch
      %19 = sbr.rel (0) target = $region9
    $region8: #{train_all_model_forward.1} parent=1 // pred_region
      %s21 = ssub.s32 32, 32
      %22 = vsyncadd [#allocation3], %s21
      %s24 = sshll.u32 [#allocation2], 4
      %s25 = int_to_ptr.vmem [resolvable:$true] %s24
      %27 = dma.hbm_to_vmem [thread:$0]  %s1, 32, %s25, [#allocation3]
    $region9: #{train_all_model_forward.1} parent=1 // pred_fallthru
      _
    // Predicated region
    $region10: #{train_all_model_forward.1} parent=1 // pred_check
      _
    $region11: #{train_all_model_forward.1} parent=1 // pred_check_branch
      %29 = sbr.rel (0) target = $region13
    $region12: #{train_all_model_forward.1} parent=1 // pred_region
      %s31 = ssub.s32 16384, 16384
      %32 = vsyncadd [#allocation5], %s31
      %s33 = sshll.u32 [#allocation4], 4
      %s34 = int_to_ptr.vmem [resolvable:$true] %s33
      %39 = dma.hbm_to_vmem [thread:$0]  %s2, 16384, %s34, [#allocation5], 64, 64, 4
    $region13: #{train_all_model_forward.1} parent=1 // pred_fallthru
      _
    // Predicated region
    $region14: #{train_all_model_forward.1} parent=1 // pred_check
      _
    $region15: #{train_all_model_forward.1} parent=1 // pred_check_branch
      %41 = sbr.rel (0) target = $region17
    $region16: #{train_all_model_forward.1} parent=1 // pred_region
      %s43 = ssub.s32 272, 272
      %44 = vsyncadd [#allocation5], %s43
      %s45 = sshll.u32 [#allocation6], 4
      %s46 = int_to_ptr.vmem [resolvable:$true] %s45
      %51 = dma.hbm_to_vmem [thread:$0]  %s3, 272, %s46, [#allocation5], 16, 16, 1
    $region17: #{train_all_model_forward.1} parent=1 // pred_fallthru
      _
    // Predicated region
    $region18: #{train_all_model_forward.1} parent=1 // pred_check
      _
    $region19: #{train_all_model_forward.1} parent=1 // pred_check_branch
      %53 = sbr.rel (0) target = $region21
    $region20: #{train_all_model_forward.1} parent=1 // pred_region
      _
    $region21: #{train_all_model_forward.1} parent=1 // pred_fallthru
      _
    // Predicated region
    $region22: #{train_all_model_forward.1} parent=1 // pred_check
      _
    $region23: #{train_all_model_forward.1} parent=1 // pred_check_branch
      %55 = sbr.rel (0) target = $region25
    $region24: #{train_all_model_forward.1} parent=1 // pred_region
      %s57 = ssub.s32 272, 272
      %58 = vsyncadd [#allocation8], %s57
      %s59 = sshll.u32 [#allocation7], 4
      %s60 = int_to_ptr.vmem [resolvable:$true] %s59
      %65 = dma.hbm_to_vmem [thread:$0]  %s5, 272, %s60, [#allocation8], 16, 16, 1
    $region25: #{train_all_model_forward.1} parent=1 // pred_fallthru
      _
    // Predicated region
    $region26: #{train_all_model_forward.1} parent=1 // pred_check
      _
    $region27: #{train_all_model_forward.1} parent=1 // pred_check_branch
      %67 = sbr.rel (0) target = $region29
    $region28: #{train_all_model_forward.1} parent=1 // pred_region
      _
    $region29: #{train_all_model_forward.1} parent=1 // pred_fallthru
      _
    // Predicated region
    $region30: #{train_all_model_forward.1} parent=1 // pred_check
      _
    $region31: #{train_all_model_forward.1} parent=1 // pred_check_branch
      %69 = sbr.rel (0) target = $region33
    $region32: #{train_all_model_forward.1} parent=1 // pred_region
      _
    $region33: #{train_all_model_forward.1} parent=1 // pred_fallthru
      _
    // Predicated region
    $region34: #{train_all_model_forward.1} parent=1 // pred_check
      _
    $region35: #{train_all_model_forward.1} parent=1 // pred_check_branch
      %71 = sbr.rel (0) target = $region37
    $region36: #{train_all_model_forward.1} parent=1 // pred_region
      %72 = dma.done [#allocation3], 32
    $region37: #{train_all_model_forward.1} parent=1 // pred_fallthru
      _
    // Predicated region
    $region38: #{train_all_model_forward.1} parent=1 // pred_check
      _
    $region39: #{train_all_model_forward.1} parent=1 // pred_check_branch
      %74 = sbr.rel (0) target = $region41
    $region40: #{train_all_model_forward.1} parent=1 // pred_region
      %75 = dma.done [#allocation5], 16384
    $region41: #{train_all_model_forward.1} parent=1 // pred_fallthru
      _
    // Predicated region
    $region42: #{train_all_model_forward.1} parent=1 // pred_check
      _
    $region43: #{train_all_model_forward.1} parent=1 // pred_check_branch
      %77 = sbr.rel (0) target = $region45
    $region44: #{train_all_model_forward.1} parent=1 // pred_region
      %78 = dma.done [#allocation5], 272
    $region45: #{train_all_model_forward.1} parent=1 // pred_fallthru
      _
    // Predicated region
    $region46: #{train_all_model_forward.1} parent=1 // pred_check
      _
    $region47: #{train_all_model_forward.1} parent=1 // pred_check_branch
      %80 = sbr.rel (0) target = $region49
    $region48: #{train_all_model_forward.1} parent=1 // pred_region
      %81 = dma.done [#allocation8], 272
    $region49: #{train_all_model_forward.1} parent=1 // pred_fallthru
      _
    %v83 = vld [vmem:[%s0] sm:$0xff]
    %v84 = vld [vmem:[#allocation2] sm:$0x1]
    %86 = vset.pattern.permute.xlu0 0
    %87 = vperm.xlu0 %86, %v83
    %v88 = vpop.permute.xlu0 %87
    %v90 = vlaneseq
    %v91 = vshrl.u32 %v90, 7
    %v92 = vsub.s32 0, %v91
    %v93 = vrot.slane %v84, %v92
    %v94 = vmul.f32 %v88, %v93
    %v95 = vld [vmem:[#allocation2 + $0x1] sm:$0x1]
    %96 = vset.pattern.permute.xlu0 1
    %97 = vperm.xlu0 %96, %v83
    %v98 = vpop.permute.xlu0 %97
    %v100 = vlaneseq
    %v101 = vshrl.u32 %v100, 7
    %v102 = vsub.s32 0, %v101
    %v103 = vrot.slane %v95, %v102
    %v104 = vmul.f32 %v98, %v103
    %v105 = vadd.f32 %v94, %v104
    %v106 = vld [vmem:[#allocation6] sm:$0x1]
    %v108 = vlaneseq
    %v109 = vshrl.u32 %v108, 7
    %v110 = vsub.s32 0, %v109
    %v111 = vrot.slane %v106, %v110
    %v113 = vadd.f32 %v105, %v111
    %v114 = vtanh.pop %v113
    %v115 = vrot.slane %v114, 4
    %v116 = vadd.f32 %v114, %v115
    %v117 = vrot.slane %v116, 2
    %v118 = vadd.f32 %v116, %v117
    %v119 = vrot.slane %v118, 1
    %v120 = vadd.f32 %v118, %v119
    %v121 = vrcp.pop 8.0
    %v122 = vmul.f32 %v120, %v121
    %v123 = vmul.f32 %v114, %v114
    %v124 = vrot.slane %v123, 4
    %v125 = vadd.f32 %v123, %v124
    %v126 = vrot.slane %v125, 2
    %v127 = vadd.f32 %v125, %v126
    %v128 = vrot.slane %v127, 1
    %v129 = vadd.f32 %v127, %v128
    %v130 = vmul.f32 %v129, %v121
    %v131 = vmul.f32 %v122, %v122
    %v132 = vsub.f32 %v130, %v131
    %v133 = vmax.f32 %v132, 0.0
    %v134 = vadd.f32 %v133, 1e-05
    %v135 = vrsqrt.pop %v134
    %v136 = vld [vmem:[%s4] sm:$0x1]
    %v137 = vmul.f32 %v136, %v135
    %v138 = vld [vmem:[#allocation7] sm:$0x1]
    %v139 = vmul.f32 %v122, %v137
    %v140 = vsub.f32 %v138, %v139
    %v142 = vlaneseq
    %v143 = vshrl.u32 %v142, 7
    %v144 = vsub.s32 0, %v143
    %v145 = vrot.slane %v137, %v144
    %v147 = vmul.f32 %v114, %v145
    %v149 = vlaneseq
    %v150 = vshrl.u32 %v149, 7
    %v151 = vsub.s32 0, %v150
    %v152 = vrot.slane %v140, %v151
    %v154 = vadd.f32 %v147, %v152
    %v155 = vpack.c.bf16 %v154, %v154
    %v156 = vld [vmem:[#allocation4] sm:$0xf]
    %v157 = vld [vmem:[#allocation4 + $0x4] sm:$0xf]
    %v158 = vld [vmem:[#allocation4 + $0x8] sm:$0xf]
    %v159 = vld [vmem:[#allocation4 + $0xc] sm:$0xf]
    %s160 = scalar_lea.vmem [#allocation6], 1
    %v161 = vld [vmem:[%s160] sm:$0x1]
    %v163 = vlaneseq
    %v164 = vshrl.u32 %v163, 7
    %v165 = vsub.s32 0, %v164
    %v166 = vrot.slane %v161, %v165
    %v172 = vunpack.c.l.b16 %v156
    %v173 = vunpack.c.l.b16 %v157
    %v174 = vunpack.c.l.b16 %v158
    %v175 = vunpack.c.l.b16 %v159
    %v176 = vpack.c.b16 %v173, %v172
    %v177 = vpack.c.b16 %v175, %v174
    %vm180 = vcmask 261120
    %v182 = vsel %vm180, %v155, 0
    %184 = vmatprep.subr.bf16.mxu0 0
    %185 = vmatpush1.bf16.msra.mxu0 0
    %186 = vmatprep.subr.bf16.mxu0 0
    %187 = vmatpush1.bf16.msra.mxu0 0
    %188 = vmatprep.subr.bf16.mxu0 0
    %189 = vmatpush1.bf16.msra.mxu0 0
    %190 = vmatprep.subr.bf16.mxu0 0
    %191 = vmatpush1.bf16.msra.mxu0 0
    %192 = vmatprep.subr.bf16.mxu0 0
    %193 = vmatpush1.bf16.msra.mxu0 0
    %194 = vmatprep.subr.bf16.mxu0 0
    %195 = vmatpush1.bf16.msra.mxu0 0
    %196 = vmatprep.subr.bf16.mxu0 0
    %197 = vmatpush1.bf16.msra.mxu0 %v177
    %198 = vmatprep.subr.bf16.mxu0 0
    %199 = vmatpush1.bf16.msra.mxu0 %v176
    %200 = vmatprep.subr.bf16.mxu0 0
    %201 = vmatpush2.bf16.msra.mxu0 0
    %202 = vmatprep.subr.bf16.mxu0 0
    %203 = vmatpush2.bf16.msra.mxu0 0
    %204 = vmatprep.subr.bf16.mxu0 0
    %205 = vmatpush2.bf16.msra.mxu0 0
    %206 = vmatprep.subr.bf16.mxu0 0
    %207 = vmatpush2.bf16.msra.mxu0 0
    %208 = vmatprep.subr.bf16.mxu0 0
    %209 = vmatpush2.bf16.msra.mxu0 0
    %210 = vmatprep.subr.bf16.mxu0 0
    %211 = vmatpush2.bf16.msra.mxu0 0
    %212 = vmatprep.subr.bf16.mxu0 0
    %213 = vmatpush2.bf16.msra.mxu0 0
    %214 = vmatprep.subr.bf16.mxu0 0
    %215 = vmatpush2.bf16.msra.mxu0 0
    %216 = vmatprep.mubr.bf16.mxu0 0
    %217 = vmatmul.mubr.bf16.gmra.mxu0 %v182
    %v218 = vpop.f32.mrf.mxu0
    %v219 = vadd.f32 %v166, %v218
    %v220 = vpop.f32.mrf.mxu0
    %v221 = vpop.f32.mrf.mxu0
    %v222 = vpop.f32.mrf.mxu0
    %223 = vdwg.mxu0
    %v224 = vtanh.pop %v219
    %v225 = vrot.slane %v224, 4
    %v226 = vadd.f32 %v224, %v225
    %v227 = vrot.slane %v226, 2
    %v228 = vadd.f32 %v226, %v227
    %v229 = vrot.slane %v228, 1
    %v230 = vadd.f32 %v228, %v229
    %v231 = vmul.f32 %v230, %v121
    %v232 = vmul.f32 %v224, %v224
    %v233 = vrot.slane %v232, 4
    %v234 = vadd.f32 %v232, %v233
    %v235 = vrot.slane %v234, 2
    %v236 = vadd.f32 %v234, %v235
    %v237 = vrot.slane %v236, 1
    %v238 = vadd.f32 %v236, %v237
    %v239 = vmul.f32 %v238, %v121
    %v240 = vmul.f32 %v231, %v231
    %v241 = vsub.f32 %v239, %v240
    %v242 = vmax.f32 %v241, 0.0
    %v243 = vadd.f32 %v242, 1e-05
    %v244 = vrsqrt.pop %v243
    %s245 = scalar_lea.vmem %s4, 1
    %v246 = vld [vmem:[%s245] sm:$0x1]
    %v247 = vmul.f32 %v246, %v244
    %s248 = scalar_lea.vmem [#allocation7], 1
    %v249 = vld [vmem:[%s248] sm:$0x1]
    %v250 = vmul.f32 %v231, %v247
    %v251 = vsub.f32 %v249, %v250
    %v253 = vlaneseq
    %v254 = vshrl.u32 %v253, 7
    %v255 = vsub.s32 0, %v254
    %v256 = vrot.slane %v247, %v255
    %v258 = vmul.f32 %v224, %v256
    %v260 = vlaneseq
    %v261 = vshrl.u32 %v260, 7
    %v262 = vsub.s32 0, %v261
    %v263 = vrot.slane %v251, %v262
    %v265 = vadd.f32 %v258, %v263
    %v266 = vpack.c.bf16 %v265, %v265
    %s267 = scalar_lea.vmem [#allocation4], 64
    %v268 = vld [vmem:[%s267] sm:$0xf]
    %v269 = vld [vmem:[%s267 + $0x4] sm:$0xf]
    %v270 = vld [vmem:[%s267 + $0x8] sm:$0xf]
    %v271 = vld [vmem:[%s267 + $0xc] sm:$0xf]
    %v272 = vld [vmem:[%s267 + $0x10] sm:$0xf]
    %v273 = vld [vmem:[%s267 + $0x14] sm:$0xf]
    %v274 = vld [vmem:[%s267 + $0x18] sm:$0xf]
    %v275 = vld [vmem:[%s267 + $0x1c] sm:$0xf]
    %s276 = scalar_lea.vmem [#allocation6], 2
    %v277 = vld [vmem:[%s276] sm:$0x1]
    %v279 = vlaneseq
    %v280 = vshrl.u32 %v279, 7
    %v281 = vsub.s32 0, %v280
    %v282 = vrot.slane %v277, %v281
    %v292 = vunpack.c.l.b16 %v268
    %v293 = vunpack.c.l.b16 %v269
    %v294 = vunpack.c.l.b16 %v270
    %v295 = vunpack.c.l.b16 %v271
    %v296 = vunpack.c.l.b16 %v272
    %v297 = vunpack.c.l.b16 %v273
    %v298 = vunpack.c.l.b16 %v274
    %v299 = vunpack.c.l.b16 %v275
    %v300 = vpack.c.b16 %v293, %v292
    %v301 = vpack.c.b16 %v295, %v294
    %v302 = vpack.c.b16 %v297, %v296
    %v303 = vpack.c.b16 %v299, %v298
    %vm308 = vcmask 523264
    %v310 = vsel %vm308, %v266, 0
    %312 = vmatprep.subr.bf16.mxu0 0
    %313 = vmatpush1.bf16.msra.mxu0 0
    %314 = vmatprep.subr.bf16.mxu0 0
    %315 = vmatpush1.bf16.msra.mxu0 0
    %316 = vmatprep.subr.bf16.mxu0 0
    %317 = vmatpush1.bf16.msra.mxu0 0
    %318 = vmatprep.subr.bf16.mxu0 0
    %319 = vmatpush1.bf16.msra.mxu0 0
    %320 = vmatprep.subr.bf16.mxu0 0
    %321 = vmatpush1.bf16.msra.mxu0 %v303
    %322 = vmatprep.subr.bf16.mxu0 0
    %323 = vmatpush1.bf16.msra.mxu0 %v302
    %324 = vmatprep.subr.bf16.mxu0 0
    %325 = vmatpush1.bf16.msra.mxu0 %v301
    %326 = vmatprep.subr.bf16.mxu0 0
    %327 = vmatpush1.bf16.msra.mxu0 %v300
    %328 = vmatprep.subr.bf16.mxu0 0
    %329 = vmatpush2.bf16.msra.mxu0 0
    %330 = vmatprep.subr.bf16.mxu0 0
    %331 = vmatpush2.bf16.msra.mxu0 0
    %332 = vmatprep.subr.bf16.mxu0 0
    %333 = vmatpush2.bf16.msra.mxu0 0
    %334 = vmatprep.subr.bf16.mxu0 0
    %335 = vmatpush2.bf16.msra.mxu0 0
    %336 = vmatprep.subr.bf16.mxu0 0
    %337 = vmatpush2.bf16.msra.mxu0 0
    %338 = vmatprep.subr.bf16.mxu0 0
    %339 = vmatpush2.bf16.msra.mxu0 0
    %340 = vmatprep.subr.bf16.mxu0 0
    %341 = vmatpush2.bf16.msra.mxu0 0
    %342 = vmatprep.subr.bf16.mxu0 0
    %343 = vmatpush2.bf16.msra.mxu0 0
    %344 = vmatprep.mubr.bf16.mxu0 0
    %345 = vmatmul.mubr.bf16.gmra.mxu0 %v310
    %v346 = vpop.f32.mrf.mxu0
    %v347 = vadd.f32 %v282, %v346
    %v348 = vpop.f32.mrf.mxu0
    %v349 = vpop.f32.mrf.mxu0
    %v350 = vpop.f32.mrf.mxu0
    %351 = vdwg.mxu0
    %v352 = vtanh.pop %v347
    %v353 = vrot.slane %v352, 4
    %v354 = vadd.f32 %v352, %v353
    %v355 = vrot.slane %v354, 2
    %v356 = vadd.f32 %v354, %v355
    %v357 = vrot.slane %v356, 1
    %v358 = vadd.f32 %v356, %v357
    %v359 = vmul.f32 %v358, %v121
    %v360 = vmul.f32 %v352, %v352
    %v361 = vrot.slane %v360, 4
    %v362 = vadd.f32 %v360, %v361
    %v363 = vrot.slane %v362, 2
    %v364 = vadd.f32 %v362, %v363
    %v365 = vrot.slane %v364, 1
    %v366 = vadd.f32 %v364, %v365
    %v367 = vmul.f32 %v366, %v121
    %v368 = vmul.f32 %v359, %v359
    %v369 = vsub.f32 %v367, %v368
    %v370 = vmax.f32 %v369, 0.0
    %v371 = vadd.f32 %v370, 1e-05
    %v372 = vrsqrt.pop %v371
    %s373 = scalar_lea.vmem %s4, 2
    %v374 = vld [vmem:[%s373] sm:$0x1]
    %v375 = vmul.f32 %v374, %v372
    %s376 = scalar_lea.vmem [#allocation7], 2
    %v377 = vld [vmem:[%s376] sm:$0x1]
    %v378 = vmul.f32 %v359, %v375
    %v379 = vsub.f32 %v377, %v378
    %v381 = vlaneseq
    %v382 = vshrl.u32 %v381, 7
    %v383 = vsub.s32 0, %v382
    %v384 = vrot.slane %v375, %v383
    %v386 = vmul.f32 %v352, %v384
    %v388 = vlaneseq
    %v389 = vshrl.u32 %v388, 7
    %v390 = vsub.s32 0, %v389
    %v391 = vrot.slane %v379, %v390
    %v393 = vadd.f32 %v386, %v391
    %v394 = vpack.c.bf16 %v393, %v393
    %s395 = scalar_lea.vmem [#allocation4], 128
    %v396 = vld [vmem:[%s395] sm:$0xf]
    %v397 = vld [vmem:[%s395 + $0x4] sm:$0xf]
    %v398 = vld [vmem:[%s395 + $0x8] sm:$0xf]
    %v399 = vld [vmem:[%s395 + $0xc] sm:$0xf]
    %v400 = vld [vmem:[%s395 + $0x10] sm:$0xf]
    %v401 = vld [vmem:[%s395 + $0x14] sm:$0xf]
    %v402 = vld [vmem:[%s395 + $0x18] sm:$0xf]
    %v403 = vld [vmem:[%s395 + $0x1c] sm:$0xf]
    %v404 = vld [vmem:[%s395 + $0x20] sm:$0xf]
    %v405 = vld [vmem:[%s395 + $0x24] sm:$0xf]
    %v406 = vld [vmem:[%s395 + $0x28] sm:$0xf]
    %v407 = vld [vmem:[%s395 + $0x2c] sm:$0xf]
    %v408 = vld [vmem:[%s395 + $0x30] sm:$0xf]
    %v409 = vld [vmem:[%s395 + $0x34] sm:$0xf]
    %v410 = vld [vmem:[%s395 + $0x38] sm:$0xf]
    %v411 = vld [vmem:[%s395 + $0x3c] sm:$0xf]
    %s412 = scalar_lea.vmem [#allocation6], 3
    %v413 = vld [vmem:[%s412] sm:$0x1]
    %v415 = vlaneseq
    %v416 = vshrl.u32 %v415, 7
    %v417 = vsub.s32 0, %v416
    %v418 = vrot.slane %v413, %v417
    %v436 = vunpack.c.l.b16 %v396
    %v437 = vunpack.c.l.b16 %v397
    %v438 = vunpack.c.l.b16 %v398
    %v439 = vunpack.c.l.b16 %v399
    %v440 = vunpack.c.l.b16 %v400
    %v441 = vunpack.c.l.b16 %v401
    %v442 = vunpack.c.l.b16 %v402
    %v443 = vunpack.c.l.b16 %v403
    %v444 = vunpack.c.l.b16 %v404
    %v445 = vunpack.c.l.b16 %v405
    %v446 = vunpack.c.l.b16 %v406
    %v447 = vunpack.c.l.b16 %v407
    %v448 = vunpack.c.l.b16 %v408
    %v449 = vunpack.c.l.b16 %v409
    %v450 = vunpack.c.l.b16 %v410
    %v451 = vunpack.c.l.b16 %v411
    %v452 = vpack.c.b16 %v437, %v436
    %v453 = vpack.c.b16 %v439, %v438
    %v454 = vpack.c.b16 %v441, %v440
    %v455 = vpack.c.b16 %v443, %v442
    %v456 = vpack.c.b16 %v445, %v444
    %v457 = vpack.c.b16 %v447, %v446
    %v458 = vpack.c.b16 %v449, %v448
    %v459 = vpack.c.b16 %v451, %v450
    %468 = vmatprep.subr.bf16.mxu0 0
    %469 = vmatpush1.bf16.msra.mxu0 %v459
    %470 = vmatprep.subr.bf16.mxu0 0
    %471 = vmatpush1.bf16.msra.mxu0 %v458
    %472 = vmatprep.subr.bf16.mxu0 0
    %473 = vmatpush1.bf16.msra.mxu0 %v457
    %474 = vmatprep.subr.bf16.mxu0 0
    %475 = vmatpush1.bf16.msra.mxu0 %v456
    %476 = vmatprep.subr.bf16.mxu0 0
    %477 = vmatpush1.bf16.msra.mxu0 %v455
    %478 = vmatprep.subr.bf16.mxu0 0
    %479 = vmatpush1.bf16.msra.mxu0 %v454
    %480 = vmatprep.subr.bf16.mxu0 0
    %481 = vmatpush1.bf16.msra.mxu0 %v453
    %482 = vmatprep.subr.bf16.mxu0 0
    %483 = vmatpush1.bf16.msra.mxu0 %v452
    %484 = vmatprep.subr.bf16.mxu0 0
    %485 = vmatpush2.bf16.msra.mxu0 0
    %486 = vmatprep.subr.bf16.mxu0 0
    %487 = vmatpush2.bf16.msra.mxu0 0
    %488 = vmatprep.subr.bf16.mxu0 0
    %489 = vmatpush2.bf16.msra.mxu0 0
    %490 = vmatprep.subr.bf16.mxu0 0
    %491 = vmatpush2.bf16.msra.mxu0 0
    %492 = vmatprep.subr.bf16.mxu0 0
    %493 = vmatpush2.bf16.msra.mxu0 0
    %494 = vmatprep.subr.bf16.mxu0 0
    %495 = vmatpush2.bf16.msra.mxu0 0
    %496 = vmatprep.subr.bf16.mxu0 0
    %497 = vmatpush2.bf16.msra.mxu0 0
    %498 = vmatprep.subr.bf16.mxu0 0
    %499 = vmatpush2.bf16.msra.mxu0 0
    %500 = vmatprep.mubr.bf16.mxu0 0
    %501 = vmatmul.mubr.bf16.gmra.mxu0 %v394
    %v502 = vpop.f32.mrf.mxu0
    %v503 = vadd.f32 %v418, %v502
    %v504 = vpop.f32.mrf.mxu0
    %v505 = vpop.f32.mrf.mxu0
    %v506 = vpop.f32.mrf.mxu0
    %507 = vdwg.mxu0
    %v508 = vtanh.pop %v503
    %v509 = vrot.slane %v508, 4
    %v510 = vadd.f32 %v508, %v509
    %v511 = vrot.slane %v510, 2
    %v512 = vadd.f32 %v510, %v511
    %v513 = vrot.slane %v512, 1
    %v514 = vadd.f32 %v512, %v513
    %v515 = vmul.f32 %v514, %v121
    %v516 = vmul.f32 %v508, %v508
    %v517 = vrot.slane %v516, 4
    %v518 = vadd.f32 %v516, %v517
    %v519 = vrot.slane %v518, 2
    %v520 = vadd.f32 %v518, %v519
    %v521 = vrot.slane %v520, 1
    %v522 = vadd.f32 %v520, %v521
    %v523 = vmul.f32 %v522, %v121
    %v524 = vmul.f32 %v515, %v515
    %v525 = vsub.f32 %v523, %v524
    %v526 = vmax.f32 %v525, 0.0
    %v527 = vadd.f32 %v526, 1e-05
    %v528 = vrsqrt.pop %v527
    %s529 = scalar_lea.vmem %s4, 3
    %v530 = vld [vmem:[%s529] sm:$0x1]
    %v531 = vmul.f32 %v530, %v528
    %s532 = scalar_lea.vmem [#allocation7], 3
    %v533 = vld [vmem:[%s532] sm:$0x1]
    %v534 = vmul.f32 %v515, %v531
    %v535 = vsub.f32 %v533, %v534
    %v537 = vlaneseq
    %v538 = vshrl.u32 %v537, 7
    %v539 = vsub.s32 0, %v538
    %v540 = vrot.slane %v531, %v539
    %v542 = vmul.f32 %v508, %v540
    %v544 = vlaneseq
    %v545 = vshrl.u32 %v544, 7
    %v546 = vsub.s32 0, %v545
    %v547 = vrot.slane %v535, %v546
    %v549 = vadd.f32 %v542, %v547
    %v550 = vpack.c.bf16 %v549, %v549
    %s551 = scalar_lea.vmem [#allocation4], 192
    %v552 = vld [vmem:[%s551] sm:$0xf]
    %v553 = vld [vmem:[%s551 + $0x4] sm:$0xf]
    %v554 = vld [vmem:[%s551 + $0x8] sm:$0xf]
    %v555 = vld [vmem:[%s551 + $0xc] sm:$0xf]
    %v556 = vld [vmem:[%s551 + $0x10] sm:$0xf]
    %v557 = vld [vmem:[%s551 + $0x14] sm:$0xf]
    %v558 = vld [vmem:[%s551 + $0x18] sm:$0xf]
    %v559 = vld [vmem:[%s551 + $0x1c] sm:$0xf]
    %s560 = scalar_lea.vmem [#allocation6], 4
    %v561 = vld [vmem:[%s560] sm:$0x1]
    %v563 = vlaneseq
    %v564 = vshrl.u32 %v563, 7
    %v565 = vsub.s32 0, %v564
    %v566 = vrot.slane %v561, %v565
    %v576 = vunpack.c.l.b16 %v552
    %v577 = vunpack.c.l.b16 %v553
    %v578 = vunpack.c.l.b16 %v554
    %v579 = vunpack.c.l.b16 %v555
    %v580 = vunpack.c.l.b16 %v556
    %v581 = vunpack.c.l.b16 %v557
    %v582 = vunpack.c.l.b16 %v558
    %v583 = vunpack.c.l.b16 %v559
    %v584 = vpack.c.b16 %v577, %v576
    %v585 = vpack.c.b16 %v579, %v578
    %v586 = vpack.c.b16 %v581, %v580
    %v587 = vpack.c.b16 %v583, %v582
    %v593 = vsel %vm308, %v550, 0
    %595 = vmatprep.subr.bf16.mxu0 0
    %596 = vmatpush1.bf16.msra.mxu0 0
    %597 = vmatprep.subr.bf16.mxu0 0
    %598 = vmatpush1.bf16.msra.mxu0 0
    %599 = vmatprep.subr.bf16.mxu0 0
    %600 = vmatpush1.bf16.msra.mxu0 0
    %601 = vmatprep.subr.bf16.mxu0 0
    %602 = vmatpush1.bf16.msra.mxu0 0
    %603 = vmatprep.subr.bf16.mxu0 0
    %604 = vmatpush1.bf16.msra.mxu0 %v587
    %605 = vmatprep.subr.bf16.mxu0 0
    %606 = vmatpush1.bf16.msra.mxu0 %v586
    %607 = vmatprep.subr.bf16.mxu0 0
    %608 = vmatpush1.bf16.msra.mxu0 %v585
    %609 = vmatprep.subr.bf16.mxu0 0
    %610 = vmatpush1.bf16.msra.mxu0 %v584
    %611 = vmatprep.subr.bf16.mxu0 0
    %612 = vmatpush2.bf16.msra.mxu0 0
    %613 = vmatprep.subr.bf16.mxu0 0
    %614 = vmatpush2.bf16.msra.mxu0 0
    %615 = vmatprep.subr.bf16.mxu0 0
    %616 = vmatpush2.bf16.msra.mxu0 0
    %617 = vmatprep.subr.bf16.mxu0 0
    %618 = vmatpush2.bf16.msra.mxu0 0
    %619 = vmatprep.subr.bf16.mxu0 0
    %620 = vmatpush2.bf16.msra.mxu0 0
    %621 = vmatprep.subr.bf16.mxu0 0
    %622 = vmatpush2.bf16.msra.mxu0 0
    %623 = vmatprep.subr.bf16.mxu0 0
    %624 = vmatpush2.bf16.msra.mxu0 0
    %625 = vmatprep.subr.bf16.mxu0 0
    %626 = vmatpush2.bf16.msra.mxu0 0
    %627 = vmatprep.mubr.bf16.mxu0 0
    %628 = vmatmul.mubr.bf16.gmra.mxu0 %v593
    %v629 = vpop.f32.mrf.mxu0
    %v630 = vadd.f32 %v566, %v629
    %v631 = vpop.f32.mrf.mxu0
    %v632 = vpop.f32.mrf.mxu0
    %v633 = vpop.f32.mrf.mxu0
    %634 = vdwg.mxu0
    %v635 = vtanh.pop %v630
    %v636 = vrot.slane %v635, 4
    %v637 = vadd.f32 %v635, %v636
    %v638 = vrot.slane %v637, 2
    %v639 = vadd.f32 %v637, %v638
    %v640 = vrot.slane %v639, 1
    %v641 = vadd.f32 %v639, %v640
    %v642 = vmul.f32 %v641, %v121
    %v643 = vmul.f32 %v635, %v635
    %v644 = vrot.slane %v643, 4
    %v645 = vadd.f32 %v643, %v644
    %v646 = vrot.slane %v645, 2
    %v647 = vadd.f32 %v645, %v646
    %v648 = vrot.slane %v647, 1
    %v649 = vadd.f32 %v647, %v648
    %v650 = vmul.f32 %v649, %v121
    %v651 = vmul.f32 %v642, %v642
    %v652 = vsub.f32 %v650, %v651
    %v653 = vmax.f32 %v652, 0.0
    %v654 = vadd.f32 %v653, 1e-05
    %v655 = vrsqrt.pop %v654
    %s656 = scalar_lea.vmem %s4, 4
    %v657 = vld [vmem:[%s656] sm:$0x1]
    %v658 = vmul.f32 %v657, %v655
    %s659 = scalar_lea.vmem [#allocation7], 4
    %v660 = vld [vmem:[%s659] sm:$0x1]
    %v661 = vmul.f32 %v642, %v658
    %v662 = vsub.f32 %v660, %v661
    %v664 = vlaneseq
    %v665 = vshrl.u32 %v664, 7
    %v666 = vsub.s32 0, %v665
    %v667 = vrot.slane %v658, %v666
    %v669 = vmul.f32 %v635, %v667
    %v671 = vlaneseq
    %v672 = vshrl.u32 %v671, 7
    %v673 = vsub.s32 0, %v672
    %v674 = vrot.slane %v662, %v673
    %v676 = vadd.f32 %v669, %v674
    %v677 = vpack.c.bf16 %v676, %v676
    %s678 = scalar_lea.vmem [#allocation4], 256
    %v679 = vld [vmem:[%s678] sm:$0xf]
    %v680 = vld [vmem:[%s678 + $0x4] sm:$0xf]
    %v681 = vld [vmem:[%s678 + $0x8] sm:$0xf]
    %v682 = vld [vmem:[%s678 + $0xc] sm:$0xf]
    %s683 = scalar_lea.vmem [#allocation6], 5
    %v684 = vld [vmem:[%s683] sm:$0x1]
    %v686 = vlaneseq
    %v687 = vshrl.u32 %v686, 7
    %v688 = vsub.s32 0, %v687
    %v689 = vrot.slane %v684, %v688
    %v695 = vunpack.c.l.b16 %v679
    %v696 = vunpack.c.l.b16 %v680
    %v697 = vunpack.c.l.b16 %v681
    %v698 = vunpack.c.l.b16 %v682
    %v699 = vpack.c.b16 %v696, %v695
    %v700 = vpack.c.b16 %v698, %v697
    %v704 = vsel %vm180, %v677, 0
    %706 = vmatprep.subr.bf16.mxu0 0
    %707 = vmatpush1.bf16.msra.mxu0 0
    %708 = vmatprep.subr.bf16.mxu0 0
    %709 = vmatpush1.bf16.msra.mxu0 0
    %710 = vmatprep.subr.bf16.mxu0 0
    %711 = vmatpush1.bf16.msra.mxu0 0
    %712 = vmatprep.subr.bf16.mxu0 0
    %713 = vmatpush1.bf16.msra.mxu0 0
    %714 = vmatprep.subr.bf16.mxu0 0
    %715 = vmatpush1.bf16.msra.mxu0 0
    %716 = vmatprep.subr.bf16.mxu0 0
    %717 = vmatpush1.bf16.msra.mxu0 0
    %718 = vmatprep.subr.bf16.mxu0 0
    %719 = vmatpush1.bf16.msra.mxu0 %v700
    %720 = vmatprep.subr.bf16.mxu0 0
    %721 = vmatpush1.bf16.msra.mxu0 %v699
    %722 = vmatprep.subr.bf16.mxu0 0
    %723 = vmatpush2.bf16.msra.mxu0 0
    %724 = vmatprep.subr.bf16.mxu0 0
    %725 = vmatpush2.bf16.msra.mxu0 0
    %726 = vmatprep.subr.bf16.mxu0 0
    %727 = vmatpush2.bf16.msra.mxu0 0
    %728 = vmatprep.subr.bf16.mxu0 0
    %729 = vmatpush2.bf16.msra.mxu0 0
    %730 = vmatprep.subr.bf16.mxu0 0
    %731 = vmatpush2.bf16.msra.mxu0 0
    %732 = vmatprep.subr.bf16.mxu0 0
    %733 = vmatpush2.bf16.msra.mxu0 0
    %734 = vmatprep.subr.bf16.mxu0 0
    %735 = vmatpush2.bf16.msra.mxu0 0
    %736 = vmatprep.subr.bf16.mxu0 0
    %737 = vmatpush2.bf16.msra.mxu0 0
    %738 = vmatprep.mubr.bf16.mxu0 0
    %739 = vmatmul.mubr.bf16.gmra.mxu0 %v704
    %v740 = vpop.f32.mrf.mxu0
    %v741 = vadd.f32 %v689, %v740
    %v742 = vpop.f32.mrf.mxu0
    %v743 = vpop.f32.mrf.mxu0
    %v744 = vpop.f32.mrf.mxu0
    %745 = vdwg.mxu0
    %v746 = vtanh.pop %v741
    %v747 = vrot.slane %v746, 4
    %v748 = vadd.f32 %v746, %v747
    %v749 = vrot.slane %v748, 2
    %v750 = vadd.f32 %v748, %v749
    %v751 = vrot.slane %v750, 1
    %v752 = vadd.f32 %v750, %v751
    %v753 = vmul.f32 %v752, %v121
    %v754 = vmul.f32 %v746, %v746
    %v755 = vrot.slane %v754, 4
    %v756 = vadd.f32 %v754, %v755
    %v757 = vrot.slane %v756, 2
    %v758 = vadd.f32 %v756, %v757
    %v759 = vrot.slane %v758, 1
    %v760 = vadd.f32 %v758, %v759
    %v761 = vmul.f32 %v760, %v121
    %v762 = vmul.f32 %v753, %v753
    %v763 = vsub.f32 %v761, %v762
    %v764 = vmax.f32 %v763, 0.0
    %v765 = vadd.f32 %v764, 1e-05
    %v766 = vrsqrt.pop %v765
    %s767 = scalar_lea.vmem %s4, 5
    %v768 = vld [vmem:[%s767] sm:$0x1]
    %v769 = vmul.f32 %v768, %v766
    %s770 = scalar_lea.vmem [#allocation7], 5
    %v771 = vld [vmem:[%s770] sm:$0x1]
    %v772 = vmul.f32 %v753, %v769
    %v773 = vsub.f32 %v771, %v772
    %v775 = vlaneseq
    %v776 = vshrl.u32 %v775, 7
    %v777 = vsub.s32 0, %v776
    %v778 = vrot.slane %v769, %v777
    %v780 = vmul.f32 %v746, %v778
    %v782 = vlaneseq
    %v783 = vshrl.u32 %v782, 7
    %v784 = vsub.s32 0, %v783
    %v785 = vrot.slane %v773, %v784
    %v787 = vadd.f32 %v780, %v785
    %v788 = vpack.c.bf16 %v787, %v787
    %s789 = scalar_lea.vmem [#allocation4], 320
    %v790 = vld [vmem:[%s789] sm:$0xf]
    %v791 = vld [vmem:[%s789 + $0x4] sm:$0xf]
    %v792 = vld [vmem:[%s789 + $0x8] sm:$0xf]
    %v793 = vld [vmem:[%s789 + $0xc] sm:$0xf]
    %v794 = vld [vmem:[%s789 + $0x10] sm:$0xf]
    %v795 = vld [vmem:[%s789 + $0x14] sm:$0xf]
    %v796 = vld [vmem:[%s789 + $0x18] sm:$0xf]
    %v797 = vld [vmem:[%s789 + $0x1c] sm:$0xf]
    %s798 = scalar_lea.vmem [#allocation6], 6
    %v799 = vld [vmem:[%s798] sm:$0x1]
    %v801 = vlaneseq
    %v802 = vshrl.u32 %v801, 7
    %v803 = vsub.s32 0, %v802
    %v804 = vrot.slane %v799, %v803
    %v814 = vunpack.c.l.b16 %v790
    %v815 = vunpack.c.l.b16 %v791
    %v816 = vunpack.c.l.b16 %v792
    %v817 = vunpack.c.l.b16 %v793
    %v818 = vunpack.c.l.b16 %v794
    %v819 = vunpack.c.l.b16 %v795
    %v820 = vunpack.c.l.b16 %v796
    %v821 = vunpack.c.l.b16 %v797
    %v822 = vpack.c.b16 %v815, %v814
    %v823 = vpack.c.b16 %v817, %v816
    %v824 = vpack.c.b16 %v819, %v818
    %v825 = vpack.c.b16 %v821, %v820
    %v831 = vsel %vm308, %v788, 0
    %833 = vmatprep.subr.bf16.mxu0 0
    %834 = vmatpush1.bf16.msra.mxu0 0
    %835 = vmatprep.subr.bf16.mxu0 0
    %836 = vmatpush1.bf16.msra.mxu0 0
    %837 = vmatprep.subr.bf16.mxu0 0
    %838 = vmatpush1.bf16.msra.mxu0 0
    %839 = vmatprep.subr.bf16.mxu0 0
    %840 = vmatpush1.bf16.msra.mxu0 0
    %841 = vmatprep.subr.bf16.mxu0 0
    %842 = vmatpush1.bf16.msra.mxu0 %v825
    %843 = vmatprep.subr.bf16.mxu0 0
    %844 = vmatpush1.bf16.msra.mxu0 %v824
    %845 = vmatprep.subr.bf16.mxu0 0
    %846 = vmatpush1.bf16.msra.mxu0 %v823
    %847 = vmatprep.subr.bf16.mxu0 0
    %848 = vmatpush1.bf16.msra.mxu0 %v822
    %849 = vmatprep.subr.bf16.mxu0 0
    %850 = vmatpush2.bf16.msra.mxu0 0
    %851 = vmatprep.subr.bf16.mxu0 0
    %852 = vmatpush2.bf16.msra.mxu0 0
    %853 = vmatprep.subr.bf16.mxu0 0
    %854 = vmatpush2.bf16.msra.mxu0 0
    %855 = vmatprep.subr.bf16.mxu0 0
    %856 = vmatpush2.bf16.msra.mxu0 0
    %857 = vmatprep.subr.bf16.mxu0 0
    %858 = vmatpush2.bf16.msra.mxu0 0
    %859 = vmatprep.subr.bf16.mxu0 0
    %860 = vmatpush2.bf16.msra.mxu0 0
    %861 = vmatprep.subr.bf16.mxu0 0
    %862 = vmatpush2.bf16.msra.mxu0 0
    %863 = vmatprep.subr.bf16.mxu0 0
    %864 = vmatpush2.bf16.msra.mxu0 0
    %865 = vmatprep.mubr.bf16.mxu0 0
    %866 = vmatmul.mubr.bf16.gmra.mxu0 %v831
    %v867 = vpop.f32.mrf.mxu0
    %v868 = vadd.f32 %v804, %v867
    %v869 = vpop.f32.mrf.mxu0
    %v870 = vpop.f32.mrf.mxu0
    %v871 = vpop.f32.mrf.mxu0
    %872 = vdwg.mxu0
    %v873 = vtanh.pop %v868
    %v874 = vrot.slane %v873, 4
    %v875 = vadd.f32 %v873, %v874
    %v876 = vrot.slane %v875, 2
    %v877 = vadd.f32 %v875, %v876
    %v878 = vrot.slane %v877, 1
    %v879 = vadd.f32 %v877, %v878
    %v880 = vmul.f32 %v879, %v121
    %v881 = vmul.f32 %v873, %v873
    %v882 = vrot.slane %v881, 4
    %v883 = vadd.f32 %v881, %v882
    %v884 = vrot.slane %v883, 2
    %v885 = vadd.f32 %v883, %v884
    %v886 = vrot.slane %v885, 1
    %v887 = vadd.f32 %v885, %v886
    %v888 = vmul.f32 %v887, %v121
    %v889 = vmul.f32 %v880, %v880
    %v890 = vsub.f32 %v888, %v889
    %v891 = vmax.f32 %v890, 0.0
    %v892 = vadd.f32 %v891, 1e-05
    %v893 = vrsqrt.pop %v892
    %s894 = scalar_lea.vmem %s4, 6
    %v895 = vld [vmem:[%s894] sm:$0x1]
    %v896 = vmul.f32 %v895, %v893
    %s897 = scalar_lea.vmem [#allocation7], 6
    %v898 = vld [vmem:[%s897] sm:$0x1]
    %v899 = vmul.f32 %v880, %v896
    %v900 = vsub.f32 %v898, %v899
    %v902 = vlaneseq
    %v903 = vshrl.u32 %v902, 7
    %v904 = vsub.s32 0, %v903
    %v905 = vrot.slane %v896, %v904
    %v907 = vmul.f32 %v873, %v905
    %v909 = vlaneseq
    %v910 = vshrl.u32 %v909, 7
    %v911 = vsub.s32 0, %v910
    %v912 = vrot.slane %v900, %v911
    %v914 = vadd.f32 %v907, %v912
    %v915 = vpack.c.bf16 %v914, %v914
    %s916 = scalar_lea.vmem [#allocation4], 384
    %v917 = vld [vmem:[%s916] sm:$0xf]
    %v918 = vld [vmem:[%s916 + $0x4] sm:$0xf]
    %v919 = vld [vmem:[%s916 + $0x8] sm:$0xf]
    %v920 = vld [vmem:[%s916 + $0xc] sm:$0xf]
    %v921 = vld [vmem:[%s916 + $0x10] sm:$0xf]
    %v922 = vld [vmem:[%s916 + $0x14] sm:$0xf]
    %v923 = vld [vmem:[%s916 + $0x18] sm:$0xf]
    %v924 = vld [vmem:[%s916 + $0x1c] sm:$0xf]
    %v925 = vld [vmem:[%s916 + $0x20] sm:$0xf]
    %v926 = vld [vmem:[%s916 + $0x24] sm:$0xf]
    %v927 = vld [vmem:[%s916 + $0x28] sm:$0xf]
    %v928 = vld [vmem:[%s916 + $0x2c] sm:$0xf]
    %v929 = vld [vmem:[%s916 + $0x30] sm:$0xf]
    %v930 = vld [vmem:[%s916 + $0x34] sm:$0xf]
    %v931 = vld [vmem:[%s916 + $0x38] sm:$0xf]
    %v932 = vld [vmem:[%s916 + $0x3c] sm:$0xf]
    %s933 = scalar_lea.vmem [#allocation6], 7
    %v934 = vld [vmem:[%s933] sm:$0x1]
    %v936 = vlaneseq
    %v937 = vshrl.u32 %v936, 7
    %v938 = vsub.s32 0, %v937
    %v939 = vrot.slane %v934, %v938
    %v957 = vunpack.c.l.b16 %v917
    %v958 = vunpack.c.l.b16 %v918
    %v959 = vunpack.c.l.b16 %v919
    %v960 = vunpack.c.l.b16 %v920
    %v961 = vunpack.c.l.b16 %v921
    %v962 = vunpack.c.l.b16 %v922
    %v963 = vunpack.c.l.b16 %v923
    %v964 = vunpack.c.l.b16 %v924
    %v965 = vunpack.c.l.b16 %v925
    %v966 = vunpack.c.l.b16 %v926
    %v967 = vunpack.c.l.b16 %v927
    %v968 = vunpack.c.l.b16 %v928
    %v969 = vunpack.c.l.b16 %v929
    %v970 = vunpack.c.l.b16 %v930
    %v971 = vunpack.c.l.b16 %v931
    %v972 = vunpack.c.l.b16 %v932
    %v973 = vpack.c.b16 %v958, %v957
    %v974 = vpack.c.b16 %v960, %v959
    %v975 = vpack.c.b16 %v962, %v961
    %v976 = vpack.c.b16 %v964, %v963
    %v977 = vpack.c.b16 %v966, %v965
    %v978 = vpack.c.b16 %v968, %v967
    %v979 = vpack.c.b16 %v970, %v969
    %v980 = vpack.c.b16 %v972, %v971
    %989 = vmatprep.subr.bf16.mxu0 0
    %990 = vmatpush1.bf16.msra.mxu0 %v980
    %991 = vmatprep.subr.bf16.mxu0 0
    %992 = vmatpush1.bf16.msra.mxu0 %v979
    %993 = vmatprep.subr.bf16.mxu0 0
    %994 = vmatpush1.bf16.msra.mxu0 %v978
    %995 = vmatprep.subr.bf16.mxu0 0
    %996 = vmatpush1.bf16.msra.mxu0 %v977
    %997 = vmatprep.subr.bf16.mxu0 0
    %998 = vmatpush1.bf16.msra.mxu0 %v976
    %999 = vmatprep.subr.bf16.mxu0 0
    %1000 = vmatpush1.bf16.msra.mxu0 %v975
    %1001 = vmatprep.subr.bf16.mxu0 0
    %1002 = vmatpush1.bf16.msra.mxu0 %v974
    %1003 = vmatprep.subr.bf16.mxu0 0
    %1004 = vmatpush1.bf16.msra.mxu0 %v973
    %1005 = vmatprep.subr.bf16.mxu0 0
    %1006 = vmatpush2.bf16.msra.mxu0 0
    %1007 = vmatprep.subr.bf16.mxu0 0
    %1008 = vmatpush2.bf16.msra.mxu0 0
    %1009 = vmatprep.subr.bf16.mxu0 0
    %1010 = vmatpush2.bf16.msra.mxu0 0
    %1011 = vmatprep.subr.bf16.mxu0 0
    %1012 = vmatpush2.bf16.msra.mxu0 0
    %1013 = vmatprep.subr.bf16.mxu0 0
    %1014 = vmatpush2.bf16.msra.mxu0 0
    %1015 = vmatprep.subr.bf16.mxu0 0
    %1016 = vmatpush2.bf16.msra.mxu0 0
    %1017 = vmatprep.subr.bf16.mxu0 0
    %1018 = vmatpush2.bf16.msra.mxu0 0
    %1019 = vmatprep.subr.bf16.mxu0 0
    %1020 = vmatpush2.bf16.msra.mxu0 0
    %1021 = vmatprep.mubr.bf16.mxu0 0
    %1022 = vmatmul.mubr.bf16.gmra.mxu0 %v915
    %v1023 = vpop.f32.mrf.mxu0
    %v1024 = vadd.f32 %v939, %v1023
    %v1025 = vpop.f32.mrf.mxu0
    %v1026 = vpop.f32.mrf.mxu0
    %v1027 = vpop.f32.mrf.mxu0
    %1028 = vdwg.mxu0
    %v1029 = vtanh.pop %v1024
    %v1030 = vrot.slane %v1029, 4
    %v1031 = vadd.f32 %v1029, %v1030
    %v1032 = vrot.slane %v1031, 2
    %v1033 = vadd.f32 %v1031, %v1032
    %v1034 = vrot.slane %v1033, 1
    %v1035 = vadd.f32 %v1033, %v1034
    %v1036 = vmul.f32 %v1035, %v121
    %v1037 = vmul.f32 %v1029, %v1029
    %v1038 = vrot.slane %v1037, 4
    %v1039 = vadd.f32 %v1037, %v1038
    %v1040 = vrot.slane %v1039, 2
    %v1041 = vadd.f32 %v1039, %v1040
    %v1042 = vrot.slane %v1041, 1
    %v1043 = vadd.f32 %v1041, %v1042
    %v1044 = vmul.f32 %v1043, %v121
    %v1045 = vmul.f32 %v1036, %v1036
    %v1046 = vsub.f32 %v1044, %v1045
    %v1047 = vmax.f32 %v1046, 0.0
    %v1048 = vadd.f32 %v1047, 1e-05
    %v1049 = vrsqrt.pop %v1048
    %s1050 = scalar_lea.vmem %s4, 7
    %v1051 = vld [vmem:[%s1050] sm:$0x1]
    %v1052 = vmul.f32 %v1051, %v1049
    %s1053 = scalar_lea.vmem [#allocation7], 7
    %v1054 = vld [vmem:[%s1053] sm:$0x1]
    %v1055 = vmul.f32 %v1036, %v1052
    %v1056 = vsub.f32 %v1054, %v1055
    %v1058 = vlaneseq
    %v1059 = vshrl.u32 %v1058, 7
    %v1060 = vsub.s32 0, %v1059
    %v1061 = vrot.slane %v1052, %v1060
    %v1063 = vmul.f32 %v1029, %v1061
    %v1065 = vlaneseq
    %v1066 = vshrl.u32 %v1065, 7
    %v1067 = vsub.s32 0, %v1066
    %v1068 = vrot.slane %v1056, %v1067
    %v1070 = vadd.f32 %v1063, %v1068
    %v1071 = vpack.c.bf16 %v1070, %v1070
    %s1072 = scalar_lea.vmem [#allocation4], 448
    %v1073 = vld [vmem:[%s1072] sm:$0xf]
    %v1074 = vld [vmem:[%s1072 + $0x4] sm:$0xf]
    %v1075 = vld [vmem:[%s1072 + $0x8] sm:$0xf]
    %v1076 = vld [vmem:[%s1072 + $0xc] sm:$0xf]
    %v1077 = vld [vmem:[%s1072 + $0x10] sm:$0xf]
    %v1078 = vld [vmem:[%s1072 + $0x14] sm:$0xf]
    %v1079 = vld [vmem:[%s1072 + $0x18] sm:$0xf]
    %v1080 = vld [vmem:[%s1072 + $0x1c] sm:$0xf]
    %s1081 = scalar_lea.vmem [#allocation6], 8
    %v1082 = vld [vmem:[%s1081] sm:$0x1]
    %v1084 = vlaneseq
    %v1085 = vshrl.u32 %v1084, 7
    %v1086 = vsub.s32 0, %v1085
    %v1087 = vrot.slane %v1082, %v1086
    %v1097 = vunpack.c.l.b16 %v1073
    %v1098 = vunpack.c.l.b16 %v1074
    %v1099 = vunpack.c.l.b16 %v1075
    %v1100 = vunpack.c.l.b16 %v1076
    %v1101 = vunpack.c.l.b16 %v1077
    %v1102 = vunpack.c.l.b16 %v1078
    %v1103 = vunpack.c.l.b16 %v1079
    %v1104 = vunpack.c.l.b16 %v1080
    %v1105 = vpack.c.b16 %v1098, %v1097
    %v1106 = vpack.c.b16 %v1100, %v1099
    %v1107 = vpack.c.b16 %v1102, %v1101
    %v1108 = vpack.c.b16 %v1104, %v1103
    %v1114 = vsel %vm308, %v1071, 0
    %1116 = vmatprep.subr.bf16.mxu0 0
    %1117 = vmatpush1.bf16.msra.mxu0 0
    %1118 = vmatprep.subr.bf16.mxu0 0
    %1119 = vmatpush1.bf16.msra.mxu0 0
    %1120 = vmatprep.subr.bf16.mxu0 0
    %1121 = vmatpush1.bf16.msra.mxu0 0
    %1122 = vmatprep.subr.bf16.mxu0 0
    %1123 = vmatpush1.bf16.msra.mxu0 0
    %1124 = vmatprep.subr.bf16.mxu0 0
    %1125 = vmatpush1.bf16.msra.mxu0 %v1108
    %1126 = vmatprep.subr.bf16.mxu0 0
    %1127 = vmatpush1.bf16.msra.mxu0 %v1107
    %1128 = vmatprep.subr.bf16.mxu0 0
    %1129 = vmatpush1.bf16.msra.mxu0 %v1106
    %1130 = vmatprep.subr.bf16.mxu0 0
    %1131 = vmatpush1.bf16.msra.mxu0 %v1105
    %1132 = vmatprep.subr.bf16.mxu0 0
    %1133 = vmatpush2.bf16.msra.mxu0 0
    %1134 = vmatprep.subr.bf16.mxu0 0
    %1135 = vmatpush2.bf16.msra.mxu0 0
    %1136 = vmatprep.subr.bf16.mxu0 0
    %1137 = vmatpush2.bf16.msra.mxu0 0
    %1138 = vmatprep.subr.bf16.mxu0 0
    %1139 = vmatpush2.bf16.msra.mxu0 0
    %1140 = vmatprep.subr.bf16.mxu0 0
    %1141 = vmatpush2.bf16.msra.mxu0 0
    %1142 = vmatprep.subr.bf16.mxu0 0
    %1143 = vmatpush2.bf16.msra.mxu0 0
    %1144 = vmatprep.subr.bf16.mxu0 0
    %1145 = vmatpush2.bf16.msra.mxu0 0
    %1146 = vmatprep.subr.bf16.mxu0 0
    %1147 = vmatpush2.bf16.msra.mxu0 0
    %1148 = vmatprep.mubr.bf16.mxu0 0
    %1149 = vmatmul.mubr.bf16.gmra.mxu0 %v1114
    %v1150 = vpop.f32.mrf.mxu0
    %v1151 = vadd.f32 %v1087, %v1150
    %v1152 = vpop.f32.mrf.mxu0
    %v1153 = vpop.f32.mrf.mxu0
    %v1154 = vpop.f32.mrf.mxu0
    %1155 = vdwg.mxu0
    %v1156 = vtanh.pop %v1151
    %v1157 = vrot.slane %v1156, 4
    %v1158 = vadd.f32 %v1156, %v1157
    %v1159 = vrot.slane %v1158, 2
    %v1160 = vadd.f32 %v1158, %v1159
    %v1161 = vrot.slane %v1160, 1
    %v1162 = vadd.f32 %v1160, %v1161
    %v1163 = vmul.f32 %v1162, %v121
    %v1164 = vmul.f32 %v1156, %v1156
    %v1165 = vrot.slane %v1164, 4
    %v1166 = vadd.f32 %v1164, %v1165
    %v1167 = vrot.slane %v1166, 2
    %v1168 = vadd.f32 %v1166, %v1167
    %v1169 = vrot.slane %v1168, 1
    %v1170 = vadd.f32 %v1168, %v1169
    %v1171 = vmul.f32 %v1170, %v121
    %v1172 = vmul.f32 %v1163, %v1163
    %v1173 = vsub.f32 %v1171, %v1172
    %v1174 = vmax.f32 %v1173, 0.0
    %v1175 = vadd.f32 %v1174, 1e-05
    %v1176 = vrsqrt.pop %v1175
    %s1177 = scalar_lea.vmem %s4, 8
    %v1178 = vld [vmem:[%s1177] sm:$0x1]
    %v1179 = vmul.f32 %v1178, %v1176
    %s1180 = scalar_lea.vmem [#allocation7], 8
    %v1181 = vld [vmem:[%s1180] sm:$0x1]
    %v1182 = vmul.f32 %v1163, %v1179
    %v1183 = vsub.f32 %v1181, %v1182
    %v1185 = vlaneseq
    %v1186 = vshrl.u32 %v1185, 7
    %v1187 = vsub.s32 0, %v1186
    %v1188 = vrot.slane %v1179, %v1187
    %v1190 = vmul.f32 %v1156, %v1188
    %v1192 = vlaneseq
    %v1193 = vshrl.u32 %v1192, 7
    %v1194 = vsub.s32 0, %v1193
    %v1195 = vrot.slane %v1183, %v1194
    %v1197 = vadd.f32 %v1190, %v1195
    %v1198 = vpack.c.bf16 %v1197, %v1197
    %s1199 = scalar_lea.vmem [#allocation4], 512
    %v1200 = vld [vmem:[%s1199] sm:$0xf]
    %v1201 = vld [vmem:[%s1199 + $0x4] sm:$0xf]
    %v1202 = vld [vmem:[%s1199 + $0x8] sm:$0xf]
    %v1203 = vld [vmem:[%s1199 + $0xc] sm:$0xf]
    %s1204 = scalar_lea.vmem [#allocation6], 9
    %v1205 = vld [vmem:[%s1204] sm:$0x1]
    %v1207 = vlaneseq
    %v1208 = vshrl.u32 %v1207, 7
    %v1209 = vsub.s32 0, %v1208
    %v1210 = vrot.slane %v1205, %v1209
    %v1216 = vunpack.c.l.b16 %v1200
    %v1217 = vunpack.c.l.b16 %v1201
    %v1218 = vunpack.c.l.b16 %v1202
    %v1219 = vunpack.c.l.b16 %v1203
    %v1220 = vpack.c.b16 %v1217, %v1216
    %v1221 = vpack.c.b16 %v1219, %v1218
    %v1225 = vsel %vm180, %v1198, 0
    %1227 = vmatprep.subr.bf16.mxu0 0
    %1228 = vmatpush1.bf16.msra.mxu0 0
    %1229 = vmatprep.subr.bf16.mxu0 0
    %1230 = vmatpush1.bf16.msra.mxu0 0
    %1231 = vmatprep.subr.bf16.mxu0 0
    %1232 = vmatpush1.bf16.msra.mxu0 0
    %1233 = vmatprep.subr.bf16.mxu0 0
    %1234 = vmatpush1.bf16.msra.mxu0 0
    %1235 = vmatprep.subr.bf16.mxu0 0
    %1236 = vmatpush1.bf16.msra.mxu0 0
    %1237 = vmatprep.subr.bf16.mxu0 0
    %1238 = vmatpush1.bf16.msra.mxu0 0
    %1239 = vmatprep.subr.bf16.mxu0 0
    %1240 = vmatpush1.bf16.msra.mxu0 %v1221
    %1241 = vmatprep.subr.bf16.mxu0 0
    %1242 = vmatpush1.bf16.msra.mxu0 %v1220
    %1243 = vmatprep.subr.bf16.mxu0 0
    %1244 = vmatpush2.bf16.msra.mxu0 0
    %1245 = vmatprep.subr.bf16.mxu0 0
    %1246 = vmatpush2.bf16.msra.mxu0 0
    %1247 = vmatprep.subr.bf16.mxu0 0
    %1248 = vmatpush2.bf16.msra.mxu0 0
    %1249 = vmatprep.subr.bf16.mxu0 0
    %1250 = vmatpush2.bf16.msra.mxu0 0
    %1251 = vmatprep.subr.bf16.mxu0 0
    %1252 = vmatpush2.bf16.msra.mxu0 0
    %1253 = vmatprep.subr.bf16.mxu0 0
    %1254 = vmatpush2.bf16.msra.mxu0 0
    %1255 = vmatprep.subr.bf16.mxu0 0
    %1256 = vmatpush2.bf16.msra.mxu0 0
    %1257 = vmatprep.subr.bf16.mxu0 0
    %1258 = vmatpush2.bf16.msra.mxu0 0
    %1259 = vmatprep.mubr.bf16.mxu0 0
    %1260 = vmatmul.mubr.bf16.gmra.mxu0 %v1225
    %v1261 = vpop.f32.mrf.mxu0
    %v1262 = vadd.f32 %v1210, %v1261
    %v1263 = vpop.f32.mrf.mxu0
    %v1264 = vpop.f32.mrf.mxu0
    %v1265 = vpop.f32.mrf.mxu0
    %1266 = vdwg.mxu0
    %v1267 = vtanh.pop %v1262
    %v1268 = vrot.slane %v1267, 4
    %v1269 = vadd.f32 %v1267, %v1268
    %v1270 = vrot.slane %v1269, 2
    %v1271 = vadd.f32 %v1269, %v1270
    %v1272 = vrot.slane %v1271, 1
    %v1273 = vadd.f32 %v1271, %v1272
    %v1274 = vmul.f32 %v1273, %v121
    %v1275 = vmul.f32 %v1267, %v1267
    %v1276 = vrot.slane %v1275, 4
    %v1277 = vadd.f32 %v1275, %v1276
    %v1278 = vrot.slane %v1277, 2
    %v1279 = vadd.f32 %v1277, %v1278
    %v1280 = vrot.slane %v1279, 1
    %v1281 = vadd.f32 %v1279, %v1280
    %v1282 = vmul.f32 %v1281, %v121
    %v1283 = vmul.f32 %v1274, %v1274
    %v1284 = vsub.f32 %v1282, %v1283
    %v1285 = vmax.f32 %v1284, 0.0
    %v1286 = vadd.f32 %v1285, 1e-05
    %v1287 = vrsqrt.pop %v1286
    %s1288 = scalar_lea.vmem %s4, 9
    %v1289 = vld [vmem:[%s1288] sm:$0x1]
    %v1290 = vmul.f32 %v1289, %v1287
    %s1291 = scalar_lea.vmem [#allocation7], 9
    %v1292 = vld [vmem:[%s1291] sm:$0x1]
    %v1293 = vmul.f32 %v1274, %v1290
    %v1294 = vsub.f32 %v1292, %v1293
    %v1296 = vlaneseq
    %v1297 = vshrl.u32 %v1296, 7
    %v1298 = vsub.s32 0, %v1297
    %v1299 = vrot.slane %v1290, %v1298
    %v1301 = vmul.f32 %v1267, %v1299
    %v1303 = vlaneseq
    %v1304 = vshrl.u32 %v1303, 7
    %v1305 = vsub.s32 0, %v1304
    %v1306 = vrot.slane %v1294, %v1305
    %v1308 = vadd.f32 %v1301, %v1306
    %v1309 = vpack.c.bf16 %v1308, %v1308
    %s1310 = scalar_lea.vmem [#allocation4], 576
    %v1311 = vld [vmem:[%s1310] sm:$0xf]
    %v1312 = vld [vmem:[%s1310 + $0x4] sm:$0xf]
    %v1313 = vld [vmem:[%s1310 + $0x8] sm:$0xf]
    %v1314 = vld [vmem:[%s1310 + $0xc] sm:$0xf]
    %v1315 = vld [vmem:[%s1310 + $0x10] sm:$0xf]
    %v1316 = vld [vmem:[%s1310 + $0x14] sm:$0xf]
    %v1317 = vld [vmem:[%s1310 + $0x18] sm:$0xf]
    %v1318 = vld [vmem:[%s1310 + $0x1c] sm:$0xf]
    %s1319 = scalar_lea.vmem [#allocation6], 10
    %v1320 = vld [vmem:[%s1319] sm:$0x1]
    %v1322 = vlaneseq
    %v1323 = vshrl.u32 %v1322, 7
    %v1324 = vsub.s32 0, %v1323
    %v1325 = vrot.slane %v1320, %v1324
    %v1335 = vunpack.c.l.b16 %v1311
    %v1336 = vunpack.c.l.b16 %v1312
    %v1337 = vunpack.c.l.b16 %v1313
    %v1338 = vunpack.c.l.b16 %v1314
    %v1339 = vunpack.c.l.b16 %v1315
    %v1340 = vunpack.c.l.b16 %v1316
    %v1341 = vunpack.c.l.b16 %v1317
    %v1342 = vunpack.c.l.b16 %v1318
    %v1343 = vpack.c.b16 %v1336, %v1335
    %v1344 = vpack.c.b16 %v1338, %v1337
    %v1345 = vpack.c.b16 %v1340, %v1339
    %v1346 = vpack.c.b16 %v1342, %v1341
    %v1352 = vsel %vm308, %v1309, 0
    %1354 = vmatprep.subr.bf16.mxu0 0
    %1355 = vmatpush1.bf16.msra.mxu0 0
    %1356 = vmatprep.subr.bf16.mxu0 0
    %1357 = vmatpush1.bf16.msra.mxu0 0
    %1358 = vmatprep.subr.bf16.mxu0 0
    %1359 = vmatpush1.bf16.msra.mxu0 0
    %1360 = vmatprep.subr.bf16.mxu0 0
    %1361 = vmatpush1.bf16.msra.mxu0 0
    %1362 = vmatprep.subr.bf16.mxu0 0
    %1363 = vmatpush1.bf16.msra.mxu0 %v1346
    %1364 = vmatprep.subr.bf16.mxu0 0
    %1365 = vmatpush1.bf16.msra.mxu0 %v1345
    %1366 = vmatprep.subr.bf16.mxu0 0
    %1367 = vmatpush1.bf16.msra.mxu0 %v1344
    %1368 = vmatprep.subr.bf16.mxu0 0
    %1369 = vmatpush1.bf16.msra.mxu0 %v1343
    %1370 = vmatprep.subr.bf16.mxu0 0
    %1371 = vmatpush2.bf16.msra.mxu0 0
    %1372 = vmatprep.subr.bf16.mxu0 0
    %1373 = vmatpush2.bf16.msra.mxu0 0
    %1374 = vmatprep.subr.bf16.mxu0 0
    %1375 = vmatpush2.bf16.msra.mxu0 0
    %1376 = vmatprep.subr.bf16.mxu0 0
    %1377 = vmatpush2.bf16.msra.mxu0 0
    %1378 = vmatprep.subr.bf16.mxu0 0
    %1379 = vmatpush2.bf16.msra.mxu0 0
    %1380 = vmatprep.subr.bf16.mxu0 0
    %1381 = vmatpush2.bf16.msra.mxu0 0
    %1382 = vmatprep.subr.bf16.mxu0 0
    %1383 = vmatpush2.bf16.msra.mxu0 0
    %1384 = vmatprep.subr.bf16.mxu0 0
    %1385 = vmatpush2.bf16.msra.mxu0 0
    %1386 = vmatprep.mubr.bf16.mxu0 0
    %1387 = vmatmul.mubr.bf16.gmra.mxu0 %v1352
    %v1388 = vpop.f32.mrf.mxu0
    %v1389 = vadd.f32 %v1325, %v1388
    %v1390 = vpop.f32.mrf.mxu0
    %v1391 = vpop.f32.mrf.mxu0
    %v1392 = vpop.f32.mrf.mxu0
    %1393 = vdwg.mxu0
    %v1394 = vtanh.pop %v1389
    %v1395 = vrot.slane %v1394, 4
    %v1396 = vadd.f32 %v1394, %v1395
    %v1397 = vrot.slane %v1396, 2
    %v1398 = vadd.f32 %v1396, %v1397
    %v1399 = vrot.slane %v1398, 1
    %v1400 = vadd.f32 %v1398, %v1399
    %v1401 = vmul.f32 %v1400, %v121
    %v1402 = vmul.f32 %v1394, %v1394
    %v1403 = vrot.slane %v1402, 4
    %v1404 = vadd.f32 %v1402, %v1403
    %v1405 = vrot.slane %v1404, 2
    %v1406 = vadd.f32 %v1404, %v1405
    %v1407 = vrot.slane %v1406, 1
    %v1408 = vadd.f32 %v1406, %v1407
    %v1409 = vmul.f32 %v1408, %v121
    %v1410 = vmul.f32 %v1401, %v1401
    %v1411 = vsub.f32 %v1409, %v1410
    %v1412 = vmax.f32 %v1411, 0.0
    %v1413 = vadd.f32 %v1412, 1e-05
    %v1414 = vrsqrt.pop %v1413
    %s1415 = scalar_lea.vmem %s4, 10
    %v1416 = vld [vmem:[%s1415] sm:$0x1]
    %v1417 = vmul.f32 %v1416, %v1414
    %s1418 = scalar_lea.vmem [#allocation7], 10
    %v1419 = vld [vmem:[%s1418] sm:$0x1]
    %v1420 = vmul.f32 %v1401, %v1417
    %v1421 = vsub.f32 %v1419, %v1420
    %v1423 = vlaneseq
    %v1424 = vshrl.u32 %v1423, 7
    %v1425 = vsub.s32 0, %v1424
    %v1426 = vrot.slane %v1417, %v1425
    %v1428 = vmul.f32 %v1394, %v1426
    %v1430 = vlaneseq
    %v1431 = vshrl.u32 %v1430, 7
    %v1432 = vsub.s32 0, %v1431
    %v1433 = vrot.slane %v1421, %v1432
    %v1435 = vadd.f32 %v1428, %v1433
    %v1436 = vpack.c.bf16 %v1435, %v1435
    %s1437 = scalar_lea.vmem [#allocation4], 640
    %v1438 = vld [vmem:[%s1437] sm:$0xf]
    %v1439 = vld [vmem:[%s1437 + $0x4] sm:$0xf]
    %v1440 = vld [vmem:[%s1437 + $0x8] sm:$0xf]
    %v1441 = vld [vmem:[%s1437 + $0xc] sm:$0xf]
    %v1442 = vld [vmem:[%s1437 + $0x10] sm:$0xf]
    %v1443 = vld [vmem:[%s1437 + $0x14] sm:$0xf]
    %v1444 = vld [vmem:[%s1437 + $0x18] sm:$0xf]
    %v1445 = vld [vmem:[%s1437 + $0x1c] sm:$0xf]
    %v1446 = vld [vmem:[%s1437 + $0x20] sm:$0xf]
    %v1447 = vld [vmem:[%s1437 + $0x24] sm:$0xf]
    %v1448 = vld [vmem:[%s1437 + $0x28] sm:$0xf]
    %v1449 = vld [vmem:[%s1437 + $0x2c] sm:$0xf]
    %v1450 = vld [vmem:[%s1437 + $0x30] sm:$0xf]
    %v1451 = vld [vmem:[%s1437 + $0x34] sm:$0xf]
    %v1452 = vld [vmem:[%s1437 + $0x38] sm:$0xf]
    %v1453 = vld [vmem:[%s1437 + $0x3c] sm:$0xf]
    %s1454 = scalar_lea.vmem [#allocation6], 11
    %v1455 = vld [vmem:[%s1454] sm:$0x1]
    %v1457 = vlaneseq
    %v1458 = vshrl.u32 %v1457, 7
    %v1459 = vsub.s32 0, %v1458
    %v1460 = vrot.slane %v1455, %v1459
    %v1478 = vunpack.c.l.b16 %v1438
    %v1479 = vunpack.c.l.b16 %v1439
    %v1480 = vunpack.c.l.b16 %v1440
    %v1481 = vunpack.c.l.b16 %v1441
    %v1482 = vunpack.c.l.b16 %v1442
    %v1483 = vunpack.c.l.b16 %v1443
    %v1484 = vunpack.c.l.b16 %v1444
    %v1485 = vunpack.c.l.b16 %v1445
    %v1486 = vunpack.c.l.b16 %v1446
    %v1487 = vunpack.c.l.b16 %v1447
    %v1488 = vunpack.c.l.b16 %v1448
    %v1489 = vunpack.c.l.b16 %v1449
    %v1490 = vunpack.c.l.b16 %v1450
    %v1491 = vunpack.c.l.b16 %v1451
    %v1492 = vunpack.c.l.b16 %v1452
    %v1493 = vunpack.c.l.b16 %v1453
    %v1494 = vpack.c.b16 %v1479, %v1478
    %v1495 = vpack.c.b16 %v1481, %v1480
    %v1496 = vpack.c.b16 %v1483, %v1482
    %v1497 = vpack.c.b16 %v1485, %v1484
    %v1498 = vpack.c.b16 %v1487, %v1486
    %v1499 = vpack.c.b16 %v1489, %v1488
    %v1500 = vpack.c.b16 %v1491, %v1490
    %v1501 = vpack.c.b16 %v1493, %v1492
    %1510 = vmatprep.subr.bf16.mxu0 0
    %1511 = vmatpush1.bf16.msra.mxu0 %v1501
    %1512 = vmatprep.subr.bf16.mxu0 0
    %1513 = vmatpush1.bf16.msra.mxu0 %v1500
    %1514 = vmatprep.subr.bf16.mxu0 0
    %1515 = vmatpush1.bf16.msra.mxu0 %v1499
    %1516 = vmatprep.subr.bf16.mxu0 0
    %1517 = vmatpush1.bf16.msra.mxu0 %v1498
    %1518 = vmatprep.subr.bf16.mxu0 0
    %1519 = vmatpush1.bf16.msra.mxu0 %v1497
    %1520 = vmatprep.subr.bf16.mxu0 0
    %1521 = vmatpush1.bf16.msra.mxu0 %v1496
    %1522 = vmatprep.subr.bf16.mxu0 0
    %1523 = vmatpush1.bf16.msra.mxu0 %v1495
    %1524 = vmatprep.subr.bf16.mxu0 0
    %1525 = vmatpush1.bf16.msra.mxu0 %v1494
    %1526 = vmatprep.subr.bf16.mxu0 0
    %1527 = vmatpush2.bf16.msra.mxu0 0
    %1528 = vmatprep.subr.bf16.mxu0 0
    %1529 = vmatpush2.bf16.msra.mxu0 0
    %1530 = vmatprep.subr.bf16.mxu0 0
    %1531 = vmatpush2.bf16.msra.mxu0 0
    %1532 = vmatprep.subr.bf16.mxu0 0
    %1533 = vmatpush2.bf16.msra.mxu0 0
    %1534 = vmatprep.subr.bf16.mxu0 0
    %1535 = vmatpush2.bf16.msra.mxu0 0
    %1536 = vmatprep.subr.bf16.mxu0 0
    %1537 = vmatpush2.bf16.msra.mxu0 0
    %1538 = vmatprep.subr.bf16.mxu0 0
    %1539 = vmatpush2.bf16.msra.mxu0 0
    %1540 = vmatprep.subr.bf16.mxu0 0
    %1541 = vmatpush2.bf16.msra.mxu0 0
    %1542 = vmatprep.mubr.bf16.mxu0 0
    %1543 = vmatmul.mubr.bf16.gmra.mxu0 %v1436
    %v1544 = vpop.f32.mrf.mxu0
    %v1545 = vadd.f32 %v1460, %v1544
    %v1546 = vpop.f32.mrf.mxu0
    %v1547 = vpop.f32.mrf.mxu0
    %v1548 = vpop.f32.mrf.mxu0
    %1549 = vdwg.mxu0
    %v1550 = vtanh.pop %v1545
    %v1551 = vrot.slane %v1550, 4
    %v1552 = vadd.f32 %v1550, %v1551
    %v1553 = vrot.slane %v1552, 2
    %v1554 = vadd.f32 %v1552, %v1553
    %v1555 = vrot.slane %v1554, 1
    %v1556 = vadd.f32 %v1554, %v1555
    %v1557 = vmul.f32 %v1556, %v121
    %v1558 = vmul.f32 %v1550, %v1550
    %v1559 = vrot.slane %v1558, 4
    %v1560 = vadd.f32 %v1558, %v1559
    %v1561 = vrot.slane %v1560, 2
    %v1562 = vadd.f32 %v1560, %v1561
    %v1563 = vrot.slane %v1562, 1
    %v1564 = vadd.f32 %v1562, %v1563
    %v1565 = vmul.f32 %v1564, %v121
    %v1566 = vmul.f32 %v1557, %v1557
    %v1567 = vsub.f32 %v1565, %v1566
    %v1568 = vmax.f32 %v1567, 0.0
    %v1569 = vadd.f32 %v1568, 1e-05
    %v1570 = vrsqrt.pop %v1569
    %s1571 = scalar_lea.vmem %s4, 11
    %v1572 = vld [vmem:[%s1571] sm:$0x1]
    %v1573 = vmul.f32 %v1572, %v1570
    %s1574 = scalar_lea.vmem [#allocation7], 11
    %v1575 = vld [vmem:[%s1574] sm:$0x1]
    %v1576 = vmul.f32 %v1557, %v1573
    %v1577 = vsub.f32 %v1575, %v1576
    %v1579 = vlaneseq
    %v1580 = vshrl.u32 %v1579, 7
    %v1581 = vsub.s32 0, %v1580
    %v1582 = vrot.slane %v1573, %v1581
    %v1584 = vmul.f32 %v1550, %v1582
    %v1586 = vlaneseq
    %v1587 = vshrl.u32 %v1586, 7
    %v1588 = vsub.s32 0, %v1587
    %v1589 = vrot.slane %v1577, %v1588
    %v1591 = vadd.f32 %v1584, %v1589
    %v1592 = vpack.c.bf16 %v1591, %v1591
    %s1593 = scalar_lea.vmem [#allocation4], 704
    %v1594 = vld [vmem:[%s1593] sm:$0xf]
    %v1595 = vld [vmem:[%s1593 + $0x4] sm:$0xf]
    %v1596 = vld [vmem:[%s1593 + $0x8] sm:$0xf]
    %v1597 = vld [vmem:[%s1593 + $0xc] sm:$0xf]
    %v1598 = vld [vmem:[%s1593 + $0x10] sm:$0xf]
    %v1599 = vld [vmem:[%s1593 + $0x14] sm:$0xf]
    %v1600 = vld [vmem:[%s1593 + $0x18] sm:$0xf]
    %v1601 = vld [vmem:[%s1593 + $0x1c] sm:$0xf]
    %s1602 = scalar_lea.vmem [#allocation6], 12
    %v1603 = vld [vmem:[%s1602] sm:$0x1]
    %v1605 = vlaneseq
    %v1606 = vshrl.u32 %v1605, 7
    %v1607 = vsub.s32 0, %v1606
    %v1608 = vrot.slane %v1603, %v1607
    %v1618 = vunpack.c.l.b16 %v1594
    %v1619 = vunpack.c.l.b16 %v1595
    %v1620 = vunpack.c.l.b16 %v1596
    %v1621 = vunpack.c.l.b16 %v1597
    %v1622 = vunpack.c.l.b16 %v1598
    %v1623 = vunpack.c.l.b16 %v1599
    %v1624 = vunpack.c.l.b16 %v1600
    %v1625 = vunpack.c.l.b16 %v1601
    %v1626 = vpack.c.b16 %v1619, %v1618
    %v1627 = vpack.c.b16 %v1621, %v1620
    %v1628 = vpack.c.b16 %v1623, %v1622
    %v1629 = vpack.c.b16 %v1625, %v1624
    %v1635 = vsel %vm308, %v1592, 0
    %1637 = vmatprep.subr.bf16.mxu0 0
    %1638 = vmatpush1.bf16.msra.mxu0 0
    %1639 = vmatprep.subr.bf16.mxu0 0
    %1640 = vmatpush1.bf16.msra.mxu0 0
    %1641 = vmatprep.subr.bf16.mxu0 0
    %1642 = vmatpush1.bf16.msra.mxu0 0
    %1643 = vmatprep.subr.bf16.mxu0 0
    %1644 = vmatpush1.bf16.msra.mxu0 0
    %1645 = vmatprep.subr.bf16.mxu0 0
    %1646 = vmatpush1.bf16.msra.mxu0 %v1629
    %1647 = vmatprep.subr.bf16.mxu0 0
    %1648 = vmatpush1.bf16.msra.mxu0 %v1628
    %1649 = vmatprep.subr.bf16.mxu0 0
    %1650 = vmatpush1.bf16.msra.mxu0 %v1627
    %1651 = vmatprep.subr.bf16.mxu0 0
    %1652 = vmatpush1.bf16.msra.mxu0 %v1626
    %1653 = vmatprep.subr.bf16.mxu0 0
    %1654 = vmatpush2.bf16.msra.mxu0 0
    %1655 = vmatprep.subr.bf16.mxu0 0
    %1656 = vmatpush2.bf16.msra.mxu0 0
    %1657 = vmatprep.subr.bf16.mxu0 0
    %1658 = vmatpush2.bf16.msra.mxu0 0
    %1659 = vmatprep.subr.bf16.mxu0 0
    %1660 = vmatpush2.bf16.msra.mxu0 0
    %1661 = vmatprep.subr.bf16.mxu0 0
    %1662 = vmatpush2.bf16.msra.mxu0 0
    %1663 = vmatprep.subr.bf16.mxu0 0
    %1664 = vmatpush2.bf16.msra.mxu0 0
    %1665 = vmatprep.subr.bf16.mxu0 0
    %1666 = vmatpush2.bf16.msra.mxu0 0
    %1667 = vmatprep.subr.bf16.mxu0 0
    %1668 = vmatpush2.bf16.msra.mxu0 0
    %1669 = vmatprep.mubr.bf16.mxu0 0
    %1670 = vmatmul.mubr.bf16.gmra.mxu0 %v1635
    %v1671 = vpop.f32.mrf.mxu0
    %v1672 = vadd.f32 %v1608, %v1671
    %v1673 = vpop.f32.mrf.mxu0
    %v1674 = vpop.f32.mrf.mxu0
    %v1675 = vpop.f32.mrf.mxu0
    %1676 = vdwg.mxu0
    %v1677 = vtanh.pop %v1672
    %v1678 = vrot.slane %v1677, 4
    %v1679 = vadd.f32 %v1677, %v1678
    %v1680 = vrot.slane %v1679, 2
    %v1681 = vadd.f32 %v1679, %v1680
    %v1682 = vrot.slane %v1681, 1
    %v1683 = vadd.f32 %v1681, %v1682
    %v1684 = vmul.f32 %v1683, %v121
    %v1685 = vmul.f32 %v1677, %v1677
    %v1686 = vrot.slane %v1685, 4
    %v1687 = vadd.f32 %v1685, %v1686
    %v1688 = vrot.slane %v1687, 2
    %v1689 = vadd.f32 %v1687, %v1688
    %v1690 = vrot.slane %v1689, 1
    %v1691 = vadd.f32 %v1689, %v1690
    %v1692 = vmul.f32 %v1691, %v121
    %v1693 = vmul.f32 %v1684, %v1684
    %v1694 = vsub.f32 %v1692, %v1693
    %v1695 = vmax.f32 %v1694, 0.0
    %v1696 = vadd.f32 %v1695, 1e-05
    %v1697 = vrsqrt.pop %v1696
    %s1698 = scalar_lea.vmem %s4, 12
    %v1699 = vld [vmem:[%s1698] sm:$0x1]
    %v1700 = vmul.f32 %v1699, %v1697
    %s1701 = scalar_lea.vmem [#allocation7], 12
    %v1702 = vld [vmem:[%s1701] sm:$0x1]
    %v1703 = vmul.f32 %v1684, %v1700
    %v1704 = vsub.f32 %v1702, %v1703
    %v1706 = vlaneseq
    %v1707 = vshrl.u32 %v1706, 7
    %v1708 = vsub.s32 0, %v1707
    %v1709 = vrot.slane %v1700, %v1708
    %v1711 = vmul.f32 %v1677, %v1709
    %v1713 = vlaneseq
    %v1714 = vshrl.u32 %v1713, 7
    %v1715 = vsub.s32 0, %v1714
    %v1716 = vrot.slane %v1704, %v1715
    %v1718 = vadd.f32 %v1711, %v1716
    %v1719 = vpack.c.bf16 %v1718, %v1718
    %s1720 = scalar_lea.vmem [#allocation4], 768
    %v1721 = vld [vmem:[%s1720] sm:$0xf]
    %v1722 = vld [vmem:[%s1720 + $0x4] sm:$0xf]
    %v1723 = vld [vmem:[%s1720 + $0x8] sm:$0xf]
    %v1724 = vld [vmem:[%s1720 + $0xc] sm:$0xf]
    %s1725 = scalar_lea.vmem [#allocation6], 13
    %v1726 = vld [vmem:[%s1725] sm:$0x1]
    %v1728 = vlaneseq
    %v1729 = vshrl.u32 %v1728, 7
    %v1730 = vsub.s32 0, %v1729
    %v1731 = vrot.slane %v1726, %v1730
    %v1737 = vunpack.c.l.b16 %v1721
    %v1738 = vunpack.c.l.b16 %v1722
    %v1739 = vunpack.c.l.b16 %v1723
    %v1740 = vunpack.c.l.b16 %v1724
    %v1741 = vpack.c.b16 %v1738, %v1737
    %v1742 = vpack.c.b16 %v1740, %v1739
    %v1746 = vsel %vm180, %v1719, 0
    %1748 = vmatprep.subr.bf16.mxu0 0
    %1749 = vmatpush1.bf16.msra.mxu0 0
    %1750 = vmatprep.subr.bf16.mxu0 0
    %1751 = vmatpush1.bf16.msra.mxu0 0
    %1752 = vmatprep.subr.bf16.mxu0 0
    %1753 = vmatpush1.bf16.msra.mxu0 0
    %1754 = vmatprep.subr.bf16.mxu0 0
    %1755 = vmatpush1.bf16.msra.mxu0 0
    %1756 = vmatprep.subr.bf16.mxu0 0
    %1757 = vmatpush1.bf16.msra.mxu0 0
    %1758 = vmatprep.subr.bf16.mxu0 0
    %1759 = vmatpush1.bf16.msra.mxu0 0
    %1760 = vmatprep.subr.bf16.mxu0 0
    %1761 = vmatpush1.bf16.msra.mxu0 %v1742
    %1762 = vmatprep.subr.bf16.mxu0 0
    %1763 = vmatpush1.bf16.msra.mxu0 %v1741
    %1764 = vmatprep.subr.bf16.mxu0 0
    %1765 = vmatpush2.bf16.msra.mxu0 0
    %1766 = vmatprep.subr.bf16.mxu0 0
    %1767 = vmatpush2.bf16.msra.mxu0 0
    %1768 = vmatprep.subr.bf16.mxu0 0
    %1769 = vmatpush2.bf16.msra.mxu0 0
    %1770 = vmatprep.subr.bf16.mxu0 0
    %1771 = vmatpush2.bf16.msra.mxu0 0
    %1772 = vmatprep.subr.bf16.mxu0 0
    %1773 = vmatpush2.bf16.msra.mxu0 0
    %1774 = vmatprep.subr.bf16.mxu0 0
    %1775 = vmatpush2.bf16.msra.mxu0 0
    %1776 = vmatprep.subr.bf16.mxu0 0
    %1777 = vmatpush2.bf16.msra.mxu0 0
    %1778 = vmatprep.subr.bf16.mxu0 0
    %1779 = vmatpush2.bf16.msra.mxu0 0
    %1780 = vmatprep.mubr.bf16.mxu0 0
    %1781 = vmatmul.mubr.bf16.gmra.mxu0 %v1746
    %v1782 = vpop.f32.mrf.mxu0
    %v1783 = vadd.f32 %v1731, %v1782
    %v1784 = vpop.f32.mrf.mxu0
    %v1785 = vpop.f32.mrf.mxu0
    %v1786 = vpop.f32.mrf.mxu0
    %1787 = vdwg.mxu0
    %v1788 = vtanh.pop %v1783
    %v1789 = vrot.slane %v1788, 4
    %v1790 = vadd.f32 %v1788, %v1789
    %v1791 = vrot.slane %v1790, 2
    %v1792 = vadd.f32 %v1790, %v1791
    %v1793 = vrot.slane %v1792, 1
    %v1794 = vadd.f32 %v1792, %v1793
    %v1795 = vmul.f32 %v1794, %v121
    %v1796 = vmul.f32 %v1788, %v1788
    %v1797 = vrot.slane %v1796, 4
    %v1798 = vadd.f32 %v1796, %v1797
    %v1799 = vrot.slane %v1798, 2
    %v1800 = vadd.f32 %v1798, %v1799
    %v1801 = vrot.slane %v1800, 1
    %v1802 = vadd.f32 %v1800, %v1801
    %v1803 = vmul.f32 %v1802, %v121
    %v1804 = vmul.f32 %v1795, %v1795
    %v1805 = vsub.f32 %v1803, %v1804
    %v1806 = vmax.f32 %v1805, 0.0
    %v1807 = vadd.f32 %v1806, 1e-05
    %v1808 = vrsqrt.pop %v1807
    %s1809 = scalar_lea.vmem %s4, 13
    %v1810 = vld [vmem:[%s1809] sm:$0x1]
    %v1811 = vmul.f32 %v1810, %v1808
    %s1812 = scalar_lea.vmem [#allocation7], 13
    %v1813 = vld [vmem:[%s1812] sm:$0x1]
    %v1814 = vmul.f32 %v1795, %v1811
    %v1815 = vsub.f32 %v1813, %v1814
    %v1817 = vlaneseq
    %v1818 = vshrl.u32 %v1817, 7
    %v1819 = vsub.s32 0, %v1818
    %v1820 = vrot.slane %v1811, %v1819
    %v1822 = vmul.f32 %v1788, %v1820
    %v1824 = vlaneseq
    %v1825 = vshrl.u32 %v1824, 7
    %v1826 = vsub.s32 0, %v1825
    %v1827 = vrot.slane %v1815, %v1826
    %v1829 = vadd.f32 %v1822, %v1827
    %v1830 = vpack.c.bf16 %v1829, %v1829
    %s1831 = scalar_lea.vmem [#allocation4], 832
    %v1832 = vld [vmem:[%s1831] sm:$0xf]
    %v1833 = vld [vmem:[%s1831 + $0x4] sm:$0xf]
    %s1834 = scalar_lea.vmem [#allocation6], 14
    %v1835 = vld [vmem:[%s1834] sm:$0x1]
    %v1837 = vlaneseq
    %v1838 = vshrl.u32 %v1837, 7
    %v1839 = vsub.s32 0, %v1838
    %v1840 = vrot.slane %v1835, %v1839
    %v1844 = vunpack.c.l.b16 %v1832
    %v1845 = vunpack.c.l.b16 %v1833
    %v1846 = vpack.c.b16 %v1845, %v1844
    %vm1848 = vcmask 130048
    %v1850 = vsel %vm1848, %v1830, 0
    %1852 = vmatprep.subr.bf16.mxu0 0
    %1853 = vmatpush1.bf16.msra.mxu0 0
    %1854 = vmatprep.subr.bf16.mxu0 0
    %1855 = vmatpush1.bf16.msra.mxu0 0
    %1856 = vmatprep.subr.bf16.mxu0 0
    %1857 = vmatpush1.bf16.msra.mxu0 0
    %1858 = vmatprep.subr.bf16.mxu0 0
    %1859 = vmatpush1.bf16.msra.mxu0 0
    %1860 = vmatprep.subr.bf16.mxu0 0
    %1861 = vmatpush1.bf16.msra.mxu0 0
    %1862 = vmatprep.subr.bf16.mxu0 0
    %1863 = vmatpush1.bf16.msra.mxu0 0
    %1864 = vmatprep.subr.bf16.mxu0 0
    %1865 = vmatpush1.bf16.msra.mxu0 0
    %1866 = vmatprep.subr.bf16.mxu0 0
    %1867 = vmatpush1.bf16.msra.mxu0 %v1846
    %1868 = vmatprep.subr.bf16.mxu0 0
    %1869 = vmatpush2.bf16.msra.mxu0 0
    %1870 = vmatprep.subr.bf16.mxu0 0
    %1871 = vmatpush2.bf16.msra.mxu0 0
    %1872 = vmatprep.subr.bf16.mxu0 0
    %1873 = vmatpush2.bf16.msra.mxu0 0
    %1874 = vmatprep.subr.bf16.mxu0 0
    %1875 = vmatpush2.bf16.msra.mxu0 0
    %1876 = vmatprep.subr.bf16.mxu0 0
    %1877 = vmatpush2.bf16.msra.mxu0 0
    %1878 = vmatprep.subr.bf16.mxu0 0
    %1879 = vmatpush2.bf16.msra.mxu0 0
    %1880 = vmatprep.subr.bf16.mxu0 0
    %1881 = vmatpush2.bf16.msra.mxu0 0
    %1882 = vmatprep.subr.bf16.mxu0 0
    %1883 = vmatpush2.bf16.msra.mxu0 0
    %1884 = vmatprep.mubr.bf16.mxu0 0
    %1885 = vmatmul.mubr.bf16.gmra.mxu0 %v1850
    %v1886 = vpop.f32.mrf.mxu0
    %v1887 = vadd.f32 %v1840, %v1886
    %v1888 = vpop.f32.mrf.mxu0
    %v1889 = vpop.f32.mrf.mxu0
    %v1890 = vpop.f32.mrf.mxu0
    %1891 = vdwg.mxu0
    %v1892 = vtanh.pop %v1887
    %v1893 = vrot.slane %v1892, 4
    %v1894 = vadd.f32 %v1892, %v1893
    %v1895 = vrot.slane %v1894, 2
    %v1896 = vadd.f32 %v1894, %v1895
    %v1897 = vrot.slane %v1896, 1
    %v1898 = vadd.f32 %v1896, %v1897
    %v1899 = vmul.f32 %v1898, %v121
    %v1900 = vmul.f32 %v1892, %v1892
    %v1901 = vrot.slane %v1900, 4
    %v1902 = vadd.f32 %v1900, %v1901
    %v1903 = vrot.slane %v1902, 2
    %v1904 = vadd.f32 %v1902, %v1903
    %v1905 = vrot.slane %v1904, 1
    %v1906 = vadd.f32 %v1904, %v1905
    %v1907 = vmul.f32 %v1906, %v121
    %v1908 = vmul.f32 %v1899, %v1899
    %v1909 = vsub.f32 %v1907, %v1908
    %v1910 = vmax.f32 %v1909, 0.0
    %v1911 = vadd.f32 %v1910, 1e-05
    %v1912 = vrsqrt.pop %v1911
    %s1913 = scalar_lea.vmem %s4, 14
    %v1914 = vld [vmem:[%s1913] sm:$0x1]
    %v1915 = vmul.f32 %v1914, %v1912
    %s1916 = scalar_lea.vmem [#allocation7], 14
    %v1917 = vld [vmem:[%s1916] sm:$0x1]
    %v1918 = vmul.f32 %v1899, %v1915
    %v1919 = vsub.f32 %v1917, %v1918
    %v1921 = vlaneseq
    %v1922 = vshrl.u32 %v1921, 7
    %v1923 = vsub.s32 0, %v1922
    %v1924 = vrot.slane %v1915, %v1923
    %v1926 = vmul.f32 %v1892, %v1924
    %v1928 = vlaneseq
    %v1929 = vshrl.u32 %v1928, 7
    %v1930 = vsub.s32 0, %v1929
    %v1931 = vrot.slane %v1919, %v1930
    %v1933 = vadd.f32 %v1926, %v1931
    %v1934 = vpack.c.bf16 %v1933, %v1933
    %s1935 = scalar_lea.vmem [#allocation4], 896
    %v1936 = vld [vmem:[%s1935] sm:$0xf]
    %v1937 = vld [vmem:[%s1935 + $0x4] sm:$0xf]
    %s1938 = scalar_lea.vmem [#allocation6], 15
    %v1939 = vld [vmem:[%s1938] sm:$0x1]
    %v1941 = vlaneseq
    %v1942 = vshrl.u32 %v1941, 7
    %v1943 = vsub.s32 0, %v1942
    %v1944 = vrot.slane %v1939, %v1943
    %v1948 = vunpack.c.l.b16 %v1936
    %v1949 = vunpack.c.l.b16 %v1937
    %v1950 = vpack.c.b16 %v1949, %v1948
    %v1953 = vsel %vm1848, %v1934, 0
    %1955 = vmatprep.subr.bf16.mxu0 0
    %1956 = vmatpush1.bf16.msra.mxu0 0
    %1957 = vmatprep.subr.bf16.mxu0 0
    %1958 = vmatpush1.bf16.msra.mxu0 0
    %1959 = vmatprep.subr.bf16.mxu0 0
    %1960 = vmatpush1.bf16.msra.mxu0 0
    %1961 = vmatprep.subr.bf16.mxu0 0
    %1962 = vmatpush1.bf16.msra.mxu0 0
    %1963 = vmatprep.subr.bf16.mxu0 0
    %1964 = vmatpush1.bf16.msra.mxu0 0
    %1965 = vmatprep.subr.bf16.mxu0 0
    %1966 = vmatpush1.bf16.msra.mxu0 0
    %1967 = vmatprep.subr.bf16.mxu0 0
    %1968 = vmatpush1.bf16.msra.mxu0 0
    %1969 = vmatprep.subr.bf16.mxu0 0
    %1970 = vmatpush1.bf16.msra.mxu0 %v1950
    %1971 = vmatprep.subr.bf16.mxu0 0
    %1972 = vmatpush2.bf16.msra.mxu0 0
    %1973 = vmatprep.subr.bf16.mxu0 0
    %1974 = vmatpush2.bf16.msra.mxu0 0
    %1975 = vmatprep.subr.bf16.mxu0 0
    %1976 = vmatpush2.bf16.msra.mxu0 0
    %1977 = vmatprep.subr.bf16.mxu0 0
    %1978 = vmatpush2.bf16.msra.mxu0 0
    %1979 = vmatprep.subr.bf16.mxu0 0
    %1980 = vmatpush2.bf16.msra.mxu0 0
    %1981 = vmatprep.subr.bf16.mxu0 0
    %1982 = vmatpush2.bf16.msra.mxu0 0
    %1983 = vmatprep.subr.bf16.mxu0 0
    %1984 = vmatpush2.bf16.msra.mxu0 0
    %1985 = vmatprep.subr.bf16.mxu0 0
    %1986 = vmatpush2.bf16.msra.mxu0 0
    %1987 = vmatprep.mubr.bf16.mxu0 0
    %1988 = vmatmul.mubr.bf16.gmra.mxu0 %v1953
    %v1989 = vpop.f32.mrf.mxu0
    %v1990 = vadd.f32 %v1944, %v1989
    %v1991 = vpop.f32.mrf.mxu0
    %v1992 = vpop.f32.mrf.mxu0
    %v1993 = vpop.f32.mrf.mxu0
    %1994 = vdwg.mxu0
    %v1995 = vtanh.pop %v1990
    %v1996 = vrot.slane %v1995, 4
    %v1997 = vadd.f32 %v1995, %v1996
    %v1998 = vrot.slane %v1997, 2
    %v1999 = vadd.f32 %v1997, %v1998
    %v2000 = vrot.slane %v1999, 1
    %v2001 = vadd.f32 %v1999, %v2000
    %v2002 = vmul.f32 %v2001, %v121
    %v2003 = vmul.f32 %v1995, %v1995
    %v2004 = vrot.slane %v2003, 4
    %v2005 = vadd.f32 %v2003, %v2004
    %v2006 = vrot.slane %v2005, 2
    %v2007 = vadd.f32 %v2005, %v2006
    %v2008 = vrot.slane %v2007, 1
    %v2009 = vadd.f32 %v2007, %v2008
    %v2010 = vmul.f32 %v2009, %v121
    %v2011 = vmul.f32 %v2002, %v2002
    %v2012 = vsub.f32 %v2010, %v2011
    %v2013 = vmax.f32 %v2012, 0.0
    %v2014 = vadd.f32 %v2013, 1e-05
    %v2015 = vrsqrt.pop %v2014
    %s2016 = scalar_lea.vmem %s4, 15
    %v2017 = vld [vmem:[%s2016] sm:$0x1]
    %v2018 = vmul.f32 %v2017, %v2015
    %s2019 = scalar_lea.vmem [#allocation7], 15
    %v2020 = vld [vmem:[%s2019] sm:$0x1]
    %v2021 = vmul.f32 %v2002, %v2018
    %v2022 = vsub.f32 %v2020, %v2021
    %v2024 = vlaneseq
    %v2025 = vshrl.u32 %v2024, 7
    %v2026 = vsub.s32 0, %v2025
    %v2027 = vrot.slane %v2018, %v2026
    %v2029 = vmul.f32 %v1995, %v2027
    %v2031 = vlaneseq
    %v2032 = vshrl.u32 %v2031, 7
    %v2033 = vsub.s32 0, %v2032
    %v2034 = vrot.slane %v2022, %v2033
    %v2036 = vadd.f32 %v2029, %v2034
    %v2037 = vpack.c.bf16 %v2036, %v2036
    %s2038 = scalar_lea.vmem [#allocation4], 960
    %v2039 = vld [vmem:[%s2038] sm:$0xf]
    %v2040 = vld [vmem:[%s2038 + $0x4] sm:$0xf]
    %s2041 = scalar_lea.vmem [#allocation6], 16
    %v2042 = vld [vmem:[%s2041] sm:$0x1]
    %v2044 = vlaneseq
    %v2045 = vshrl.u32 %v2044, 7
    %v2046 = vsub.s32 0, %v2045
    %v2047 = vrot.slane %v2042, %v2046
    %v2051 = vunpack.c.l.b16 %v2039
    %v2052 = vunpack.c.l.b16 %v2040
    %v2053 = vpack.c.b16 %v2052, %v2051
    %v2056 = vsel %vm1848, %v2037, 0
    %2058 = vmatprep.subr.bf16.mxu0 0
    %2059 = vmatpush1.bf16.msra.mxu0 0
    %2060 = vmatprep.subr.bf16.mxu0 0
    %2061 = vmatpush1.bf16.msra.mxu0 0
    %2062 = vmatprep.subr.bf16.mxu0 0
    %2063 = vmatpush1.bf16.msra.mxu0 0
    %2064 = vmatprep.subr.bf16.mxu0 0
    %2065 = vmatpush1.bf16.msra.mxu0 0
    %2066 = vmatprep.subr.bf16.mxu0 0
    %2067 = vmatpush1.bf16.msra.mxu0 0
    %2068 = vmatprep.subr.bf16.mxu0 0
    %2069 = vmatpush1.bf16.msra.mxu0 0
    %2070 = vmatprep.subr.bf16.mxu0 0
    %2071 = vmatpush1.bf16.msra.mxu0 0
    %2072 = vmatprep.subr.bf16.mxu0 0
    %2073 = vmatpush1.bf16.msra.mxu0 %v2053
    %2074 = vmatprep.subr.bf16.mxu0 0
    %2075 = vmatpush2.bf16.msra.mxu0 0
    %2076 = vmatprep.subr.bf16.mxu0 0
    %2077 = vmatpush2.bf16.msra.mxu0 0
    %2078 = vmatprep.subr.bf16.mxu0 0
    %2079 = vmatpush2.bf16.msra.mxu0 0
    %2080 = vmatprep.subr.bf16.mxu0 0
    %2081 = vmatpush2.bf16.msra.mxu0 0
    %2082 = vmatprep.subr.bf16.mxu0 0
    %2083 = vmatpush2.bf16.msra.mxu0 0
    %2084 = vmatprep.subr.bf16.mxu0 0
    %2085 = vmatpush2.bf16.msra.mxu0 0
    %2086 = vmatprep.subr.bf16.mxu0 0
    %2087 = vmatpush2.bf16.msra.mxu0 0
    %2088 = vmatprep.subr.bf16.mxu0 0
    %2089 = vmatpush2.bf16.msra.mxu0 0
    %2090 = vmatprep.mubr.bf16.mxu0 0
    %2091 = vmatmul.mubr.bf16.gmra.mxu0 %v2056
    %v2092 = vpop.f32.mrf.mxu0
    %v2093 = vadd.f32 %v2047, %v2092
    %v2094 = vpop.f32.mrf.mxu0
    %v2095 = vpop.f32.mrf.mxu0
    %v2096 = vpop.f32.mrf.mxu0
    %2097 = vdwg.mxu0
    %v2098 = vtanh.pop %v2093
    %v2099 = vrot.slane %v2098, 4
    %v2100 = vadd.f32 %v2098, %v2099
    %v2101 = vrot.slane %v2100, 2
    %v2102 = vadd.f32 %v2100, %v2101
    %v2103 = vrot.slane %v2102, 1
    %v2104 = vadd.f32 %v2102, %v2103
    %v2105 = vmul.f32 %v2104, %v121
    %v2106 = vmul.f32 %v2098, %v2098
    %v2107 = vrot.slane %v2106, 4
    %v2108 = vadd.f32 %v2106, %v2107
    %v2109 = vrot.slane %v2108, 2
    %v2110 = vadd.f32 %v2108, %v2109
    %v2111 = vrot.slane %v2110, 1
    %v2112 = vadd.f32 %v2110, %v2111
    %v2113 = vmul.f32 %v2112, %v121
    %v2114 = vmul.f32 %v2105, %v2105
    %v2115 = vsub.f32 %v2113, %v2114
    %v2116 = vmax.f32 %v2115, 0.0
    %v2117 = vadd.f32 %v2116, 1e-05
    %v2118 = vrsqrt.pop %v2117
    %s2119 = scalar_lea.vmem %s4, 16
    %v2120 = vld [vmem:[%s2119] sm:$0x1]
    %v2121 = vmul.f32 %v2120, %v2118
    %s2122 = scalar_lea.vmem [#allocation7], 16
    %v2123 = vld [vmem:[%s2122] sm:$0x1]
    %v2124 = vmul.f32 %v2105, %v2121
    %v2125 = vsub.f32 %v2123, %v2124
    %v2127 = vlaneseq
    %v2128 = vshrl.u32 %v2127, 7
    %v2129 = vsub.s32 0, %v2128
    %v2130 = vrot.slane %v2121, %v2129
    %v2132 = vmul.f32 %v2098, %v2130
    %v2134 = vlaneseq
    %v2135 = vshrl.u32 %v2134, 7
    %v2136 = vsub.s32 0, %v2135
    %v2137 = vrot.slane %v2125, %v2136
    %v2139 = vadd.f32 %v2132, %v2137
    %v2140 = vld [vmem:[%s6] sm:$0x1]
    %v2142 = vlaneseq
    %v2143 = vshrl.u32 %v2142, 7
    %v2144 = vsub.s32 0, %v2143
    %v2145 = vrot.slane %v2140, %v2144
    %v2147 = vmul.f32 %v2139, %v2145
    %2148 = vadd.xlane.f32.xlu0 %v2147
    %v2149 = vpop.xlane.xlu0 %2148
    %v2150 = vld [vmem:[%s7] sm:$0x1]
    %v2152 = vlaneseq
    %v2153 = vshrl.u32 %v2152, 7
    %v2154 = vsub.s32 0, %v2153
    %v2155 = vrot.slane %v2150, %v2154
    %v2157 = vadd.f32 %v2149, %v2155
    %2158 = vst [vmem:[%s8] sm:$0xff] %v2157
    // Predicated region
    $region50: #{train_all_model_forward.1} parent=1 // pred_check
      _
    $region51: #{train_all_model_forward.1} parent=1 // pred_check_branch
      %2160 = sbr.rel (0) target = $region53
    $region52: #{train_all_model_forward.1} parent=1 // pred_region
      _
    $region53: #{train_all_model_forward.1} parent=1 // pred_fallthru
      _
    // Predicated region
    $region54: #{train_all_model_forward.1} parent=1 // pred_check
      _
    $region55: #{train_all_model_forward.1} parent=1 // pred_check_branch
      %2162 = sbr.rel (0) target = $region57
    $region56: #{train_all_model_forward.1} parent=1 // pred_region
      _
    $region57: #{train_all_model_forward.1} parent=1 // pred_fallthru
      _
    %2163 = vsyncpa [#allocation3], 1
    %2164 = vsyncpa [#allocation5], 1
    %2165 = vsyncpa [#allocation8], 1

</llo_original>
